<compile_context>
chip_gen: v6e
topology: v6e:2x2x1
jax: 0.10.0
libtpu: 0.0.40
codegen_flags: <defaults>
</compile_context>

<pallas_src>
import numpy as np
import jax
import jax.numpy as jnp
from jax.experimental import pallas as pl
from jax.experimental.pallas import tpu as pltpu

f32 = jnp.float32
WEIGHT_DTYPE = jnp.bfloat16   # flip to jnp.float32 for exact-f32 weights

EMBED = 256
TEXT_DIM = 128      # text_feat width (cat(text, img) must be 256)
IMG_DIM = 512       # img_feat width   (fc : Linear(512, 128))
SMILES_DIM = 48     # smiles width     (fc4: Linear(48, 128))

HEAD_OUT_DIMS = (1, 2, 12, 27, 617)
HEAD_PAD_DIMS = tuple(((d + 127) // 128) * 128 for d in HEAD_OUT_DIMS)  # 128,128,128,128,640
HEAD_SLAB_OFFSETS = tuple(int(sum(HEAD_PAD_DIMS[:i])) for i in range(len(HEAD_PAD_DIMS)))
HEAD_SLAB_WIDTH = int(sum(HEAD_PAD_DIMS))                                # 1152


def _vmem():
    return pl.BlockSpec(memory_space=pltpu.MemorySpace.VMEM)


def _smem():
    return pl.BlockSpec(memory_space=pltpu.MemorySpace.SMEM)


def _hbm():
    # Leave the array in place (HBM); the kernel DMAs it manually.
    return pl.BlockSpec(memory_space=pl.ANY)


# ---------------------------------------------------------------------------
# The single fused kernel
# ---------------------------------------------------------------------------
def fused_clip_kernel(
        # --- inputs -----------------------------------------------------
        scale_ref,                                   # SMEM (1,1): exp(logit_scale)
        text_ref, img_ref, smi_ref,                  # VMEM activations
        fcw_ref, fcb_ref, fc4w_ref, fc4b_ref,        # VMEM small projection weights
        bvo_ref, b1_ref, b2_ref, b3_ref,             # VMEM biases (f32, lane-dense)
        wvo_hbm, w1_hbm, w2_hbm, w3_hbm,             # HBM (pl.ANY) big weights
        # --- outputs ----------------------------------------------------
        loss_ref, attn_ref, heads_ref,
        # --- scratch ----------------------------------------------------
        wvo_buf, w1_buf, w2_buf, w3_buf, dma_sems):
    # Kick off the HBM->VMEM DMAs for everything needed *after* the CLIP loss;
    # they overlap the projection / normalize / logits / cross-entropy compute.
    cp_vo = pltpu.make_async_copy(wvo_hbm, wvo_buf, dma_sems.at[0])
    cp_w1 = pltpu.make_async_copy(w1_hbm, w1_buf, dma_sems.at[1])
    cp_w2 = pltpu.make_async_copy(w2_hbm, w2_buf, dma_sems.at[2])
    cp_w3 = pltpu.make_async_copy(w3_hbm, w3_buf, dma_sems.at[3])
    cp_vo.start()
    cp_w1.start()
    cp_w2.start()
    cp_w3.start()

    wdt = fcw_ref.dtype  # weight dtype (bf16 by default)

    def mm(x, w, b):
        # (bf16 x bf16) matmul with f32 accumulation, f32 bias add.
        return jnp.dot(x.astype(w.dtype), w, preferred_element_type=f32) + b

    def l2_normalize(x):
        # matches the reference `x / x.norm(dim=1, keepdim=True)` (no eps).
        return x * jax.lax.rsqrt(jnp.sum(x * x, axis=1, keepdims=True))

    def ce_diag(logits, axis):
        # F.cross_entropy(logits, arange(B)) along rows (axis=1) or, for the
        # transposed matrix, along columns (axis=0) of the SAME matrix.
        b = logits.shape[0]
        m = jnp.max(logits, axis=axis, keepdims=True)
        lse = m + jnp.log(jnp.sum(jnp.exp(logits - m), axis=axis, keepdims=True))
        eye = (jax.lax.broadcasted_iota(jnp.int32, (b, b), 0)
               == jax.lax.broadcasted_iota(jnp.int32, (b, b), 1))
        diag = jnp.sum(jnp.where(eye, logits, 0.0), axis=axis, keepdims=True)
        return jnp.sum(lse - diag) / jnp.float32(b)

    # --- projections + L2 normalize (f32 elementwise) ------------------
    # Only the small fc/fc4 weights (auto-DMA'd) are needed here, so the big
    # head-weight DMAs above run in the shadow of this section.
    text_n = l2_normalize(text_ref[...])                             # [B, 128]
    img_n = l2_normalize(mm(img_ref[...], fcw_ref[...], fcb_ref[...]))    # [B, 128]
    smi_n = l2_normalize(mm(smi_ref[...], fc4w_ref[...], fc4b_ref[...]))  # [B, 128]

    # --- CLIP logits + symmetric cross-entropy loss ---------------------
    scale = scale_ref[0, 0]  # exp(logit_scale), precomputed on host
    # logits_per_image = scale * img_n @ text_n.T ; logits_per_text is its
    # transpose -> one matmul, text CE taken column-wise on the same matrix.
    logits_it = scale * jax.lax.dot_general(
        img_n, text_n, (((1,), (1,)), ((), ())), preferred_element_type=f32)
    logits_si = scale * jax.lax.dot_general(
        smi_n, img_n, (((1,), (1,)), ((), ())), preferred_element_type=f32)
    loss = (ce_diag(logits_it, 1)      # image
            + ce_diag(logits_it, 0)    # text  (== CE of the transpose)
            + ce_diag(logits_si, 1)) / 3.0
    loss_ref[...] = jnp.broadcast_to(loss, (1, 1))

    # --- attention + residual -------------------------------------------
    # seq_len == 1 => per-head softmax over a single key is exactly 1, so the
    # attention output equals v; q/k projections are mathematically dead and
    # the v-/out-projections are pre-folded into (w_vo, b_vo) in the wrapper.
    combined = jnp.concatenate([text_n, img_n], axis=1)              # [B, 256]
    cp_vo.wait()
    attn_out = mm(combined, wvo_buf[...], bvo_ref[...]) + combined   # residual
    attn_ref[...] = attn_out

    # --- five 3-layer ReLU MLP heads --------------------------------------
    # Layer 1 of all heads fused into one [256, 1280] matmul; layers 2/3 per
    # head on 128/256-aligned slices; outputs stored into a lane-dense
    # [B, 1152] slab at 128-aligned offsets (w3/b3 zero-padded in the wrapper).
    cp_w1.wait()
    h1 = jnp.maximum(mm(attn_out, w1_buf[...], b1_ref[...]), 0.0)    # [B, 1280]
    cp_w2.wait()
    cp_w3.wait()
    for i in range(5):
        h1_i = h1[:, i * 256:(i + 1) * 256]                          # [B, 256]
        h2_i = jnp.maximum(
            jnp.dot(h1_i.astype(wdt), w2_buf[i], preferred_element_type=f32)
            + b2_ref[:, i * 128:(i + 1) * 128], 0.0)                 # [B, 128]
        off, pad = HEAD_SLAB_OFFSETS[i], HEAD_PAD_DIMS[i]
        heads_ref[:, off:off + pad] = (
            jnp.dot(h2_i.astype(wdt), w3_buf[:, off:off + pad],
                    preferred_element_type=f32) + b3_ref[:, off:off + pad])


# ---------------------------------------------------------------------------
# Parameter init (deterministic, synthetic) and packing
# ---------------------------------------------------------------------------
def init_params(key):
    def linear(k, fan_in, fan_out):
        kw, kb = jax.random.split(k)
        s = 1.0 / np.sqrt(fan_in)
        w = (s * jax.random.normal(kw, (fan_in, fan_out))).astype(f32)
        b = (s * jax.random.normal(kb, (1, fan_out))).astype(f32)
        return w, b

    keys = jax.random.split(key, 11)
    params = {"logit_scale": jnp.full((1, 1), np.log(1.0 / 1.0), f32)}  # = 0.0
    params["fc_w"], params["fc_b"] = linear(keys[0], IMG_DIM, 128)
    params["fc4_w"], params["fc4_b"] = linear(keys[1], SMILES_DIM, 128)
    # q/k projections exist in the module but are mathematically dead for
    # seq_len == 1; initialized for spec faithfulness, dropped at pack time.
    params["wq"], params["bq"] = linear(keys[2], EMBED, EMBED)
    params["wk"], params["bk"] = linear(keys[3], EMBED, EMBED)
    params["wv"], params["bv"] = linear(keys[4], EMBED, EMBED)
    params["wo"], params["bo"] = linear(keys[5], EMBED, EMBED)
    heads = []
    for i, od in enumerate(HEAD_OUT_DIMS):
        k1, k2, k3 = jax.random.split(keys[6 + i], 3)
        w1, b1 = linear(k1, 256, 256)
        w2, b2 = linear(k2, 256, 128)
        w3, b3 = linear(k3, 128, od)
        heads.append((w1, b1, w2, b2, w3, b3))
    params["heads"] = heads
    return params


def pack_params(params, weight_dtype=WEIGHT_DTYPE):
    """One-time host-side packing: precompute exp(logit_scale), fold wv@wo,
    fuse head layer-1, pad head outputs to 128-lane multiples, make all
    biases lane-dense rows, cast weights to bf16 (biases stay f32)."""
    wd = weight_dtype
    p = {"scale": jnp.exp(params["logit_scale"]).astype(f32),     # (1,1)
         "fc_w": params["fc_w"].astype(wd), "fc_b": params["fc_b"],
         "fc4_w": params["fc4_w"].astype(wd), "fc4_b": params["fc4_b"]}
    # seq_len==1 attention: out = x @ (wv @ wo) + (bv @ wo + bo)
    p["w_vo"] = (params["wv"] @ params["wo"]).astype(wd)
    p["b_vo"] = params["bv"] @ params["wo"] + params["bo"]

    w1s, b1s, w2s, b2s, w3p, b3p = [], [], [], [], [], []
    for (w1, b1, w2, b2, w3, b3), pad in zip(params["heads"], HEAD_PAD_DIMS):
        w1s.append(w1)
        b1s.append(b1)
        w2s.append(w2)
        b2s.append(b2)
        od = w3.shape[1]
        w3p.append(jnp.pad(w3, ((0, 0), (0, pad - od))))
        b3p.append(jnp.pad(b3, ((0, 0), (0, pad - od))))
    p["w1"] = jnp.concatenate(w1s, axis=1).astype(wd)   # [256, 1280]
    p["b1"] = jnp.concatenate(b1s, axis=1)              # [1, 1280]
    p["w2"] = jnp.stack(w2s, axis=0).astype(wd)         # [5, 256, 128]
    p["b2"] = jnp.concatenate(b2s, axis=1)              # [1, 640]
    p["w3"] = jnp.concatenate(w3p, axis=1).astype(wd)   # [128, 1152]
    p["b3"] = jnp.concatenate(b3p, axis=1)              # [1, 1152]
    return p


# ---------------------------------------------------------------------------
# Forward wrapper: a single pallas_call
# ---------------------------------------------------------------------------
def simple_clip_forward(packed, text_feat, img_feat, smiles_graph_feat):
    b = text_feat.shape[0]
    wd = packed["fc_w"].dtype

    loss, attn_output, head_slab = pl.pallas_call(
        fused_clip_kernel,
        out_shape=(jax.ShapeDtypeStruct((1, 1), f32),
                   jax.ShapeDtypeStruct((b, EMBED), f32),
                   jax.ShapeDtypeStruct((b, HEAD_SLAB_WIDTH), f32)),
        in_specs=([_smem()]            # exp(logit_scale)
                  + [_vmem()] * 11     # activations, fc/fc4 weights, biases
                  + [_hbm()] * 4),     # w_vo, w1, w2, w3 (manual DMA, overlapped)
        out_specs=(_vmem(), _vmem(), _vmem()),
        scratch_shapes=[
            pltpu.VMEM((EMBED, EMBED), wd),            # w_vo buffer
            pltpu.VMEM((256, 5 * 256), wd),            # fused layer-1 buffer
            pltpu.VMEM((5, 256, 128), wd),             # layer-2 buffers
            pltpu.VMEM((128, HEAD_SLAB_WIDTH), wd),    # padded layer-3 slab
            pltpu.SemaphoreType.DMA((4,)),
        ],
        compiler_params=pltpu.CompilerParams(vmem_limit_bytes=8 * 1024 * 1024),
    )(packed["scale"], text_feat, img_feat, smiles_graph_feat,
      packed["fc_w"], packed["fc_b"], packed["fc4_w"], packed["fc4_b"],
      packed["b_vo"], packed["b1"], packed["b2"], packed["b3"],
      packed["w_vo"], packed["w1"], packed["w2"], packed["w3"])

    heads = [head_slab[:, off:off + od]
             for od, off in zip(HEAD_OUT_DIMS, HEAD_SLAB_OFFSETS)]
    x, x1, x2, x3, x4 = heads
    return loss[0, 0], x, x1, x2, x3, x4, attn_output


if __name__ == "__main__":
    key = jax.random.PRNGKey(0)
    kp, kt, ki, ks = jax.random.split(key, 4)
    params = init_params(kp)
    packed = pack_params(params)

    B = 8
    text_feat = jax.random.normal(kt, (B, TEXT_DIM), f32)
    img_feat = jax.random.normal(ki, (B, IMG_DIM), f32)
    smiles_graph_feat = jax.random.normal(ks, (B, SMILES_DIM), f32)

    fwd = jax.jit(simple_clip_forward)
    outs = jax.block_until_ready(fwd(packed, text_feat, img_feat, smiles_graph_feat))

    loss, x, x1, x2, x3, x4, attn_output = outs
    assert x.shape == (B, 1) and x1.shape == (B, 2) and x2.shape == (B, 12)
    assert x3.shape == (B, 27) and x4.shape == (B, 617)
    assert attn_output.shape == (B, EMBED)
    assert np.isfinite(float(loss))
    print("KERNEL_OK")
</pallas_src>

<mosaic_0001>
module attributes {stable_mosaic.version = 11 : i64} {
  func.func @fused_clip_kernel(%arg0: memref<1x1xf32, #tpu.memory_space<smem>>, %arg1: memref<8x128xf32, #tpu.memory_space<vmem>>, %arg2: memref<8x512xf32, #tpu.memory_space<vmem>>, %arg3: memref<8x48xf32, #tpu.memory_space<vmem>>, %arg4: memref<512x128xbf16, #tpu.memory_space<vmem>>, %arg5: memref<1x128xf32, #tpu.memory_space<vmem>>, %arg6: memref<48x128xbf16, #tpu.memory_space<vmem>>, %arg7: memref<1x128xf32, #tpu.memory_space<vmem>>, %arg8: memref<1x256xf32, #tpu.memory_space<vmem>>, %arg9: memref<1x1280xf32, #tpu.memory_space<vmem>>, %arg10: memref<1x640xf32, #tpu.memory_space<vmem>>, %arg11: memref<1x1152xf32, #tpu.memory_space<vmem>>, %arg12: memref<256x256xbf16, #tpu.memory_space<any>>, %arg13: memref<256x1280xbf16, #tpu.memory_space<any>>, %arg14: memref<5x256x128xbf16, #tpu.memory_space<any>>, %arg15: memref<128x1152xbf16, #tpu.memory_space<any>>, %arg16: memref<1x1xf32, #tpu.memory_space<vmem>>, %arg17: memref<8x256xf32, #tpu.memory_space<vmem>>, %arg18: memref<8x1152xf32, #tpu.memory_space<vmem>>, %arg19: memref<256x256xbf16, #tpu.memory_space<vmem>>, %arg20: memref<256x1280xbf16, #tpu.memory_space<vmem>>, %arg21: memref<5x256x128xbf16, #tpu.memory_space<vmem>>, %arg22: memref<128x1152xbf16, #tpu.memory_space<vmem>>, %arg23: memref<4x!tpu.dma_semaphore, #tpu.memory_space<semaphore_mem>>) attributes {dimension_semantics = [], scalar_prefetch = 0 : i64, scratch_operands = 5 : i64, tpu.core_type = #tpu.core_type<tc>} {
    %c0_i32 = arith.constant 0 : i32
    %0 = tpu.memref_slice %arg23[%c0_i32] : memref<4x!tpu.dma_semaphore, #tpu.memory_space<semaphore_mem>> -> memref<1x!tpu.dma_semaphore, #tpu.memory_space<semaphore_mem>>
    %1 = tpu.memref_squeeze %0 : memref<1x!tpu.dma_semaphore, #tpu.memory_space<semaphore_mem>> -> memref<!tpu.dma_semaphore, #tpu.memory_space<semaphore_mem>>
    tpu.enqueue_dma source(%arg12 : memref<256x256xbf16, #tpu.memory_space<any>>) target(%arg19 : memref<256x256xbf16, #tpu.memory_space<vmem>>) target_semaphore(%1 : memref<!tpu.dma_semaphore, #tpu.memory_space<semaphore_mem>>)
    %c1_i32 = arith.constant 1 : i32
    %2 = tpu.memref_slice %arg23[%c1_i32] : memref<4x!tpu.dma_semaphore, #tpu.memory_space<semaphore_mem>> -> memref<1x!tpu.dma_semaphore, #tpu.memory_space<semaphore_mem>>
    %3 = tpu.memref_squeeze %2 : memref<1x!tpu.dma_semaphore, #tpu.memory_space<semaphore_mem>> -> memref<!tpu.dma_semaphore, #tpu.memory_space<semaphore_mem>>
    tpu.enqueue_dma source(%arg13 : memref<256x1280xbf16, #tpu.memory_space<any>>) target(%arg20 : memref<256x1280xbf16, #tpu.memory_space<vmem>>) target_semaphore(%3 : memref<!tpu.dma_semaphore, #tpu.memory_space<semaphore_mem>>)
    %c2_i32 = arith.constant 2 : i32
    %4 = tpu.memref_slice %arg23[%c2_i32] : memref<4x!tpu.dma_semaphore, #tpu.memory_space<semaphore_mem>> -> memref<1x!tpu.dma_semaphore, #tpu.memory_space<semaphore_mem>>
    %5 = tpu.memref_squeeze %4 : memref<1x!tpu.dma_semaphore, #tpu.memory_space<semaphore_mem>> -> memref<!tpu.dma_semaphore, #tpu.memory_space<semaphore_mem>>
    tpu.enqueue_dma source(%arg14 : memref<5x256x128xbf16, #tpu.memory_space<any>>) target(%arg21 : memref<5x256x128xbf16, #tpu.memory_space<vmem>>) target_semaphore(%5 : memref<!tpu.dma_semaphore, #tpu.memory_space<semaphore_mem>>)
    %c3_i32 = arith.constant 3 : i32
    %6 = tpu.memref_slice %arg23[%c3_i32] : memref<4x!tpu.dma_semaphore, #tpu.memory_space<semaphore_mem>> -> memref<1x!tpu.dma_semaphore, #tpu.memory_space<semaphore_mem>>
    %7 = tpu.memref_squeeze %6 : memref<1x!tpu.dma_semaphore, #tpu.memory_space<semaphore_mem>> -> memref<!tpu.dma_semaphore, #tpu.memory_space<semaphore_mem>>
    tpu.enqueue_dma source(%arg15 : memref<128x1152xbf16, #tpu.memory_space<any>>) target(%arg22 : memref<128x1152xbf16, #tpu.memory_space<vmem>>) target_semaphore(%7 : memref<!tpu.dma_semaphore, #tpu.memory_space<semaphore_mem>>)
    %c0 = arith.constant 0 : index
    %c0_0 = arith.constant 0 : index
    %8 = vector.load %arg1[%c0, %c0_0] : memref<8x128xf32, #tpu.memory_space<vmem>>, vector<8x128xf32>
    %9 = arith.mulf %8, %8 : vector<8x128xf32>
    %cst = arith.constant dense<0.000000e+00> : vector<8xf32>
    %10 = vector.multi_reduction <add>, %9, %cst [1] : vector<8x128xf32> to vector<8xf32>
    %11 = vector.shape_cast %10 : vector<8xf32> to vector<8x1xf32>
    %12 = math.rsqrt %11 : vector<8x1xf32>
    %13 = vector.broadcast %12 : vector<8x1xf32> to vector<8x128xf32>
    %14 = arith.mulf %8, %13 : vector<8x128xf32>
    %c0_1 = arith.constant 0 : index
    %c0_2 = arith.constant 0 : index
    %15 = vector.load %arg2[%c0_1, %c0_2] : memref<8x512xf32, #tpu.memory_space<vmem>>, vector<8x512xf32>
    %c0_3 = arith.constant 0 : index
    %c0_4 = arith.constant 0 : index
    %16 = vector.load %arg4[%c0_3, %c0_4] : memref<512x128xbf16, #tpu.memory_space<vmem>>, vector<512x128xbf16>
    %c0_5 = arith.constant 0 : index
    %c0_6 = arith.constant 0 : index
    %17 = vector.load %arg5[%c0_5, %c0_6] : memref<1x128xf32, #tpu.memory_space<vmem>>, vector<1x128xf32>
    %18 = arith.truncf %15 : vector<8x512xf32> to vector<8x512xbf16>
    %cst_7 = arith.constant dense<0.000000e+00> : vector<8x128xf32>
    %19 = tpu.matmul %18, %16, %cst_7 {dimension_numbers = #tpu.dot_dimension_numbers<[1], [0], [0], [1], [0, 0, 1, 1], [], []>} : vector<8x512xbf16>, vector<512x128xbf16>, vector<8x128xf32> -> vector<8x128xf32>
    %20 = vector.broadcast %17 : vector<1x128xf32> to vector<8x128xf32>
    %21 = arith.addf %19, %20 : vector<8x128xf32>
    %22 = arith.mulf %21, %21 : vector<8x128xf32>
    %cst_8 = arith.constant dense<0.000000e+00> : vector<8xf32>
    %23 = vector.multi_reduction <add>, %22, %cst_8 [1] : vector<8x128xf32> to vector<8xf32>
    %24 = vector.shape_cast %23 : vector<8xf32> to vector<8x1xf32>
    %25 = math.rsqrt %24 : vector<8x1xf32>
    %26 = vector.broadcast %25 : vector<8x1xf32> to vector<8x128xf32>
    %27 = arith.mulf %21, %26 : vector<8x128xf32>
    %c0_9 = arith.constant 0 : index
    %c0_10 = arith.constant 0 : index
    %28 = vector.load %arg3[%c0_9, %c0_10] : memref<8x48xf32, #tpu.memory_space<vmem>>, vector<8x48xf32>
    %c0_11 = arith.constant 0 : index
    %c0_12 = arith.constant 0 : index
    %29 = vector.load %arg6[%c0_11, %c0_12] : memref<48x128xbf16, #tpu.memory_space<vmem>>, vector<48x128xbf16>
    %c0_13 = arith.constant 0 : index
    %c0_14 = arith.constant 0 : index
    %30 = vector.load %arg7[%c0_13, %c0_14] : memref<1x128xf32, #tpu.memory_space<vmem>>, vector<1x128xf32>
    %31 = arith.truncf %28 : vector<8x48xf32> to vector<8x48xbf16>
    %cst_15 = arith.constant dense<0.000000e+00> : vector<8x128xf32>
    %32 = tpu.matmul %31, %29, %cst_15 {dimension_numbers = #tpu.dot_dimension_numbers<[1], [0], [0], [1], [0, 0, 1, 1], [], []>} : vector<8x48xbf16>, vector<48x128xbf16>, vector<8x128xf32> -> vector<8x128xf32>
    %33 = vector.broadcast %30 : vector<1x128xf32> to vector<8x128xf32>
    %34 = arith.addf %32, %33 : vector<8x128xf32>
    %35 = arith.mulf %34, %34 : vector<8x128xf32>
    %cst_16 = arith.constant dense<0.000000e+00> : vector<8xf32>
    %36 = vector.multi_reduction <add>, %35, %cst_16 [1] : vector<8x128xf32> to vector<8xf32>
    %37 = vector.shape_cast %36 : vector<8xf32> to vector<8x1xf32>
    %38 = math.rsqrt %37 : vector<8x1xf32>
    %39 = vector.broadcast %38 : vector<8x1xf32> to vector<8x128xf32>
    %40 = arith.mulf %34, %39 : vector<8x128xf32>
    %c0_17 = arith.constant 0 : index
    %c0_18 = arith.constant 0 : index
    %41 = memref.load %arg0[%c0_17, %c0_18] : memref<1x1xf32, #tpu.memory_space<smem>>
    %cst_19 = arith.constant dense<0.000000e+00> : vector<8x8xf32>
    %42 = tpu.matmul %27, %14, %cst_19 {dimension_numbers = #tpu.dot_dimension_numbers<[1], [1], [0], [0], [0, 0, 1, 0], [], []>} : vector<8x128xf32>, vector<8x128xf32>, vector<8x8xf32> -> vector<8x8xf32>
    %43 = vector.broadcast %41 : f32 to vector<8x8xf32>
    %44 = arith.mulf %43, %42 : vector<8x8xf32>
    %cst_20 = arith.constant dense<0.000000e+00> : vector<8x8xf32>
    %45 = tpu.matmul %40, %27, %cst_20 {dimension_numbers = #tpu.dot_dimension_numbers<[1], [1], [0], [0], [0, 0, 1, 0], [], []>} : vector<8x128xf32>, vector<8x128xf32>, vector<8x8xf32> -> vector<8x8xf32>
    %46 = vector.broadcast %41 : f32 to vector<8x8xf32>
    %47 = arith.mulf %46, %45 : vector<8x8xf32>
    %cst_21 = arith.constant dense<0xFF800000> : vector<8xf32>
    %48 = vector.multi_reduction <maximumf>, %44, %cst_21 [1] : vector<8x8xf32> to vector<8xf32>
    %49 = vector.shape_cast %48 : vector<8xf32> to vector<8x1xf32>
    %50 = vector.broadcast %49 : vector<8x1xf32> to vector<8x8xf32>
    %51 = arith.subf %44, %50 : vector<8x8xf32>
    %52 = math.exp %51 : vector<8x8xf32>
    %cst_22 = arith.constant dense<0.000000e+00> : vector<8xf32>
    %53 = vector.multi_reduction <add>, %52, %cst_22 [1] : vector<8x8xf32> to vector<8xf32>
    %54 = vector.shape_cast %53 : vector<8xf32> to vector<8x1xf32>
    %55 = math.log %54 : vector<8x1xf32>
    %56 = arith.addf %49, %55 : vector<8x1xf32>
    %57 = tpu.iota {dimensions = array<i32: 0>} : vector<8x8xi32>
    %58 = tpu.iota {dimensions = array<i32: 1>} : vector<8x8xi32>
    %59 = arith.cmpi eq, %57, %58 : vector<8x8xi32>
    %cst_23 = arith.constant 0.000000e+00 : f32
    %60 = vector.broadcast %cst_23 : f32 to vector<8x8xf32>
    %61 = arith.select %59, %44, %60 : vector<8x8xi1>, vector<8x8xf32>
    %cst_24 = arith.constant dense<0.000000e+00> : vector<8xf32>
    %62 = vector.multi_reduction <add>, %61, %cst_24 [1] : vector<8x8xf32> to vector<8xf32>
    %63 = vector.shape_cast %62 : vector<8xf32> to vector<8x1xf32>
    %64 = arith.subf %56, %63 : vector<8x1xf32>
    %65 = vector.shape_cast %64 : vector<8x1xf32> to vector<1x8x1xf32>
    %cst_25 = arith.constant dense<0.000000e+00> : vector<1xf32>
    %66 = vector.multi_reduction <add>, %65, %cst_25 [1, 2] : vector<1x8x1xf32> to vector<1xf32>
    %67 = vector.shape_cast %66 : vector<1xf32> to vector<1x1x1xf32>
    %68 = vector.extract %67[0, 0, 0] : f32 from vector<1x1x1xf32>
    %cst_26 = arith.constant 8.000000e+00 : f32
    %69 = arith.divf %68, %cst_26 : f32
    %cst_27 = arith.constant dense<0xFF800000> : vector<8xf32>
    %70 = vector.multi_reduction <maximumf>, %44, %cst_27 [0] : vector<8x8xf32> to vector<8xf32>
    %71 = vector.shape_cast %70 : vector<8xf32> to vector<1x8xf32>
    %72 = vector.broadcast %71 : vector<1x8xf32> to vector<8x8xf32>
    %73 = arith.subf %44, %72 : vector<8x8xf32>
    %74 = math.exp %73 : vector<8x8xf32>
    %cst_28 = arith.constant dense<0.000000e+00> : vector<8xf32>
    %75 = vector.multi_reduction <add>, %74, %cst_28 [0] : vector<8x8xf32> to vector<8xf32>
    %76 = vector.shape_cast %75 : vector<8xf32> to vector<1x8xf32>
    %77 = math.log %76 : vector<1x8xf32>
    %78 = arith.addf %71, %77 : vector<1x8xf32>
    %79 = tpu.iota {dimensions = array<i32: 0>} : vector<8x8xi32>
    %80 = tpu.iota {dimensions = array<i32: 1>} : vector<8x8xi32>
    %81 = arith.cmpi eq, %79, %80 : vector<8x8xi32>
    %cst_29 = arith.constant 0.000000e+00 : f32
    %82 = vector.broadcast %cst_29 : f32 to vector<8x8xf32>
    %83 = arith.select %81, %44, %82 : vector<8x8xi1>, vector<8x8xf32>
    %cst_30 = arith.constant dense<0.000000e+00> : vector<8xf32>
    %84 = vector.multi_reduction <add>, %83, %cst_30 [0] : vector<8x8xf32> to vector<8xf32>
    %85 = vector.shape_cast %84 : vector<8xf32> to vector<1x8xf32>
    %86 = arith.subf %78, %85 : vector<1x8xf32>
    %87 = vector.shape_cast %86 : vector<1x8xf32> to vector<1x1x8xf32>
    %cst_31 = arith.constant dense<0.000000e+00> : vector<1xf32>
    %88 = vector.multi_reduction <add>, %87, %cst_31 [1, 2] : vector<1x1x8xf32> to vector<1xf32>
    %89 = vector.shape_cast %88 : vector<1xf32> to vector<1x1x1xf32>
    %90 = vector.extract %89[0, 0, 0] : f32 from vector<1x1x1xf32>
    %cst_32 = arith.constant 8.000000e+00 : f32
    %91 = arith.divf %90, %cst_32 : f32
    %92 = arith.addf %69, %91 : f32
    %cst_33 = arith.constant dense<0xFF800000> : vector<8xf32>
    %93 = vector.multi_reduction <maximumf>, %47, %cst_33 [1] : vector<8x8xf32> to vector<8xf32>
    %94 = vector.shape_cast %93 : vector<8xf32> to vector<8x1xf32>
    %95 = vector.broadcast %94 : vector<8x1xf32> to vector<8x8xf32>
    %96 = arith.subf %47, %95 : vector<8x8xf32>
    %97 = math.exp %96 : vector<8x8xf32>
    %cst_34 = arith.constant dense<0.000000e+00> : vector<8xf32>
    %98 = vector.multi_reduction <add>, %97, %cst_34 [1] : vector<8x8xf32> to vector<8xf32>
    %99 = vector.shape_cast %98 : vector<8xf32> to vector<8x1xf32>
    %100 = math.log %99 : vector<8x1xf32>
    %101 = arith.addf %94, %100 : vector<8x1xf32>
    %102 = tpu.iota {dimensions = array<i32: 0>} : vector<8x8xi32>
    %103 = tpu.iota {dimensions = array<i32: 1>} : vector<8x8xi32>
    %104 = arith.cmpi eq, %102, %103 : vector<8x8xi32>
    %cst_35 = arith.constant 0.000000e+00 : f32
    %105 = vector.broadcast %cst_35 : f32 to vector<8x8xf32>
    %106 = arith.select %104, %47, %105 : vector<8x8xi1>, vector<8x8xf32>
    %cst_36 = arith.constant dense<0.000000e+00> : vector<8xf32>
    %107 = vector.multi_reduction <add>, %106, %cst_36 [1] : vector<8x8xf32> to vector<8xf32>
    %108 = vector.shape_cast %107 : vector<8xf32> to vector<8x1xf32>
    %109 = arith.subf %101, %108 : vector<8x1xf32>
    %110 = vector.shape_cast %109 : vector<8x1xf32> to vector<1x8x1xf32>
    %cst_37 = arith.constant dense<0.000000e+00> : vector<1xf32>
    %111 = vector.multi_reduction <add>, %110, %cst_37 [1, 2] : vector<1x8x1xf32> to vector<1xf32>
    %112 = vector.shape_cast %111 : vector<1xf32> to vector<1x1x1xf32>
    %113 = vector.extract %112[0, 0, 0] : f32 from vector<1x1x1xf32>
    %cst_38 = arith.constant 8.000000e+00 : f32
    %114 = arith.divf %113, %cst_38 : f32
    %115 = arith.addf %92, %114 : f32
    %cst_39 = arith.constant 3.000000e+00 : f32
    %116 = arith.divf %115, %cst_39 : f32
    %117 = vector.broadcast %116 : f32 to vector<1x1xf32>
    %c0_40 = arith.constant 0 : index
    %c0_41 = arith.constant 0 : index
    %118 = vector.load %arg16[%c0_40, %c0_41] : memref<1x1xf32, #tpu.memory_space<vmem>>, vector<1x1xf32>
    tpu.vector_store %arg16[%c0_40, %c0_41], %117 {strides = array<i32>} : memref<1x1xf32, #tpu.memory_space<vmem>>, vector<1x1xf32>,
    %119 = tpu.concatenate %14, %27 in 1 : vector<8x128xf32>, vector<8x128xf32> -> vector<8x256xf32>
    %c0_i32_42 = arith.constant 0 : i32
    %120 = tpu.memref_slice %arg23[%c0_i32_42] : memref<4x!tpu.dma_semaphore, #tpu.memory_space<semaphore_mem>> -> memref<1x!tpu.dma_semaphore, #tpu.memory_space<semaphore_mem>>
    %121 = tpu.memref_squeeze %120 : memref<1x!tpu.dma_semaphore, #tpu.memory_space<semaphore_mem>> -> memref<!tpu.dma_semaphore, #tpu.memory_space<semaphore_mem>>
    tpu.wait_dma2 semaphore(%121 : memref<!tpu.dma_semaphore, #tpu.memory_space<semaphore_mem>>) src(%arg12 : memref<256x256xbf16, #tpu.memory_space<any>>) dst(%arg19 : memref<256x256xbf16, #tpu.memory_space<vmem>>)
    %c0_43 = arith.constant 0 : index
    %c0_44 = arith.constant 0 : index
    %122 = vector.load %arg19[%c0_43, %c0_44] : memref<256x256xbf16, #tpu.memory_space<vmem>>, vector<256x256xbf16>
    %c0_45 = arith.constant 0 : index
    %c0_46 = arith.constant 0 : index
    %123 = vector.load %arg8[%c0_45, %c0_46] : memref<1x256xf32, #tpu.memory_space<vmem>>, vector<1x256xf32>
    %124 = arith.truncf %119 : vector<8x256xf32> to vector<8x256xbf16>
    %cst_47 = arith.constant dense<0.000000e+00> : vector<8x256xf32>
    %125 = tpu.matmul %124, %122, %cst_47 {dimension_numbers = #tpu.dot_dimension_numbers<[1], [0], [0], [1], [0, 0, 1, 1], [], []>} : vector<8x256xbf16>, vector<256x256xbf16>, vector<8x256xf32> -> vector<8x256xf32>
    %126 = vector.broadcast %123 : vector<1x256xf32> to vector<8x256xf32>
    %127 = arith.addf %125, %126 : vector<8x256xf32>
    %128 = arith.addf %127, %119 : vector<8x256xf32>
    %c0_48 = arith.constant 0 : index
    %c0_49 = arith.constant 0 : index
    %129 = vector.load %arg17[%c0_48, %c0_49] : memref<8x256xf32, #tpu.memory_space<vmem>>, vector<8x256xf32>
    tpu.vector_store %arg17[%c0_48, %c0_49], %128 {strides = array<i32>} : memref<8x256xf32, #tpu.memory_space<vmem>>, vector<8x256xf32>,
    %c1_i32_50 = arith.constant 1 : i32
    %130 = tpu.memref_slice %arg23[%c1_i32_50] : memref<4x!tpu.dma_semaphore, #tpu.memory_space<semaphore_mem>> -> memref<1x!tpu.dma_semaphore, #tpu.memory_space<semaphore_mem>>
    %131 = tpu.memref_squeeze %130 : memref<1x!tpu.dma_semaphore, #tpu.memory_space<semaphore_mem>> -> memref<!tpu.dma_semaphore, #tpu.memory_space<semaphore_mem>>
    tpu.wait_dma2 semaphore(%131 : memref<!tpu.dma_semaphore, #tpu.memory_space<semaphore_mem>>) src(%arg13 : memref<256x1280xbf16, #tpu.memory_space<any>>) dst(%arg20 : memref<256x1280xbf16, #tpu.memory_space<vmem>>)
    %c0_51 = arith.constant 0 : index
    %c0_52 = arith.constant 0 : index
    %132 = vector.load %arg20[%c0_51, %c0_52] : memref<256x1280xbf16, #tpu.memory_space<vmem>>, vector<256x1280xbf16>
    %c0_53 = arith.constant 0 : index
    %c0_54 = arith.constant 0 : index
    %133 = vector.load %arg9[%c0_53, %c0_54] : memref<1x1280xf32, #tpu.memory_space<vmem>>, vector<1x1280xf32>
    %134 = arith.truncf %128 : vector<8x256xf32> to vector<8x256xbf16>
    %cst_55 = arith.constant dense<0.000000e+00> : vector<8x1280xf32>
    %135 = tpu.matmul %134, %132, %cst_55 {dimension_numbers = #tpu.dot_dimension_numbers<[1], [0], [0], [1], [0, 0, 1, 1], [], []>} : vector<8x256xbf16>, vector<256x1280xbf16>, vector<8x1280xf32> -> vector<8x1280xf32>
    %136 = vector.broadcast %133 : vector<1x1280xf32> to vector<8x1280xf32>
    %137 = arith.addf %135, %136 : vector<8x1280xf32>
    %cst_56 = arith.constant 0.000000e+00 : f32
    %138 = vector.broadcast %cst_56 : f32 to vector<8x1280xf32>
    %139 = arith.maximumf %137, %138 : vector<8x1280xf32>
    %c2_i32_57 = arith.constant 2 : i32
    %140 = tpu.memref_slice %arg23[%c2_i32_57] : memref<4x!tpu.dma_semaphore, #tpu.memory_space<semaphore_mem>> -> memref<1x!tpu.dma_semaphore, #tpu.memory_space<semaphore_mem>>
    %141 = tpu.memref_squeeze %140 : memref<1x!tpu.dma_semaphore, #tpu.memory_space<semaphore_mem>> -> memref<!tpu.dma_semaphore, #tpu.memory_space<semaphore_mem>>
    tpu.wait_dma2 semaphore(%141 : memref<!tpu.dma_semaphore, #tpu.memory_space<semaphore_mem>>) src(%arg14 : memref<5x256x128xbf16, #tpu.memory_space<any>>) dst(%arg21 : memref<5x256x128xbf16, #tpu.memory_space<vmem>>)
    %c3_i32_58 = arith.constant 3 : i32
    %142 = tpu.memref_slice %arg23[%c3_i32_58] : memref<4x!tpu.dma_semaphore, #tpu.memory_space<semaphore_mem>> -> memref<1x!tpu.dma_semaphore, #tpu.memory_space<semaphore_mem>>
    %143 = tpu.memref_squeeze %142 : memref<1x!tpu.dma_semaphore, #tpu.memory_space<semaphore_mem>> -> memref<!tpu.dma_semaphore, #tpu.memory_space<semaphore_mem>>
    tpu.wait_dma2 semaphore(%143 : memref<!tpu.dma_semaphore, #tpu.memory_space<semaphore_mem>>) src(%arg15 : memref<128x1152xbf16, #tpu.memory_space<any>>) dst(%arg22 : memref<128x1152xbf16, #tpu.memory_space<vmem>>)
    %144 = vector.extract_strided_slice %139 {offsets = [0, 0], sizes = [8, 256], strides = [1, 1]} : vector<8x1280xf32> to vector<8x256xf32>
    %145 = arith.truncf %144 : vector<8x256xf32> to vector<8x256xbf16>
    %c0_59 = arith.constant 0 : index
    %c0_60 = arith.constant 0 : index
    %c0_61 = arith.constant 0 : index
    %146 = vector.load %arg21[%c0_59, %c0_60, %c0_61] : memref<5x256x128xbf16, #tpu.memory_space<vmem>>, vector<1x256x128xbf16>
    %147 = vector.shape_cast %146 : vector<1x256x128xbf16> to vector<256x128xbf16>
    %cst_62 = arith.constant dense<0.000000e+00> : vector<8x128xf32>
    %148 = tpu.matmul %145, %147, %cst_62 {dimension_numbers = #tpu.dot_dimension_numbers<[1], [0], [0], [1], [0, 0, 1, 1], [], []>} : vector<8x256xbf16>, vector<256x128xbf16>, vector<8x128xf32> -> vector<8x128xf32>
    %c0_63 = arith.constant 0 : index
    %c0_64 = arith.constant 0 : index
    %149 = vector.load %arg10[%c0_63, %c0_64] : memref<1x640xf32, #tpu.memory_space<vmem>>, vector<1x128xf32>
    %150 = vector.broadcast %149 : vector<1x128xf32> to vector<8x128xf32>
    %151 = arith.addf %148, %150 : vector<8x128xf32>
    %cst_65 = arith.constant 0.000000e+00 : f32
    %152 = vector.broadcast %cst_65 : f32 to vector<8x128xf32>
    %153 = arith.maximumf %151, %152 : vector<8x128xf32>
    %154 = arith.truncf %153 : vector<8x128xf32> to vector<8x128xbf16>
    %c0_66 = arith.constant 0 : index
    %c0_67 = arith.constant 0 : index
    %155 = vector.load %arg22[%c0_66, %c0_67] : memref<128x1152xbf16, #tpu.memory_space<vmem>>, vector<128x128xbf16>
    %cst_68 = arith.constant dense<0.000000e+00> : vector<8x128xf32>
    %156 = tpu.matmul %154, %155, %cst_68 {dimension_numbers = #tpu.dot_dimension_numbers<[1], [0], [0], [1], [0, 0, 1, 1], [], []>} : vector<8x128xbf16>, vector<128x128xbf16>, vector<8x128xf32> -> vector<8x128xf32>
    %c0_69 = arith.constant 0 : index
    %c0_70 = arith.constant 0 : index
    %157 = vector.load %arg11[%c0_69, %c0_70] : memref<1x1152xf32, #tpu.memory_space<vmem>>, vector<1x128xf32>
    %158 = vector.broadcast %157 : vector<1x128xf32> to vector<8x128xf32>
    %159 = arith.addf %156, %158 : vector<8x128xf32>
    %c0_71 = arith.constant 0 : index
    %c0_72 = arith.constant 0 : index
    %160 = vector.load %arg18[%c0_71, %c0_72] : memref<8x1152xf32, #tpu.memory_space<vmem>>, vector<8x128xf32>
    tpu.vector_store %arg18[%c0_71, %c0_72], %159 {strides = array<i32>} : memref<8x1152xf32, #tpu.memory_space<vmem>>, vector<8x128xf32>,
    %161 = vector.extract_strided_slice %139 {offsets = [0, 256], sizes = [8, 256], strides = [1, 1]} : vector<8x1280xf32> to vector<8x256xf32>
    %162 = arith.truncf %161 : vector<8x256xf32> to vector<8x256xbf16>
    %c1 = arith.constant 1 : index
    %c0_73 = arith.constant 0 : index
    %c0_74 = arith.constant 0 : index
    %163 = vector.load %arg21[%c1, %c0_73, %c0_74] : memref<5x256x128xbf16, #tpu.memory_space<vmem>>, vector<1x256x128xbf16>
    %164 = vector.shape_cast %163 : vector<1x256x128xbf16> to vector<256x128xbf16>
    %cst_75 = arith.constant dense<0.000000e+00> : vector<8x128xf32>
    %165 = tpu.matmul %162, %164, %cst_75 {dimension_numbers = #tpu.dot_dimension_numbers<[1], [0], [0], [1], [0, 0, 1, 1], [], []>} : vector<8x256xbf16>, vector<256x128xbf16>, vector<8x128xf32> -> vector<8x128xf32>
    %c0_76 = arith.constant 0 : index
    %c128 = arith.constant 128 : index
    %166 = vector.load %arg10[%c0_76, %c128] : memref<1x640xf32, #tpu.memory_space<vmem>>, vector<1x128xf32>
    %167 = vector.broadcast %166 : vector<1x128xf32> to vector<8x128xf32>
    %168 = arith.addf %165, %167 : vector<8x128xf32>
    %cst_77 = arith.constant 0.000000e+00 : f32
    %169 = vector.broadcast %cst_77 : f32 to vector<8x128xf32>
    %170 = arith.maximumf %168, %169 : vector<8x128xf32>
    %171 = arith.truncf %170 : vector<8x128xf32> to vector<8x128xbf16>
    %c0_78 = arith.constant 0 : index
    %c128_79 = arith.constant 128 : index
    %172 = vector.load %arg22[%c0_78, %c128_79] : memref<128x1152xbf16, #tpu.memory_space<vmem>>, vector<128x128xbf16>
    %cst_80 = arith.constant dense<0.000000e+00> : vector<8x128xf32>
    %173 = tpu.matmul %171, %172, %cst_80 {dimension_numbers = #tpu.dot_dimension_numbers<[1], [0], [0], [1], [0, 0, 1, 1], [], []>} : vector<8x128xbf16>, vector<128x128xbf16>, vector<8x128xf32> -> vector<8x128xf32>
    %c0_81 = arith.constant 0 : index
    %c128_82 = arith.constant 128 : index
    %174 = vector.load %arg11[%c0_81, %c128_82] : memref<1x1152xf32, #tpu.memory_space<vmem>>, vector<1x128xf32>
    %175 = vector.broadcast %174 : vector<1x128xf32> to vector<8x128xf32>
    %176 = arith.addf %173, %175 : vector<8x128xf32>
    %c0_83 = arith.constant 0 : index
    %c128_84 = arith.constant 128 : index
    %177 = vector.load %arg18[%c0_83, %c128_84] : memref<8x1152xf32, #tpu.memory_space<vmem>>, vector<8x128xf32>
    tpu.vector_store %arg18[%c0_83, %c128_84], %176 {strides = array<i32>} : memref<8x1152xf32, #tpu.memory_space<vmem>>, vector<8x128xf32>,
    %178 = vector.extract_strided_slice %139 {offsets = [0, 512], sizes = [8, 256], strides = [1, 1]} : vector<8x1280xf32> to vector<8x256xf32>
    %179 = arith.truncf %178 : vector<8x256xf32> to vector<8x256xbf16>
    %c2 = arith.constant 2 : index
    %c0_85 = arith.constant 0 : index
    %c0_86 = arith.constant 0 : index
    %180 = vector.load %arg21[%c2, %c0_85, %c0_86] : memref<5x256x128xbf16, #tpu.memory_space<vmem>>, vector<1x256x128xbf16>
    %181 = vector.shape_cast %180 : vector<1x256x128xbf16> to vector<256x128xbf16>
    %cst_87 = arith.constant dense<0.000000e+00> : vector<8x128xf32>
    %182 = tpu.matmul %179, %181, %cst_87 {dimension_numbers = #tpu.dot_dimension_numbers<[1], [0], [0], [1], [0, 0, 1, 1], [], []>} : vector<8x256xbf16>, vector<256x128xbf16>, vector<8x128xf32> -> vector<8x128xf32>
    %c0_88 = arith.constant 0 : index
    %c256 = arith.constant 256 : index
    %183 = vector.load %arg10[%c0_88, %c256] : memref<1x640xf32, #tpu.memory_space<vmem>>, vector<1x128xf32>
    %184 = vector.broadcast %183 : vector<1x128xf32> to vector<8x128xf32>
    %185 = arith.addf %182, %184 : vector<8x128xf32>
    %cst_89 = arith.constant 0.000000e+00 : f32
    %186 = vector.broadcast %cst_89 : f32 to vector<8x128xf32>
    %187 = arith.maximumf %185, %186 : vector<8x128xf32>
    %188 = arith.truncf %187 : vector<8x128xf32> to vector<8x128xbf16>
    %c0_90 = arith.constant 0 : index
    %c256_91 = arith.constant 256 : index
    %189 = vector.load %arg22[%c0_90, %c256_91] : memref<128x1152xbf16, #tpu.memory_space<vmem>>, vector<128x128xbf16>
    %cst_92 = arith.constant dense<0.000000e+00> : vector<8x128xf32>
    %190 = tpu.matmul %188, %189, %cst_92 {dimension_numbers = #tpu.dot_dimension_numbers<[1], [0], [0], [1], [0, 0, 1, 1], [], []>} : vector<8x128xbf16>, vector<128x128xbf16>, vector<8x128xf32> -> vector<8x128xf32>
    %c0_93 = arith.constant 0 : index
    %c256_94 = arith.constant 256 : index
    %191 = vector.load %arg11[%c0_93, %c256_94] : memref<1x1152xf32, #tpu.memory_space<vmem>>, vector<1x128xf32>
    %192 = vector.broadcast %191 : vector<1x128xf32> to vector<8x128xf32>
    %193 = arith.addf %190, %192 : vector<8x128xf32>
    %c0_95 = arith.constant 0 : index
    %c256_96 = arith.constant 256 : index
    %194 = vector.load %arg18[%c0_95, %c256_96] : memref<8x1152xf32, #tpu.memory_space<vmem>>, vector<8x128xf32>
    tpu.vector_store %arg18[%c0_95, %c256_96], %193 {strides = array<i32>} : memref<8x1152xf32, #tpu.memory_space<vmem>>, vector<8x128xf32>,
    %195 = vector.extract_strided_slice %139 {offsets = [0, 768], sizes = [8, 256], strides = [1, 1]} : vector<8x1280xf32> to vector<8x256xf32>
    %196 = arith.truncf %195 : vector<8x256xf32> to vector<8x256xbf16>
    %c3 = arith.constant 3 : index
    %c0_97 = arith.constant 0 : index
    %c0_98 = arith.constant 0 : index
    %197 = vector.load %arg21[%c3, %c0_97, %c0_98] : memref<5x256x128xbf16, #tpu.memory_space<vmem>>, vector<1x256x128xbf16>
    %198 = vector.shape_cast %197 : vector<1x256x128xbf16> to vector<256x128xbf16>
    %cst_99 = arith.constant dense<0.000000e+00> : vector<8x128xf32>
    %199 = tpu.matmul %196, %198, %cst_99 {dimension_numbers = #tpu.dot_dimension_numbers<[1], [0], [0], [1], [0, 0, 1, 1], [], []>} : vector<8x256xbf16>, vector<256x128xbf16>, vector<8x128xf32> -> vector<8x128xf32>
    %c0_100 = arith.constant 0 : index
    %c384 = arith.constant 384 : index
    %200 = vector.load %arg10[%c0_100, %c384] : memref<1x640xf32, #tpu.memory_space<vmem>>, vector<1x128xf32>
    %201 = vector.broadcast %200 : vector<1x128xf32> to vector<8x128xf32>
    %202 = arith.addf %199, %201 : vector<8x128xf32>
    %cst_101 = arith.constant 0.000000e+00 : f32
    %203 = vector.broadcast %cst_101 : f32 to vector<8x128xf32>
    %204 = arith.maximumf %202, %203 : vector<8x128xf32>
    %205 = arith.truncf %204 : vector<8x128xf32> to vector<8x128xbf16>
    %c0_102 = arith.constant 0 : index
    %c384_103 = arith.constant 384 : index
    %206 = vector.load %arg22[%c0_102, %c384_103] : memref<128x1152xbf16, #tpu.memory_space<vmem>>, vector<128x128xbf16>
    %cst_104 = arith.constant dense<0.000000e+00> : vector<8x128xf32>
    %207 = tpu.matmul %205, %206, %cst_104 {dimension_numbers = #tpu.dot_dimension_numbers<[1], [0], [0], [1], [0, 0, 1, 1], [], []>} : vector<8x128xbf16>, vector<128x128xbf16>, vector<8x128xf32> -> vector<8x128xf32>
    %c0_105 = arith.constant 0 : index
    %c384_106 = arith.constant 384 : index
    %208 = vector.load %arg11[%c0_105, %c384_106] : memref<1x1152xf32, #tpu.memory_space<vmem>>, vector<1x128xf32>
    %209 = vector.broadcast %208 : vector<1x128xf32> to vector<8x128xf32>
    %210 = arith.addf %207, %209 : vector<8x128xf32>
    %c0_107 = arith.constant 0 : index
    %c384_108 = arith.constant 384 : index
    %211 = vector.load %arg18[%c0_107, %c384_108] : memref<8x1152xf32, #tpu.memory_space<vmem>>, vector<8x128xf32>
    tpu.vector_store %arg18[%c0_107, %c384_108], %210 {strides = array<i32>} : memref<8x1152xf32, #tpu.memory_space<vmem>>, vector<8x128xf32>,
    %212 = vector.extract_strided_slice %139 {offsets = [0, 1024], sizes = [8, 256], strides = [1, 1]} : vector<8x1280xf32> to vector<8x256xf32>
    %213 = arith.truncf %212 : vector<8x256xf32> to vector<8x256xbf16>
    %c4 = arith.constant 4 : index
    %c0_109 = arith.constant 0 : index
    %c0_110 = arith.constant 0 : index
    %214 = vector.load %arg21[%c4, %c0_109, %c0_110] : memref<5x256x128xbf16, #tpu.memory_space<vmem>>, vector<1x256x128xbf16>
    %215 = vector.shape_cast %214 : vector<1x256x128xbf16> to vector<256x128xbf16>
    %cst_111 = arith.constant dense<0.000000e+00> : vector<8x128xf32>
    %216 = tpu.matmul %213, %215, %cst_111 {dimension_numbers = #tpu.dot_dimension_numbers<[1], [0], [0], [1], [0, 0, 1, 1], [], []>} : vector<8x256xbf16>, vector<256x128xbf16>, vector<8x128xf32> -> vector<8x128xf32>
    %c0_112 = arith.constant 0 : index
    %c512 = arith.constant 512 : index
    %217 = vector.load %arg10[%c0_112, %c512] : memref<1x640xf32, #tpu.memory_space<vmem>>, vector<1x128xf32>
    %218 = vector.broadcast %217 : vector<1x128xf32> to vector<8x128xf32>
    %219 = arith.addf %216, %218 : vector<8x128xf32>
    %cst_113 = arith.constant 0.000000e+00 : f32
    %220 = vector.broadcast %cst_113 : f32 to vector<8x128xf32>
    %221 = arith.maximumf %219, %220 : vector<8x128xf32>
    %222 = arith.truncf %221 : vector<8x128xf32> to vector<8x128xbf16>
    %c0_114 = arith.constant 0 : index
    %c512_115 = arith.constant 512 : index
    %223 = vector.load %arg22[%c0_114, %c512_115] : memref<128x1152xbf16, #tpu.memory_space<vmem>>, vector<128x640xbf16>
    %cst_116 = arith.constant dense<0.000000e+00> : vector<8x640xf32>
    %224 = tpu.matmul %222, %223, %cst_116 {dimension_numbers = #tpu.dot_dimension_numbers<[1], [0], [0], [1], [0, 0, 1, 1], [], []>} : vector<8x128xbf16>, vector<128x640xbf16>, vector<8x640xf32> -> vector<8x640xf32>
    %c0_117 = arith.constant 0 : index
    %c512_118 = arith.constant 512 : index
    %225 = vector.load %arg11[%c0_117, %c512_118] : memref<1x1152xf32, #tpu.memory_space<vmem>>, vector<1x640xf32>
    %226 = vector.broadcast %225 : vector<1x640xf32> to vector<8x640xf32>
    %227 = arith.addf %224, %226 : vector<8x640xf32>
    %c0_119 = arith.constant 0 : index
    %c512_120 = arith.constant 512 : index
    %228 = vector.load %arg18[%c0_119, %c512_120] : memref<8x1152xf32, #tpu.memory_space<vmem>>, vector<8x640xf32>
    tpu.vector_store %arg18[%c0_119, %c512_120], %227 {strides = array<i32>} : memref<8x1152xf32, #tpu.memory_space<vmem>>, vector<8x640xf32>,
    return
  }
}

</mosaic_0001>

<llo_original>
// kernel: simple_clip_forward.1
$region0: #{simple_clip_forward.1}
  #allocation0 [shape = 'u32[]', space=smem, size = 0x4, offset = 0x4, fixed_abs, tag = 'smem constant byte address 0x4 - core index']
  #allocation1 [shape = 'u32[144,128]{1,0:T(1,128)}', space=vmem, size = 0x12000, scoped, tag = 'internal scratch']
  #allocation2 [shape = 'bf16[256,256]{1,0:T(8,128)(2,1)}', space=vmem, size = 0x20000, scoped, tag = 'scratch operand']
  #allocation3 [shape = 'bf16[256,1280]{1,0:T(8,128)(2,1)}', space=vmem, size = 0xa0000, scoped, tag = 'scratch operand']
  #allocation4 [shape = 'bf16[5,256,128]{2,1,0:T(8,128)(2,1)}', space=vmem, size = 0x50000, scoped, tag = 'scratch operand']
  #allocation5 [shape = 'bf16[128,1152]{1,0:T(8,128)(2,1)}', space=vmem, size = 0x48000, scoped, tag = 'scratch operand']
  #allocation6 [shape = 's32[4]{0}', space=sflag, size = 0x10, scoped, tag = 'scratch operand']
  #allocation7 [shape = 'f32[1,1]{1,0:T(1,128)S(6)}', space=smem, size = 0x200, scoped, tag = 'scoped memory for simple_clip_forward.1']
  #allocation25 [shape = 's32[]', space=sflag, size = 0x4, offset = 0, fixed_abs, tag = 'sflag constant byte address 0x0 - dummy sync flag']
  #allocation26 [shape = 's32[]', space=sflag, size = 0x4, offset = 0, fixed_abs, tag = 'sflag constant byte address 0x0 - dummy sync flag']
  #allocation27 [shape = 'u32[]', space=smem, size = 0x4, offset = 0x44, fixed_abs, tag = 'smem constant byte address 0x44 - assertion arg 0']
  #allocation28 [shape = 'u32[]', space=smem, size = 0x4, offset = 0x48, fixed_abs, tag = 'smem constant byte address 0x48 - assertion arg 1']
  #allocation29 [shape = 's32[]', space=sflag, size = 0x4, offset = 0, fixed_abs, tag = 'sflag constant byte address 0x0 - dummy sync flag']
  #allocation30 [shape = 's32[]', space=sflag, size = 0x4, offset = 0, fixed_abs, tag = 'sflag constant byte address 0x0 - dummy sync flag']
  #allocation31 [shape = 's32[]', space=sflag, size = 0x4, offset = 0, fixed_abs, tag = 'sflag constant byte address 0x0 - dummy sync flag']
  #allocation32 [shape = 's32[]', space=sflag, size = 0x4, offset = 0, fixed_abs, tag = 'sflag constant byte address 0x0 - dummy sync flag']
  #allocation33 [shape = 's32[]', space=sflag, size = 0x4, offset = 0, fixed_abs, tag = 'sflag constant byte address 0x0 - dummy sync flag']
  #allocation34 [shape = 's32[]', space=sflag, size = 0x4, offset = 0, fixed_abs, tag = 'sflag constant byte address 0x0 - dummy sync flag']
  %s0 = inlined_call_operand.<no memory space> [shape: f32[1,1], index: 0, kind: input, shape index: {}]
  %s1 = inlined_call_operand.hbm [shape: f32[8,128], index: 1, kind: input, shape index: {}]
  %s2 = inlined_call_operand.hbm [shape: f32[8,512], index: 2, kind: input, shape index: {}]
  %s3 = inlined_call_operand.hbm [shape: f32[8,48], index: 3, kind: input, shape index: {}]
  %s4 = inlined_call_operand.hbm [shape: bf16[512,128], index: 4, kind: input, shape index: {}]
  %s5 = inlined_call_operand.vmem [shape: f32[1,128], index: 5, kind: input, shape index: {}]
  %s6 = inlined_call_operand.hbm [shape: bf16[48,128], index: 6, kind: input, shape index: {}]
  %s7 = inlined_call_operand.hbm [shape: f32[1,128], index: 7, kind: input, shape index: {}]
  %s8 = inlined_call_operand.hbm [shape: f32[1,256], index: 8, kind: input, shape index: {}]
  %s9 = inlined_call_operand.vmem [shape: f32[1,1280], index: 9, kind: input, shape index: {}]
  %s10 = inlined_call_operand.hbm [shape: f32[1,640], index: 10, kind: input, shape index: {}]
  %s11 = inlined_call_operand.vmem [shape: f32[1,1152], index: 11, kind: input, shape index: {}]
  %s12 = inlined_call_operand.hbm [shape: bf16[256,256], index: 12, kind: input, shape index: {}]
  %s13 = inlined_call_operand.hbm [shape: bf16[256,1280], index: 13, kind: input, shape index: {}]
  %s14 = inlined_call_operand.hbm [shape: bf16[5,256,128], index: 14, kind: input, shape index: {}]
  %s15 = inlined_call_operand.hbm [shape: bf16[128,1152], index: 15, kind: input, shape index: {}]
  %s16 = inlined_call_operand.hbm [shape: f32[1,1], index: 16, kind: output, shape index: {0}]
  %s17 = inlined_call_operand.hbm [shape: f32[8,256], index: 17, kind: output, shape index: {1}]
  %s18 = inlined_call_operand.vmem [shape: f32[8,1152], index: 18, kind: output, shape index: {2}]
  %19 = xla_tuple %s16, %s17, %s18
  %s20 = sld [smem:[#allocation0]]
  $region122: #{simple_clip_forward.1} parent=0
    _
  %s22 = ssub.s32 1, %s20
  %s23 = scalar_select 0, %s22, %s20
  %24 = sst [smem:[#allocation7]] %s0
  $region1: #{simple_clip_forward.1} parent=0
    #allocation8 [shape = 'u8[4096]{0}', space=vmem, size = 0x1000, scoped, tag = 'input window, operand 1, single buffered']
    #allocation9 [shape = 's32[1]{0}', space=sflag, size = 0x4, scoped, tag = 'scoped memory for simple_clip_forward.1']
    #allocation10 [shape = 's32[1]{0}', space=sflag, size = 0x4, scoped, tag = 'scoped memory for simple_clip_forward.1']
    #allocation11 [shape = 'u8[16384]{0}', space=vmem, size = 0x4000, scoped, tag = 'input window, operand 2, single buffered']
    #allocation12 [shape = 's32[1]{0}', space=sflag, size = 0x4, scoped, tag = 'scoped memory for simple_clip_forward.1']
    #allocation13 [shape = 'u8[4096]{0}', space=vmem, size = 0x1000, scoped, tag = 'input window, operand 3, single buffered']
    #allocation14 [shape = 'u8[131072]{0}', space=vmem, size = 0x20000, scoped, tag = 'input window, operand 4, single buffered']
    #allocation15 [shape = 's32[1]{0}', space=sflag, size = 0x4, scoped, tag = 'scoped memory for simple_clip_forward.1']
    #allocation16 [shape = 'u8[12288]{0}', space=vmem, size = 0x3000, scoped, tag = 'input window, operand 6, single buffered']
    #allocation17 [shape = 'u8[512]{0}', space=vmem, size = 0x400, scoped, tag = 'input window, operand 7, single buffered']
    #allocation18 [shape = 's32[1]{0}', space=sflag, size = 0x4, scoped, tag = 'scoped memory for simple_clip_forward.1']
    #allocation19 [shape = 'u8[1024]{0}', space=vmem, size = 0x400, scoped, tag = 'input window, operand 8, single buffered']
    #allocation20 [shape = 'u8[2560]{0}', space=vmem, size = 0xc00, scoped, tag = 'input window, operand 10, single buffered']
    #allocation21 [shape = 's32[1]{0}', space=sflag, size = 0x4, scoped, tag = 'scoped memory for simple_clip_forward.1']
    #allocation22 [shape = 'u8[512]{0}', space=vmem, size = 0x400, scoped, tag = 'output window, operand 0, single buffered']
    #allocation23 [shape = 'u8[8192]{0}', space=vmem, size = 0x2000, scoped, tag = 'output window, operand 1, single buffered']
    #allocation24 [shape = 's32[1]{0}', space=sflag, size = 0x4, scoped, tag = 'scoped memory for simple_clip_forward.1']
    %25 = vsyncpa [#allocation9], 0
    %26 = vsyncpa [#allocation12], 0
    %27 = vsyncpa [#allocation15], 0
    %28 = vsyncpa [#allocation18], 0
    %29 = vsyncpa [#allocation21], 0
    %30 = vsyncpa [#allocation10], 0
    %31 = vsyncpa [#allocation24], 0
    // Predicated region
    $region2: #{simple_clip_forward.1} parent=1 // pred_check
      _
    $region3: #{simple_clip_forward.1} parent=1 // pred_check_branch
      %33 = sbr.rel (0) target = $region5
    $region4: #{simple_clip_forward.1} parent=1 // pred_region
      _
    $region5: #{simple_clip_forward.1} parent=1 // pred_fallthru
      _
    // Predicated region
    $region6: #{simple_clip_forward.1} parent=1 // pred_check
      _
    $region7: #{simple_clip_forward.1} parent=1 // pred_check_branch
      %35 = sbr.rel (0) target = $region9
    $region8: #{simple_clip_forward.1} parent=1 // pred_region
      %s37 = ssub.s32 128, 128
      %38 = vsyncadd [#allocation9], %s37
      %s40 = sshll.u32 [#allocation8], 4
      %s41 = int_to_ptr.vmem [resolvable:$true] %s40
      %43 = dma.hbm_to_vmem [thread:$0]  %s1, 128, %s41, [#allocation9]
    $region9: #{simple_clip_forward.1} parent=1 // pred_fallthru
      _
    // Predicated region
    $region10: #{simple_clip_forward.1} parent=1 // pred_check
      _
    $region11: #{simple_clip_forward.1} parent=1 // pred_check_branch
      %45 = sbr.rel (0) target = $region13
    $region12: #{simple_clip_forward.1} parent=1 // pred_region
      %s47 = ssub.s32 512, 512
      %48 = vsyncadd [#allocation12], %s47
      %s50 = sshll.u32 [#allocation11], 4
      %s51 = int_to_ptr.vmem [resolvable:$true] %s50
      %53 = dma.hbm_to_vmem [thread:$0]  %s2, 512, %s51, [#allocation12]
    $region13: #{simple_clip_forward.1} parent=1 // pred_fallthru
      _
    // Predicated region
    $region14: #{simple_clip_forward.1} parent=1 // pred_check
      _
    $region15: #{simple_clip_forward.1} parent=1 // pred_check_branch
      %55 = sbr.rel (0) target = $region17
    $region16: #{simple_clip_forward.1} parent=1 // pred_region
      %s57 = ssub.s32 128, 128
      %58 = vsyncadd [#allocation12], %s57
      %s60 = sshll.u32 [#allocation13], 4
      %s61 = int_to_ptr.vmem [resolvable:$true] %s60
      %63 = dma.hbm_to_vmem [thread:$0]  %s3, 128, %s61, [#allocation12]
    $region17: #{simple_clip_forward.1} parent=1 // pred_fallthru
      _
    // Predicated region
    $region18: #{simple_clip_forward.1} parent=1 // pred_check
      _
    $region19: #{simple_clip_forward.1} parent=1 // pred_check_branch
      %65 = sbr.rel (0) target = $region21
    $region20: #{simple_clip_forward.1} parent=1 // pred_region
      %s67 = ssub.s32 4096, 4096
      %68 = vsyncadd [#allocation15], %s67
      %s69 = sshll.u32 [#allocation14], 4
      %s70 = int_to_ptr.vmem [resolvable:$true] %s69
      %75 = dma.hbm_to_vmem [thread:$0]  %s4, 4096, %s70, [#allocation15], 64, 64, 4
    $region21: #{simple_clip_forward.1} parent=1 // pred_fallthru
      _
    // Predicated region
    $region22: #{simple_clip_forward.1} parent=1 // pred_check
      _
    $region23: #{simple_clip_forward.1} parent=1 // pred_check_branch
      %77 = sbr.rel (0) target = $region25
    $region24: #{simple_clip_forward.1} parent=1 // pred_region
      _
    $region25: #{simple_clip_forward.1} parent=1 // pred_fallthru
      _
    // Predicated region
    $region26: #{simple_clip_forward.1} parent=1 // pred_check
      _
    $region27: #{simple_clip_forward.1} parent=1 // pred_check_branch
      %79 = sbr.rel (0) target = $region29
    $region28: #{simple_clip_forward.1} parent=1 // pred_region
      %s81 = ssub.s32 384, 384
      %82 = vsyncadd [#allocation15], %s81
      %s83 = sshll.u32 [#allocation16], 4
      %s84 = int_to_ptr.vmem [resolvable:$true] %s83
      %89 = dma.hbm_to_vmem [thread:$0]  %s6, 384, %s84, [#allocation15], 64, 64, 4
    $region29: #{simple_clip_forward.1} parent=1 // pred_fallthru
      _
    // Predicated region
    $region30: #{simple_clip_forward.1} parent=1 // pred_check
      _
    $region31: #{simple_clip_forward.1} parent=1 // pred_check_branch
      %91 = sbr.rel (0) target = $region33
    $region32: #{simple_clip_forward.1} parent=1 // pred_region
      %s93 = ssub.s32 16, 16
      %94 = vsyncadd [#allocation18], %s93
      %s96 = sshll.u32 [#allocation17], 4
      %s97 = int_to_ptr.vmem [resolvable:$true] %s96
      %99 = dma.hbm_to_vmem [thread:$0]  %s7, 16, %s97, [#allocation18]
    $region33: #{simple_clip_forward.1} parent=1 // pred_fallthru
      _
    // Predicated region
    $region34: #{simple_clip_forward.1} parent=1 // pred_check
      _
    $region35: #{simple_clip_forward.1} parent=1 // pred_check_branch
      %101 = sbr.rel (0) target = $region37
    $region36: #{simple_clip_forward.1} parent=1 // pred_region
      %s103 = ssub.s32 32, 32
      %104 = vsyncadd [#allocation18], %s103
      %s106 = sshll.u32 [#allocation19], 4
      %s107 = int_to_ptr.vmem [resolvable:$true] %s106
      %109 = dma.hbm_to_vmem [thread:$0]  %s8, 32, %s107, [#allocation18]
    $region37: #{simple_clip_forward.1} parent=1 // pred_fallthru
      _
    // Predicated region
    $region38: #{simple_clip_forward.1} parent=1 // pred_check
      _
    $region39: #{simple_clip_forward.1} parent=1 // pred_check_branch
      %111 = sbr.rel (0) target = $region41
    $region40: #{simple_clip_forward.1} parent=1 // pred_region
      _
    $region41: #{simple_clip_forward.1} parent=1 // pred_fallthru
      _
    // Predicated region
    $region42: #{simple_clip_forward.1} parent=1 // pred_check
      _
    $region43: #{simple_clip_forward.1} parent=1 // pred_check_branch
      %113 = sbr.rel (0) target = $region45
    $region44: #{simple_clip_forward.1} parent=1 // pred_region
      %s115 = ssub.s32 80, 80
      %116 = vsyncadd [#allocation21], %s115
      %s118 = sshll.u32 [#allocation20], 4
      %s119 = int_to_ptr.vmem [resolvable:$true] %s118
      %121 = dma.hbm_to_vmem [thread:$0]  %s10, 80, %s119, [#allocation21]
    $region45: #{simple_clip_forward.1} parent=1 // pred_fallthru
      _
    // Predicated region
    $region46: #{simple_clip_forward.1} parent=1 // pred_check
      _
    $region47: #{simple_clip_forward.1} parent=1 // pred_check_branch
      %123 = sbr.rel (0) target = $region49
    $region48: #{simple_clip_forward.1} parent=1 // pred_region
      _
    $region49: #{simple_clip_forward.1} parent=1 // pred_fallthru
      _
    // Predicated region
    $region50: #{simple_clip_forward.1} parent=1 // pred_check
      _
    $region51: #{simple_clip_forward.1} parent=1 // pred_check_branch
      %125 = sbr.rel (0) target = $region53
    $region52: #{simple_clip_forward.1} parent=1 // pred_region
      %126 = dma.done [#allocation9], 128
    $region53: #{simple_clip_forward.1} parent=1 // pred_fallthru
      _
    // Predicated region
    $region54: #{simple_clip_forward.1} parent=1 // pred_check
      _
    $region55: #{simple_clip_forward.1} parent=1 // pred_check_branch
      %128 = sbr.rel (0) target = $region57
    $region56: #{simple_clip_forward.1} parent=1 // pred_region
      %129 = dma.done [#allocation12], 512
    $region57: #{simple_clip_forward.1} parent=1 // pred_fallthru
      _
    // Predicated region
    $region58: #{simple_clip_forward.1} parent=1 // pred_check
      _
    $region59: #{simple_clip_forward.1} parent=1 // pred_check_branch
      %131 = sbr.rel (0) target = $region61
    $region60: #{simple_clip_forward.1} parent=1 // pred_region
      %132 = dma.done [#allocation12], 128
    $region61: #{simple_clip_forward.1} parent=1 // pred_fallthru
      _
    // Predicated region
    $region62: #{simple_clip_forward.1} parent=1 // pred_check
      _
    $region63: #{simple_clip_forward.1} parent=1 // pred_check_branch
      %134 = sbr.rel (0) target = $region65
    $region64: #{simple_clip_forward.1} parent=1 // pred_region
      %135 = dma.done [#allocation15], 4096
    $region65: #{simple_clip_forward.1} parent=1 // pred_fallthru
      _
    // Predicated region
    $region66: #{simple_clip_forward.1} parent=1 // pred_check
      _
    $region67: #{simple_clip_forward.1} parent=1 // pred_check_branch
      %137 = sbr.rel (0) target = $region69
    $region68: #{simple_clip_forward.1} parent=1 // pred_region
      %138 = dma.done [#allocation15], 384
    $region69: #{simple_clip_forward.1} parent=1 // pred_fallthru
      _
    // Predicated region
    $region70: #{simple_clip_forward.1} parent=1 // pred_check
      _
    $region71: #{simple_clip_forward.1} parent=1 // pred_check_branch
      %140 = sbr.rel (0) target = $region73
    $region72: #{simple_clip_forward.1} parent=1 // pred_region
      %141 = dma.done [#allocation18], 16
    $region73: #{simple_clip_forward.1} parent=1 // pred_fallthru
      _
    // Predicated region
    $region74: #{simple_clip_forward.1} parent=1 // pred_check
      _
    $region75: #{simple_clip_forward.1} parent=1 // pred_check_branch
      %143 = sbr.rel (0) target = $region77
    $region76: #{simple_clip_forward.1} parent=1 // pred_region
      %144 = dma.done [#allocation18], 32
    $region77: #{simple_clip_forward.1} parent=1 // pred_fallthru
      _
    // Predicated region
    $region78: #{simple_clip_forward.1} parent=1 // pred_check
      _
    $region79: #{simple_clip_forward.1} parent=1 // pred_check_branch
      %146 = sbr.rel (0) target = $region81
    $region80: #{simple_clip_forward.1} parent=1 // pred_region
      %147 = dma.done [#allocation21], 80
    $region81: #{simple_clip_forward.1} parent=1 // pred_fallthru
      _
    // Predicated region
    $region82: #{simple_clip_forward.1} parent=1 // pred_check
      _
    $region83: #{simple_clip_forward.1} parent=1 // pred_check_branch
      %150 = sbr.rel target = $region85
    $region84: #{simple_clip_forward.1} parent=1 // pred_region
      %151 = sst [smem:[#allocation27]] [#allocation26]
      %152 = sst [smem:[#allocation28]] [#allocation25]
    $region85: #{simple_clip_forward.1} parent=1 // pred_fallthru
      _
    %154 = shalt.err (0)
    %s156 = sshll.u32 [#allocation2], 4
    %s157 = int_to_ptr.vmem [resolvable:$true] %s156
    %159 = dma.hbm_to_vmem [thread:$0]  %s12, 4096, %s157, [#allocation6]
    %s160 = scalar_lea.sflag [#allocation6], 1
    // Predicated region
    $region86: #{simple_clip_forward.1} parent=1 // pred_check
      _
    $region87: #{simple_clip_forward.1} parent=1 // pred_check_branch
      %162 = sbr.rel target = $region89
    $region88: #{simple_clip_forward.1} parent=1 // pred_region
      %163 = sst [smem:[#allocation27]] [#allocation30]
      %164 = sst [smem:[#allocation28]] [#allocation29]
    $region89: #{simple_clip_forward.1} parent=1 // pred_fallthru
      _
    %166 = shalt.err (0)
    %s168 = sshll.u32 [#allocation3], 4
    %s169 = int_to_ptr.vmem [resolvable:$true] %s168
    %171 = dma.hbm_to_vmem [thread:$0]  %s13, 20480, %s169, %s160
    %s172 = scalar_lea.sflag [#allocation6], 2
    // Predicated region
    $region90: #{simple_clip_forward.1} parent=1 // pred_check
      _
    $region91: #{simple_clip_forward.1} parent=1 // pred_check_branch
      %174 = sbr.rel target = $region93
    $region92: #{simple_clip_forward.1} parent=1 // pred_region
      %175 = sst [smem:[#allocation27]] [#allocation32]
      %176 = sst [smem:[#allocation28]] [#allocation31]
    $region93: #{simple_clip_forward.1} parent=1 // pred_fallthru
      _
    %178 = shalt.err (0)
    %s180 = sshll.u32 [#allocation4], 4
    %s181 = int_to_ptr.vmem [resolvable:$true] %s180
    %183 = dma.hbm_to_vmem [thread:$0]  %s14, 10240, %s181, %s172
    %s184 = scalar_lea.sflag [#allocation6], 3
    // Predicated region
    $region94: #{simple_clip_forward.1} parent=1 // pred_check
      _
    $region95: #{simple_clip_forward.1} parent=1 // pred_check_branch
      %186 = sbr.rel target = $region97
    $region96: #{simple_clip_forward.1} parent=1 // pred_region
      %187 = sst [smem:[#allocation27]] [#allocation34]
      %188 = sst [smem:[#allocation28]] [#allocation33]
    $region97: #{simple_clip_forward.1} parent=1 // pred_fallthru
      _
    %190 = shalt.err (0)
    %s192 = sshll.u32 [#allocation5], 4
    %s193 = int_to_ptr.vmem [resolvable:$true] %s192
    %195 = dma.hbm_to_vmem [thread:$0]  %s15, 9216, %s193, %s184
    %v196 = vld [vmem:[#allocation8] sm:$0xff]
    %v197 = vmul.f32 %v196, %v196
    %198 = vadd.xlane.f32.xlu0 %v197
    %v199 = vpop.xlane.xlu0 %198
    %v200 = vrsqrt.pop %v199
    %v201 = vmul.f32 %v196, %v200
    %v202 = vld [vmem:[#allocation11] sm:$0xff]
    %v203 = vld [vmem:[#allocation11 + $0x8] sm:$0xff]
    %v204 = vld [vmem:[#allocation11 + $0x10] sm:$0xff]
    %v205 = vld [vmem:[#allocation11 + $0x18] sm:$0xff]
    %v206 = vld [vmem:[#allocation14] sm:$0xf]
    %v207 = vld [vmem:[#allocation14 + $0x4] sm:$0xf]
    %v208 = vld [vmem:[#allocation14 + $0x8] sm:$0xf]
    %v209 = vld [vmem:[#allocation14 + $0xc] sm:$0xf]
    %v210 = vld [vmem:[#allocation14 + $0x10] sm:$0xf]
    %v211 = vld [vmem:[#allocation14 + $0x14] sm:$0xf]
    %v212 = vld [vmem:[#allocation14 + $0x18] sm:$0xf]
    %v213 = vld [vmem:[#allocation14 + $0x1c] sm:$0xf]
    %v214 = vld [vmem:[#allocation14 + $0x20] sm:$0xf]
    %v215 = vld [vmem:[#allocation14 + $0x24] sm:$0xf]
    %v216 = vld [vmem:[#allocation14 + $0x28] sm:$0xf]
    %v217 = vld [vmem:[#allocation14 + $0x2c] sm:$0xf]
    %v218 = vld [vmem:[#allocation14 + $0x30] sm:$0xf]
    %v219 = vld [vmem:[#allocation14 + $0x34] sm:$0xf]
    %v220 = vld [vmem:[#allocation14 + $0x38] sm:$0xf]
    %v221 = vld [vmem:[#allocation14 + $0x3c] sm:$0xf]
    %v222 = vld [vmem:[#allocation14 + $0x40] sm:$0xf]
    %v223 = vld [vmem:[#allocation14 + $0x44] sm:$0xf]
    %v224 = vld [vmem:[#allocation14 + $0x48] sm:$0xf]
    %v225 = vld [vmem:[#allocation14 + $0x4c] sm:$0xf]
    %v226 = vld [vmem:[#allocation14 + $0x50] sm:$0xf]
    %v227 = vld [vmem:[#allocation14 + $0x54] sm:$0xf]
    %v228 = vld [vmem:[#allocation14 + $0x58] sm:$0xf]
    %v229 = vld [vmem:[#allocation14 + $0x5c] sm:$0xf]
    %v230 = vld [vmem:[#allocation14 + $0x60] sm:$0xf]
    %v231 = vld [vmem:[#allocation14 + $0x64] sm:$0xf]
    %v232 = vld [vmem:[#allocation14 + $0x68] sm:$0xf]
    %v233 = vld [vmem:[#allocation14 + $0x6c] sm:$0xf]
    %v234 = vld [vmem:[#allocation14 + $0x70] sm:$0xf]
    %v235 = vld [vmem:[#allocation14 + $0x74] sm:$0xf]
    %v236 = vld [vmem:[#allocation14 + $0x78] sm:$0xf]
    %v237 = vld [vmem:[#allocation14 + $0x7c] sm:$0xf]
    %v238 = vld [vmem:[#allocation14 + $0x80] sm:$0xf]
    %v239 = vld [vmem:[#allocation14 + $0x84] sm:$0xf]
    %v240 = vld [vmem:[#allocation14 + $0x88] sm:$0xf]
    %v241 = vld [vmem:[#allocation14 + $0x8c] sm:$0xf]
    %v242 = vld [vmem:[#allocation14 + $0x90] sm:$0xf]
    %v243 = vld [vmem:[#allocation14 + $0x94] sm:$0xf]
    %v244 = vld [vmem:[#allocation14 + $0x98] sm:$0xf]
    %v245 = vld [vmem:[#allocation14 + $0x9c] sm:$0xf]
    %v246 = vld [vmem:[#allocation14 + $0xa0] sm:$0xf]
    %v247 = vld [vmem:[#allocation14 + $0xa4] sm:$0xf]
    %v248 = vld [vmem:[#allocation14 + $0xa8] sm:$0xf]
    %v249 = vld [vmem:[#allocation14 + $0xac] sm:$0xf]
    %v250 = vld [vmem:[#allocation14 + $0xb0] sm:$0xf]
    %v251 = vld [vmem:[#allocation14 + $0xb4] sm:$0xf]
    %v252 = vld [vmem:[#allocation14 + $0xb8] sm:$0xf]
    %v253 = vld [vmem:[#allocation14 + $0xbc] sm:$0xf]
    %v254 = vld [vmem:[#allocation14 + $0xc0] sm:$0xf]
    %v255 = vld [vmem:[#allocation14 + $0xc4] sm:$0xf]
    %v256 = vld [vmem:[#allocation14 + $0xc8] sm:$0xf]
    %v257 = vld [vmem:[#allocation14 + $0xcc] sm:$0xf]
    %v258 = vld [vmem:[#allocation14 + $0xd0] sm:$0xf]
    %v259 = vld [vmem:[#allocation14 + $0xd4] sm:$0xf]
    %v260 = vld [vmem:[#allocation14 + $0xd8] sm:$0xf]
    %v261 = vld [vmem:[#allocation14 + $0xdc] sm:$0xf]
    %v262 = vld [vmem:[#allocation14 + $0xe0] sm:$0xf]
    %v263 = vld [vmem:[#allocation14 + $0xe4] sm:$0xf]
    %v264 = vld [vmem:[#allocation14 + $0xe8] sm:$0xf]
    %v265 = vld [vmem:[#allocation14 + $0xec] sm:$0xf]
    %v266 = vld [vmem:[#allocation14 + $0xf0] sm:$0xf]
    %v267 = vld [vmem:[#allocation14 + $0xf4] sm:$0xf]
    %v268 = vld [vmem:[#allocation14 + $0xf8] sm:$0xf]
    %v269 = vld [vmem:[#allocation14 + $0xfc] sm:$0xf]
    %v270 = vld [vmem:[%s5] sm:$0x1]
    %v271 = vpack.c.bf16 %v202, %v202
    %v272 = vpack.c.bf16 %v203, %v203
    %v273 = vpack.c.bf16 %v204, %v204
    %v274 = vpack.c.bf16 %v205, %v205
    %v276 = vlaneseq
    %v277 = vshrl.u32 %v276, 7
    %v278 = vsub.s32 0, %v277
    %v279 = vrot.slane %v270, %v278
    %v345 = vunpack.c.l.b16 %v206
    %v346 = vunpack.c.l.b16 %v207
    %v347 = vunpack.c.l.b16 %v208
    %v348 = vunpack.c.l.b16 %v209
    %v349 = vunpack.c.l.b16 %v210
    %v350 = vunpack.c.l.b16 %v211
    %v351 = vunpack.c.l.b16 %v212
    %v352 = vunpack.c.l.b16 %v213
    %v353 = vunpack.c.l.b16 %v214
    %v354 = vunpack.c.l.b16 %v215
    %v355 = vunpack.c.l.b16 %v216
    %v356 = vunpack.c.l.b16 %v217
    %v357 = vunpack.c.l.b16 %v218
    %v358 = vunpack.c.l.b16 %v219
    %v359 = vunpack.c.l.b16 %v220
    %v360 = vunpack.c.l.b16 %v221
    %v361 = vunpack.c.l.b16 %v222
    %v362 = vunpack.c.l.b16 %v223
    %v363 = vunpack.c.l.b16 %v224
    %v364 = vunpack.c.l.b16 %v225
    %v365 = vunpack.c.l.b16 %v226
    %v366 = vunpack.c.l.b16 %v227
    %v367 = vunpack.c.l.b16 %v228
    %v368 = vunpack.c.l.b16 %v229
    %v369 = vunpack.c.l.b16 %v230
    %v370 = vunpack.c.l.b16 %v231
    %v371 = vunpack.c.l.b16 %v232
    %v372 = vunpack.c.l.b16 %v233
    %v373 = vunpack.c.l.b16 %v234
    %v374 = vunpack.c.l.b16 %v235
    %v375 = vunpack.c.l.b16 %v236
    %v376 = vunpack.c.l.b16 %v237
    %v377 = vunpack.c.l.b16 %v238
    %v378 = vunpack.c.l.b16 %v239
    %v379 = vunpack.c.l.b16 %v240
    %v380 = vunpack.c.l.b16 %v241
    %v381 = vunpack.c.l.b16 %v242
    %v382 = vunpack.c.l.b16 %v243
    %v383 = vunpack.c.l.b16 %v244
    %v384 = vunpack.c.l.b16 %v245
    %v385 = vunpack.c.l.b16 %v246
    %v386 = vunpack.c.l.b16 %v247
    %v387 = vunpack.c.l.b16 %v248
    %v388 = vunpack.c.l.b16 %v249
    %v389 = vunpack.c.l.b16 %v250
    %v390 = vunpack.c.l.b16 %v251
    %v391 = vunpack.c.l.b16 %v252
    %v392 = vunpack.c.l.b16 %v253
    %v393 = vunpack.c.l.b16 %v254
    %v394 = vunpack.c.l.b16 %v255
    %v395 = vunpack.c.l.b16 %v256
    %v396 = vunpack.c.l.b16 %v257
    %v397 = vunpack.c.l.b16 %v258
    %v398 = vunpack.c.l.b16 %v259
    %v399 = vunpack.c.l.b16 %v260
    %v400 = vunpack.c.l.b16 %v261
    %v401 = vunpack.c.l.b16 %v262
    %v402 = vunpack.c.l.b16 %v263
    %v403 = vunpack.c.l.b16 %v264
    %v404 = vunpack.c.l.b16 %v265
    %v405 = vunpack.c.l.b16 %v266
    %v406 = vunpack.c.l.b16 %v267
    %v407 = vunpack.c.l.b16 %v268
    %v408 = vunpack.c.l.b16 %v269
    %v409 = vpack.c.b16 %v346, %v345
    %v410 = vpack.c.b16 %v348, %v347
    %v411 = vpack.c.b16 %v350, %v349
    %v412 = vpack.c.b16 %v352, %v351
    %v413 = vpack.c.b16 %v354, %v353
    %v414 = vpack.c.b16 %v356, %v355
    %v415 = vpack.c.b16 %v358, %v357
    %v416 = vpack.c.b16 %v360, %v359
    %v417 = vpack.c.b16 %v362, %v361
    %v418 = vpack.c.b16 %v364, %v363
    %v419 = vpack.c.b16 %v366, %v365
    %v420 = vpack.c.b16 %v368, %v367
    %v421 = vpack.c.b16 %v370, %v369
    %v422 = vpack.c.b16 %v372, %v371
    %v423 = vpack.c.b16 %v374, %v373
    %v424 = vpack.c.b16 %v376, %v375
    %v425 = vpack.c.b16 %v378, %v377
    %v426 = vpack.c.b16 %v380, %v379
    %v427 = vpack.c.b16 %v382, %v381
    %v428 = vpack.c.b16 %v384, %v383
    %v429 = vpack.c.b16 %v386, %v385
    %v430 = vpack.c.b16 %v388, %v387
    %v431 = vpack.c.b16 %v390, %v389
    %v432 = vpack.c.b16 %v392, %v391
    %v433 = vpack.c.b16 %v394, %v393
    %v434 = vpack.c.b16 %v396, %v395
    %v435 = vpack.c.b16 %v398, %v397
    %v436 = vpack.c.b16 %v400, %v399
    %v437 = vpack.c.b16 %v402, %v401
    %v438 = vpack.c.b16 %v404, %v403
    %v439 = vpack.c.b16 %v406, %v405
    %v440 = vpack.c.b16 %v408, %v407
    %473 = vmatprep.subr.bf16.mxu0 0
    %474 = vmatpush1.bf16.msra.mxu0 %v416
    %475 = vmatprep.subr.bf16.mxu0 0
    %476 = vmatpush1.bf16.msra.mxu0 %v415
    %477 = vmatprep.subr.bf16.mxu0 0
    %478 = vmatpush1.bf16.msra.mxu0 %v414
    %479 = vmatprep.subr.bf16.mxu0 0
    %480 = vmatpush1.bf16.msra.mxu0 %v413
    %481 = vmatprep.subr.bf16.mxu0 0
    %482 = vmatpush1.bf16.msra.mxu0 %v412
    %483 = vmatprep.subr.bf16.mxu0 0
    %484 = vmatpush1.bf16.msra.mxu0 %v411
    %485 = vmatprep.subr.bf16.mxu0 0
    %486 = vmatpush1.bf16.msra.mxu0 %v410
    %487 = vmatprep.subr.bf16.mxu0 0
    %488 = vmatpush1.bf16.msra.mxu0 %v409
    %489 = vmatprep.subr.bf16.mxu0 0
    %490 = vmatpush2.bf16.msra.mxu0 %v424
    %491 = vmatprep.subr.bf16.mxu0 0
    %492 = vmatpush2.bf16.msra.mxu0 %v423
    %493 = vmatprep.subr.bf16.mxu0 0
    %494 = vmatpush2.bf16.msra.mxu0 %v422
    %495 = vmatprep.subr.bf16.mxu0 0
    %496 = vmatpush2.bf16.msra.mxu0 %v421
    %497 = vmatprep.subr.bf16.mxu0 0
    %498 = vmatpush2.bf16.msra.mxu0 %v420
    %499 = vmatprep.subr.bf16.mxu0 0
    %500 = vmatpush2.bf16.msra.mxu0 %v419
    %501 = vmatprep.subr.bf16.mxu0 0
    %502 = vmatpush2.bf16.msra.mxu0 %v418
    %503 = vmatprep.subr.bf16.mxu0 0
    %504 = vmatpush2.bf16.msra.mxu0 %v417
    %505 = vmatprep.mubr.bf16.mxu0 %v272
    %506 = vmatmul.mubr.bf16.gmra.mxu0 %v271
    %v507 = vpop.f32.mrf.mxu0
    %v508 = vadd.f32 %v279, %v507
    %v509 = vpop.f32.mrf.mxu0
    %v510 = vpop.f32.mrf.mxu0
    %v511 = vpop.f32.mrf.mxu0
    %512 = vdwg.mxu0
    %513 = vmatprep.subr.bf16.mxu0 0
    %514 = vmatpush1.bf16.msra.mxu0 %v432
    %515 = vmatprep.subr.bf16.mxu0 0
    %516 = vmatpush1.bf16.msra.mxu0 %v431
    %517 = vmatprep.subr.bf16.mxu0 0
    %518 = vmatpush1.bf16.msra.mxu0 %v430
    %519 = vmatprep.subr.bf16.mxu0 0
    %520 = vmatpush1.bf16.msra.mxu0 %v429
    %521 = vmatprep.subr.bf16.mxu0 0
    %522 = vmatpush1.bf16.msra.mxu0 %v428
    %523 = vmatprep.subr.bf16.mxu0 0
    %524 = vmatpush1.bf16.msra.mxu0 %v427
    %525 = vmatprep.subr.bf16.mxu0 0
    %526 = vmatpush1.bf16.msra.mxu0 %v426
    %527 = vmatprep.subr.bf16.mxu0 0
    %528 = vmatpush1.bf16.msra.mxu0 %v425
    %529 = vmatprep.subr.bf16.mxu0 0
    %530 = vmatpush2.bf16.msra.mxu0 %v440
    %531 = vmatprep.subr.bf16.mxu0 0
    %532 = vmatpush2.bf16.msra.mxu0 %v439
    %533 = vmatprep.subr.bf16.mxu0 0
    %534 = vmatpush2.bf16.msra.mxu0 %v438
    %535 = vmatprep.subr.bf16.mxu0 0
    %536 = vmatpush2.bf16.msra.mxu0 %v437
    %537 = vmatprep.subr.bf16.mxu0 0
    %538 = vmatpush2.bf16.msra.mxu0 %v436
    %539 = vmatprep.subr.bf16.mxu0 0
    %540 = vmatpush2.bf16.msra.mxu0 %v435
    %541 = vmatprep.subr.bf16.mxu0 0
    %542 = vmatpush2.bf16.msra.mxu0 %v434
    %543 = vmatprep.subr.bf16.mxu0 0
    %544 = vmatpush2.bf16.msra.mxu0 %v433
    %545 = vmatprep.mubr.bf16.mxu0 %v274
    %546 = vmatmul.mubr.bf16.gmra.mxu0 %v273
    %v547 = vpop.f32.mrf.mxu0
    %v548 = vadd.f32 %v508, %v547
    %v549 = vpop.f32.mrf.mxu0
    %v550 = vpop.f32.mrf.mxu0
    %v551 = vpop.f32.mrf.mxu0
    %552 = vdwg.mxu0
    %v553 = vmul.f32 %v548, %v548
    %554 = vadd.xlane.f32.xlu0 %v553
    %v555 = vpop.xlane.xlu0 %554
    %v556 = vrsqrt.pop %v555
    %v557 = vmul.f32 %v548, %v556
    %v558 = vld [vmem:[#allocation13] sm:$0xff]
    %v559 = vld [vmem:[#allocation16] sm:$0xf]
    %v560 = vld [vmem:[#allocation16 + $0x4] sm:$0xf]
    %v561 = vld [vmem:[#allocation16 + $0x8] sm:$0xf]
    %v562 = vld [vmem:[#allocation16 + $0xc] sm:$0xf]
    %v563 = vld [vmem:[#allocation16 + $0x10] sm:$0xf]
    %v564 = vld [vmem:[#allocation16 + $0x14] sm:$0xf]
    %v565 = vld [vmem:[#allocation17] sm:$0x1]
    %v566 = vpack.c.bf16 %v558, %v558
    %v568 = vlaneseq
    %v569 = vshrl.u32 %v568, 7
    %v570 = vsub.s32 0, %v569
    %v571 = vrot.slane %v565, %v570
    %v579 = vunpack.c.l.b16 %v559
    %v580 = vunpack.c.l.b16 %v560
    %v581 = vunpack.c.l.b16 %v561
    %v582 = vunpack.c.l.b16 %v562
    %v583 = vunpack.c.l.b16 %v563
    %v584 = vunpack.c.l.b16 %v564
    %v585 = vpack.c.b16 %v580, %v579
    %v586 = vpack.c.b16 %v582, %v581
    %v587 = vpack.c.b16 %v584, %v583
    %vm591 = vcmask 392192
    %v593 = vsel %vm591, %v566, 0
    %595 = vmatprep.subr.bf16.mxu0 0
    %596 = vmatpush1.bf16.msra.mxu0 0
    %597 = vmatprep.subr.bf16.mxu0 0
    %598 = vmatpush1.bf16.msra.mxu0 0
    %599 = vmatprep.subr.bf16.mxu0 0
    %600 = vmatpush1.bf16.msra.mxu0 0
    %601 = vmatprep.subr.bf16.mxu0 0
    %602 = vmatpush1.bf16.msra.mxu0 0
    %603 = vmatprep.subr.bf16.mxu0 0
    %604 = vmatpush1.bf16.msra.mxu0 0
    %605 = vmatprep.subr.bf16.mxu0 0
    %606 = vmatpush1.bf16.msra.mxu0 %v587
    %607 = vmatprep.subr.bf16.mxu0 0
    %608 = vmatpush1.bf16.msra.mxu0 %v586
    %609 = vmatprep.subr.bf16.mxu0 0
    %610 = vmatpush1.bf16.msra.mxu0 %v585
    %611 = vmatprep.subr.bf16.mxu0 0
    %612 = vmatpush2.bf16.msra.mxu0 0
    %613 = vmatprep.subr.bf16.mxu0 0
    %614 = vmatpush2.bf16.msra.mxu0 0
    %615 = vmatprep.subr.bf16.mxu0 0
    %616 = vmatpush2.bf16.msra.mxu0 0
    %617 = vmatprep.subr.bf16.mxu0 0
    %618 = vmatpush2.bf16.msra.mxu0 0
    %619 = vmatprep.subr.bf16.mxu0 0
    %620 = vmatpush2.bf16.msra.mxu0 0
    %621 = vmatprep.subr.bf16.mxu0 0
    %622 = vmatpush2.bf16.msra.mxu0 0
    %623 = vmatprep.subr.bf16.mxu0 0
    %624 = vmatpush2.bf16.msra.mxu0 0
    %625 = vmatprep.subr.bf16.mxu0 0
    %626 = vmatpush2.bf16.msra.mxu0 0
    %627 = vmatprep.mubr.bf16.mxu0 0
    %628 = vmatmul.mubr.bf16.gmra.mxu0 %v593
    %v629 = vpop.f32.mrf.mxu0
    %v630 = vadd.f32 %v571, %v629
    %v631 = vpop.f32.mrf.mxu0
    %v632 = vpop.f32.mrf.mxu0
    %v633 = vpop.f32.mrf.mxu0
    %634 = vdwg.mxu0
    %v635 = vmul.f32 %v630, %v630
    %636 = vadd.xlane.f32.xlu0 %v635
    %v637 = vpop.xlane.xlu0 %636
    %v638 = vrsqrt.pop %v637
    %v639 = vmul.f32 %v630, %v638
    %s640 = sld [smem:[#allocation7]]
    %641 = vmatprep.subr.mxu0 0.0
    %642 = vmatpush1.xpose.msra.mxu0 0.0
    %643 = vmatprep.subr.mxu0 0.0
    %644 = vmatpush1.xpose.msra.mxu0 0.0
    %645 = vmatprep.subr.mxu0 0.0
    %646 = vmatpush1.xpose.msra.mxu0 0.0
    %647 = vmatprep.subr.mxu0 0.0
    %648 = vmatpush1.xpose.msra.mxu0 0.0
    %649 = vmatprep.subr.mxu0 0.0
    %650 = vmatpush1.xpose.msra.mxu0 0.0
    %651 = vmatprep.subr.mxu0 0.0
    %652 = vmatpush1.xpose.msra.mxu0 0.0
    %653 = vmatprep.subr.mxu0 0.0
    %654 = vmatpush1.xpose.msra.mxu0 0.0
    %655 = vmatprep.subr.mxu0 0.0
    %656 = vmatpush1.xpose.msra.mxu0 0.0
    %657 = vmatprep.subr.mxu0 0.0
    %658 = vmatpush1.xpose.msra.mxu0 0.0
    %659 = vmatprep.subr.mxu0 0.0
    %660 = vmatpush1.xpose.msra.mxu0 0.0
    %661 = vmatprep.subr.mxu0 0.0
    %662 = vmatpush1.xpose.msra.mxu0 0.0
    %663 = vmatprep.subr.mxu0 0.0
    %664 = vmatpush1.xpose.msra.mxu0 0.0
    %665 = vmatprep.subr.mxu0 0.0
    %666 = vmatpush1.xpose.msra.mxu0 0.0
    %667 = vmatprep.subr.mxu0 0.0
    %668 = vmatpush1.xpose.msra.mxu0 0.0
    %669 = vmatprep.subr.mxu0 0.0
    %670 = vmatpush1.xpose.msra.mxu0 0.0
    %671 = vmatprep.subr.mxu0 0.0
    %672 = vmatpush1.xpose.msra.mxu0 %v201
    %673 = vmatprep.subr.mxu0 0.0
    %674 = vmatpush2.xpose.msra.mxu0 0.0
    %675 = vmatprep.subr.mxu0 0.0
    %676 = vmatpush2.xpose.msra.mxu0 0.0
    %677 = vmatprep.subr.mxu0 0.0
    %678 = vmatpush2.xpose.msra.mxu0 0.0
    %679 = vmatprep.subr.mxu0 0.0
    %680 = vmatpush2.xpose.msra.mxu0 0.0
    %681 = vmatprep.subr.mxu0 0.0
    %682 = vmatpush2.xpose.msra.mxu0 0.0
    %683 = vmatprep.subr.mxu0 0.0
    %684 = vmatpush2.xpose.msra.mxu0 0.0
    %685 = vmatprep.subr.mxu0 0.0
    %686 = vmatpush2.xpose.msra.mxu0 0.0
    %687 = vmatprep.subr.mxu0 0.0
    %688 = vmatpush2.xpose.msra.mxu0 0.0
    %689 = vmatprep.subr.mxu0 0.0
    %690 = vmatpush2.xpose.msra.mxu0 0.0
    %691 = vmatprep.subr.mxu0 0.0
    %692 = vmatpush2.xpose.msra.mxu0 0.0
    %693 = vmatprep.subr.mxu0 0.0
    %694 = vmatpush2.xpose.msra.mxu0 0.0
    %695 = vmatprep.subr.mxu0 0.0
    %696 = vmatpush2.xpose.msra.mxu0 0.0
    %697 = vmatprep.subr.mxu0 0.0
    %698 = vmatpush2.xpose.msra.mxu0 0.0
    %699 = vmatprep.subr.mxu0 0.0
    %700 = vmatpush2.xpose.msra.mxu0 0.0
    %701 = vmatprep.subr.mxu0 0.0
    %702 = vmatpush2.xpose.msra.mxu0 0.0
    %703 = vmatprep.subr.mxu0 0.0
    %704 = vmatpush2.xpose.msra.mxu0 0.0
    %705 = vmatprep.mubr.f32.mxu0 0.0
    %706 = vmatmul.mubr.f32.gmra.mxu0 %v557
    %v707 = vpop.f32.mrf.mxu0
    %v708 = vadd.f32 0.0, %v707
    %v709 = vpop.f32.mrf.mxu0
    %710 = vdwg.mxu0
    %v711 = vstv %s640
    %v712 = vmul.f32 %v711, %v708
    %713 = vmatprep.subr.mxu0 0.0
    %714 = vmatpush1.xpose.msra.mxu0 0.0
    %715 = vmatprep.subr.mxu0 0.0
    %716 = vmatpush1.xpose.msra.mxu0 0.0
    %717 = vmatprep.subr.mxu0 0.0
    %718 = vmatpush1.xpose.msra.mxu0 0.0
    %719 = vmatprep.subr.mxu0 0.0
    %720 = vmatpush1.xpose.msra.mxu0 0.0
    %721 = vmatprep.subr.mxu0 0.0
    %722 = vmatpush1.xpose.msra.mxu0 0.0
    %723 = vmatprep.subr.mxu0 0.0
    %724 = vmatpush1.xpose.msra.mxu0 0.0
    %725 = vmatprep.subr.mxu0 0.0
    %726 = vmatpush1.xpose.msra.mxu0 0.0
    %727 = vmatprep.subr.mxu0 0.0
    %728 = vmatpush1.xpose.msra.mxu0 0.0
    %729 = vmatprep.subr.mxu0 0.0
    %730 = vmatpush1.xpose.msra.mxu0 0.0
    %731 = vmatprep.subr.mxu0 0.0
    %732 = vmatpush1.xpose.msra.mxu0 0.0
    %733 = vmatprep.subr.mxu0 0.0
    %734 = vmatpush1.xpose.msra.mxu0 0.0
    %735 = vmatprep.subr.mxu0 0.0
    %736 = vmatpush1.xpose.msra.mxu0 0.0
    %737 = vmatprep.subr.mxu0 0.0
    %738 = vmatpush1.xpose.msra.mxu0 0.0
    %739 = vmatprep.subr.mxu0 0.0
    %740 = vmatpush1.xpose.msra.mxu0 0.0
    %741 = vmatprep.subr.mxu0 0.0
    %742 = vmatpush1.xpose.msra.mxu0 0.0
    %743 = vmatprep.subr.mxu0 0.0
    %744 = vmatpush1.xpose.msra.mxu0 %v557
    %745 = vmatprep.subr.mxu0 0.0
    %746 = vmatpush2.xpose.msra.mxu0 0.0
    %747 = vmatprep.subr.mxu0 0.0
    %748 = vmatpush2.xpose.msra.mxu0 0.0
    %749 = vmatprep.subr.mxu0 0.0
    %750 = vmatpush2.xpose.msra.mxu0 0.0
    %751 = vmatprep.subr.mxu0 0.0
    %752 = vmatpush2.xpose.msra.mxu0 0.0
    %753 = vmatprep.subr.mxu0 0.0
    %754 = vmatpush2.xpose.msra.mxu0 0.0
    %755 = vmatprep.subr.mxu0 0.0
    %756 = vmatpush2.xpose.msra.mxu0 0.0
    %757 = vmatprep.subr.mxu0 0.0
    %758 = vmatpush2.xpose.msra.mxu0 0.0
    %759 = vmatprep.subr.mxu0 0.0
    %760 = vmatpush2.xpose.msra.mxu0 0.0
    %761 = vmatprep.subr.mxu0 0.0
    %762 = vmatpush2.xpose.msra.mxu0 0.0
    %763 = vmatprep.subr.mxu0 0.0
    %764 = vmatpush2.xpose.msra.mxu0 0.0
    %765 = vmatprep.subr.mxu0 0.0
    %766 = vmatpush2.xpose.msra.mxu0 0.0
    %767 = vmatprep.subr.mxu0 0.0
    %768 = vmatpush2.xpose.msra.mxu0 0.0
    %769 = vmatprep.subr.mxu0 0.0
    %770 = vmatpush2.xpose.msra.mxu0 0.0
    %771 = vmatprep.subr.mxu0 0.0
    %772 = vmatpush2.xpose.msra.mxu0 0.0
    %773 = vmatprep.subr.mxu0 0.0
    %774 = vmatpush2.xpose.msra.mxu0 0.0
    %775 = vmatprep.subr.mxu0 0.0
    %776 = vmatpush2.xpose.msra.mxu0 0.0
    %777 = vmatprep.mubr.f32.mxu0 0.0
    %778 = vmatmul.mubr.f32.gmra.mxu0 %v639
    %v779 = vpop.f32.mrf.mxu0
    %v780 = vadd.f32 0.0, %v779
    %v781 = vpop.f32.mrf.mxu0
    %782 = vdwg.mxu0
    %v783 = vmul.f32 %v711, %v780
    %vm784 = vcmask 64512
    %v785 = vsel %vm784, %v712, -inf
    %786 = vmax.xlane.f32.xlu0 %v785
    %v787 = vpop.xlane.xlu0 %786
    %v788 = vsub.f32 %v712, %v787
    %v789 = vmul.f32 %v788, 1.442695
    %v790 = vpow.pop %v789
    %v791 = vsel %vm784, %v790, 0.0
    %792 = vadd.xlane.f32.xlu0 %v791
    %v793 = vpop.xlane.xlu0 %792
    %v794 = vlog2.pop %v793
    %v795 = vmul.f32 %v794, 0.6931472
    %v796 = vadd.f32 %v787, %v795
    %v797 = vlaneseq
    %v798 = vshrl.u32 %v797, 7
    %v799 = vlaneseq
    %v800 = vand.u32 %v799, 127
    %vm801 = vcmp.eq.s32.totalorder %v798, %v800
    %v802 = vsel %vm801, %v712, 0.0
    %v803 = vsel %vm784, %v802, 0.0
    %804 = vadd.xlane.f32.xlu0 %v803
    %v805 = vpop.xlane.xlu0 %804
    %v806 = vsub.f32 %v796, %v805
    %vm807 = vcmask 7168
    %v808 = vsel %vm807, %v806, 0.0
    %809 = vadd.xlane.f32.xlu0 %v808
    %v810 = vpop.xlane.xlu0 %809
    %v811 = vrot.slane %v810, 4
    %v812 = vadd.f32 %v810, %v811
    %v813 = vrot.slane %v812, 2
    %v814 = vadd.f32 %v812, %v813
    %v815 = vrot.slane %v814, 1
    %v816 = vadd.f32 %v814, %v815
    %s817 = vtos %v816
    %v818 = vrcp.pop 8.0
    %s819 = vtos %v818
    %s820 = smul.f32 %s817, %s819
    %v821 = vrot.slane %v785, 4
    %v822 = vmax.f32 %v785, %v821
    %v823 = vrot.slane %v822, 2
    %v824 = vmax.f32 %v822, %v823
    %v825 = vrot.slane %v824, 1
    %v826 = vmax.f32 %v824, %v825
    %v827 = vsub.f32 %v712, %v826
    %v828 = vmul.f32 %v827, 1.442695
    %v829 = vpow.pop %v828
    %v830 = vsel %vm784, %v829, 0.0
    %v831 = vrot.slane %v830, 4
    %v832 = vadd.f32 %v830, %v831
    %v833 = vrot.slane %v832, 2
    %v834 = vadd.f32 %v832, %v833
    %v835 = vrot.slane %v834, 1
    %v836 = vadd.f32 %v834, %v835
    %v837 = vlog2.pop %v836
    %v838 = vmul.f32 %v837, 0.6931472
    %v839 = vadd.f32 %v826, %v838
    %v840 = vrot.slane %v803, 4
    %v841 = vadd.f32 %v803, %v840
    %v842 = vrot.slane %v841, 2
    %v843 = vadd.f32 %v841, %v842
    %v844 = vrot.slane %v843, 1
    %v845 = vadd.f32 %v843, %v844
    %v846 = vsub.f32 %v839, %v845
    %vm847 = vcmask 57344
    %v848 = vsel %vm847, %v846, 0.0
    %849 = vadd.xlane.f32.xlu0 %v848
    %v850 = vpop.xlane.xlu0 %849
    %v851 = vrot.slane %v850, 4
    %v852 = vadd.f32 %v850, %v851
    %v853 = vrot.slane %v852, 2
    %v854 = vadd.f32 %v852, %v853
    %v855 = vrot.slane %v854, 1
    %v856 = vadd.f32 %v854, %v855
    %s857 = vtos %v856
    %v858 = vrcp.pop 8.0
    %s859 = vtos %v858
    %s860 = smul.f32 %s857, %s859
    %s861 = sadd.f32 %s820, %s860
    %v862 = vsel %vm784, %v783, -inf
    %863 = vmax.xlane.f32.xlu0 %v862
    %v864 = vpop.xlane.xlu0 %863
    %v865 = vsub.f32 %v783, %v864
    %v866 = vmul.f32 %v865, 1.442695
    %v867 = vpow.pop %v866
    %v868 = vsel %vm784, %v867, 0.0
    %869 = vadd.xlane.f32.xlu0 %v868
    %v870 = vpop.xlane.xlu0 %869
    %v871 = vlog2.pop %v870
    %v872 = vmul.f32 %v871, 0.6931472
    %v873 = vadd.f32 %v864, %v872
    %v874 = vsel %vm801, %v783, 0.0
    %v875 = vsel %vm784, %v874, 0.0
    %876 = vadd.xlane.f32.xlu0 %v875
    %v877 = vpop.xlane.xlu0 %876
    %v878 = vsub.f32 %v873, %v877
    %v879 = vsel %vm807, %v878, 0.0
    %880 = vadd.xlane.f32.xlu0 %v879
    %v881 = vpop.xlane.xlu0 %880
    %v882 = vrot.slane %v881, 4
    %v883 = vadd.f32 %v881, %v882
    %v884 = vrot.slane %v883, 2
    %v885 = vadd.f32 %v883, %v884
    %v886 = vrot.slane %v885, 1
    %v887 = vadd.f32 %v885, %v886
    %s888 = vtos %v887
    %v889 = vrcp.pop 8.0
    %s890 = vtos %v889
    %s891 = smul.f32 %s888, %s890
    %s892 = sadd.f32 %s861, %s891
    %v893 = vrcp.pop 3.0
    %s894 = vtos %v893
    %s895 = smul.f32 %s892, %s894
    %v896 = vstv %s895
    %vm897 = vcmask 0
    %898 = vst.msk [vmem:[#allocation22] sm:$0x1] %vm897, %v896
    %s899 = smul.u32 4, 32
    %s900 = smul.u32 %s899, 2
    %s901 = sshll.u32 %s900, 4
    %902 = dma.done [#allocation6], %s901
    %v903 = vld [vmem:[#allocation2] sm:$0xff]
    %v904 = vld [vmem:[#allocation2 + $0x8] sm:$0xff]
    %v905 = vld [vmem:[#allocation2 + $0x10] sm:$0xff]
    %v906 = vld [vmem:[#allocation2 + $0x18] sm:$0xff]
    %v907 = vld [vmem:[#allocation2 + $0x20] sm:$0xff]
    %v908 = vld [vmem:[#allocation2 + $0x28] sm:$0xff]
    %v909 = vld [vmem:[#allocation2 + $0x30] sm:$0xff]
    %v910 = vld [vmem:[#allocation2 + $0x38] sm:$0xff]
    %v911 = vld [vmem:[#allocation2 + $0x40] sm:$0xff]
    %v912 = vld [vmem:[#allocation2 + $0x48] sm:$0xff]
    %v913 = vld [vmem:[#allocation2 + $0x50] sm:$0xff]
    %v914 = vld [vmem:[#allocation2 + $0x58] sm:$0xff]
    %v915 = vld [vmem:[#allocation2 + $0x60] sm:$0xff]
    %v916 = vld [vmem:[#allocation2 + $0x68] sm:$0xff]
    %v917 = vld [vmem:[#allocation2 + $0x70] sm:$0xff]
    %v918 = vld [vmem:[#allocation2 + $0x78] sm:$0xff]
    %v919 = vld [vmem:[#allocation2 + $0x80] sm:$0xff]
    %v920 = vld [vmem:[#allocation2 + $0x88] sm:$0xff]
    %v921 = vld [vmem:[#allocation2 + $0x90] sm:$0xff]
    %v922 = vld [vmem:[#allocation2 + $0x98] sm:$0xff]
    %v923 = vld [vmem:[#allocation2 + $0xa0] sm:$0xff]
    %v924 = vld [vmem:[#allocation2 + $0xa8] sm:$0xff]
    %v925 = vld [vmem:[#allocation2 + $0xb0] sm:$0xff]
    %v926 = vld [vmem:[#allocation2 + $0xb8] sm:$0xff]
    %v927 = vld [vmem:[#allocation2 + $0xc0] sm:$0xff]
    %v928 = vld [vmem:[#allocation2 + $0xc8] sm:$0xff]
    %v929 = vld [vmem:[#allocation2 + $0xd0] sm:$0xff]
    %v930 = vld [vmem:[#allocation2 + $0xd8] sm:$0xff]
    %v931 = vld [vmem:[#allocation2 + $0xe0] sm:$0xff]
    %v932 = vld [vmem:[#allocation2 + $0xe8] sm:$0xff]
    %v933 = vld [vmem:[#allocation2 + $0xf0] sm:$0xff]
    %v934 = vld [vmem:[#allocation2 + $0xf8] sm:$0xff]
    %v935 = vld [vmem:[#allocation19] sm:$0x3]
    %v936 = vpack.c.bf16 %v201, %v201
    %v937 = vpack.c.bf16 %v557, %v557
    %v939 = vlaneseq
    %v940 = vshrl.u32 %v939, 7
    %v941 = vsub.s32 0, %v940
    %v942 = vrot.slane %v935, %v941
    %v943 = vlaneseq
    %v944 = vshrl.u32 %v943, 7
    %v945 = vsub.s32 1, %v944
    %v946 = vrot.slane %v935, %v945
    %v981 = vunpack.c.l.b16 %v903
    %v982 = vunpack.c.h.b16 %v903
    %v983 = vunpack.c.l.b16 %v904
    %v984 = vunpack.c.h.b16 %v904
    %v985 = vunpack.c.l.b16 %v905
    %v986 = vunpack.c.h.b16 %v905
    %v987 = vunpack.c.l.b16 %v906
    %v988 = vunpack.c.h.b16 %v906
    %v989 = vunpack.c.l.b16 %v907
    %v990 = vunpack.c.h.b16 %v907
    %v991 = vunpack.c.l.b16 %v908
    %v992 = vunpack.c.h.b16 %v908
    %v993 = vunpack.c.l.b16 %v909
    %v994 = vunpack.c.h.b16 %v909
    %v995 = vunpack.c.l.b16 %v910
    %v996 = vunpack.c.h.b16 %v910
    %v997 = vunpack.c.l.b16 %v911
    %v998 = vunpack.c.h.b16 %v911
    %v999 = vunpack.c.l.b16 %v912
    %v1000 = vunpack.c.h.b16 %v912
    %v1001 = vunpack.c.l.b16 %v913
    %v1002 = vunpack.c.h.b16 %v913
    %v1003 = vunpack.c.l.b16 %v914
    %v1004 = vunpack.c.h.b16 %v914
    %v1005 = vunpack.c.l.b16 %v915
    %v1006 = vunpack.c.h.b16 %v915
    %v1007 = vunpack.c.l.b16 %v916
    %v1008 = vunpack.c.h.b16 %v916
    %v1009 = vunpack.c.l.b16 %v917
    %v1010 = vunpack.c.h.b16 %v917
    %v1011 = vunpack.c.l.b16 %v918
    %v1012 = vunpack.c.h.b16 %v918
    %v1013 = vunpack.c.l.b16 %v919
    %v1014 = vunpack.c.h.b16 %v919
    %v1015 = vunpack.c.l.b16 %v920
    %v1016 = vunpack.c.h.b16 %v920
    %v1017 = vunpack.c.l.b16 %v921
    %v1018 = vunpack.c.h.b16 %v921
    %v1019 = vunpack.c.l.b16 %v922
    %v1020 = vunpack.c.h.b16 %v922
    %v1021 = vunpack.c.l.b16 %v923
    %v1022 = vunpack.c.h.b16 %v923
    %v1023 = vunpack.c.l.b16 %v924
    %v1024 = vunpack.c.h.b16 %v924
    %v1025 = vunpack.c.l.b16 %v925
    %v1026 = vunpack.c.h.b16 %v925
    %v1027 = vunpack.c.l.b16 %v926
    %v1028 = vunpack.c.h.b16 %v926
    %v1029 = vunpack.c.l.b16 %v927
    %v1030 = vunpack.c.h.b16 %v927
    %v1031 = vunpack.c.l.b16 %v928
    %v1032 = vunpack.c.h.b16 %v928
    %v1033 = vunpack.c.l.b16 %v929
    %v1034 = vunpack.c.h.b16 %v929
    %v1035 = vunpack.c.l.b16 %v930
    %v1036 = vunpack.c.h.b16 %v930
    %v1037 = vunpack.c.l.b16 %v931
    %v1038 = vunpack.c.h.b16 %v931
    %v1039 = vunpack.c.l.b16 %v932
    %v1040 = vunpack.c.h.b16 %v932
    %v1041 = vunpack.c.l.b16 %v933
    %v1042 = vunpack.c.h.b16 %v933
    %v1043 = vunpack.c.l.b16 %v934
    %v1044 = vunpack.c.h.b16 %v934
    %v1045 = vpack.c.b16 %v983, %v981
    %v1046 = vpack.c.b16 %v984, %v982
    %v1047 = vpack.c.b16 %v987, %v985
    %v1048 = vpack.c.b16 %v988, %v986
    %v1049 = vpack.c.b16 %v991, %v989
    %v1050 = vpack.c.b16 %v992, %v990
    %v1051 = vpack.c.b16 %v995, %v993
    %v1052 = vpack.c.b16 %v996, %v994
    %v1053 = vpack.c.b16 %v999, %v997
    %v1054 = vpack.c.b16 %v1000, %v998
    %v1055 = vpack.c.b16 %v1003, %v1001
    %v1056 = vpack.c.b16 %v1004, %v1002
    %v1057 = vpack.c.b16 %v1007, %v1005
    %v1058 = vpack.c.b16 %v1008, %v1006
    %v1059 = vpack.c.b16 %v1011, %v1009
    %v1060 = vpack.c.b16 %v1012, %v1010
    %v1061 = vpack.c.b16 %v1015, %v1013
    %v1062 = vpack.c.b16 %v1016, %v1014
    %v1063 = vpack.c.b16 %v1019, %v1017
    %v1064 = vpack.c.b16 %v1020, %v1018
    %v1065 = vpack.c.b16 %v1023, %v1021
    %v1066 = vpack.c.b16 %v1024, %v1022
    %v1067 = vpack.c.b16 %v1027, %v1025
    %v1068 = vpack.c.b16 %v1028, %v1026
    %v1069 = vpack.c.b16 %v1031, %v1029
    %v1070 = vpack.c.b16 %v1032, %v1030
    %v1071 = vpack.c.b16 %v1035, %v1033
    %v1072 = vpack.c.b16 %v1036, %v1034
    %v1073 = vpack.c.b16 %v1039, %v1037
    %v1074 = vpack.c.b16 %v1040, %v1038
    %v1075 = vpack.c.b16 %v1043, %v1041
    %v1076 = vpack.c.b16 %v1044, %v1042
    %1109 = vmatprep.subr.bf16.mxu0 %v1060
    %1110 = vmatpush1.bf16.msra.mxu0 %v1059
    %1111 = vmatprep.subr.bf16.mxu0 %v1058
    %1112 = vmatpush1.bf16.msra.mxu0 %v1057
    %1113 = vmatprep.subr.bf16.mxu0 %v1056
    %1114 = vmatpush1.bf16.msra.mxu0 %v1055
    %1115 = vmatprep.subr.bf16.mxu0 %v1054
    %1116 = vmatpush1.bf16.msra.mxu0 %v1053
    %1117 = vmatprep.subr.bf16.mxu0 %v1052
    %1118 = vmatpush1.bf16.msra.mxu0 %v1051
    %1119 = vmatprep.subr.bf16.mxu0 %v1050
    %1120 = vmatpush1.bf16.msra.mxu0 %v1049
    %1121 = vmatprep.subr.bf16.mxu0 %v1048
    %1122 = vmatpush1.bf16.msra.mxu0 %v1047
    %1123 = vmatprep.subr.bf16.mxu0 %v1046
    %1124 = vmatpush1.bf16.msra.mxu0 %v1045
    %1125 = vmatprep.subr.bf16.mxu0 %v1076
    %1126 = vmatpush2.bf16.msra.mxu0 %v1075
    %1127 = vmatprep.subr.bf16.mxu0 %v1074
    %1128 = vmatpush2.bf16.msra.mxu0 %v1073
    %1129 = vmatprep.subr.bf16.mxu0 %v1072
    %1130 = vmatpush2.bf16.msra.mxu0 %v1071
    %1131 = vmatprep.subr.bf16.mxu0 %v1070
    %1132 = vmatpush2.bf16.msra.mxu0 %v1069
    %1133 = vmatprep.subr.bf16.mxu0 %v1068
    %1134 = vmatpush2.bf16.msra.mxu0 %v1067
    %1135 = vmatprep.subr.bf16.mxu0 %v1066
    %1136 = vmatpush2.bf16.msra.mxu0 %v1065
    %1137 = vmatprep.subr.bf16.mxu0 %v1064
    %1138 = vmatpush2.bf16.msra.mxu0 %v1063
    %1139 = vmatprep.subr.bf16.mxu0 %v1062
    %1140 = vmatpush2.bf16.msra.mxu0 %v1061
    %1141 = vmatprep.mubr.bf16.mxu0 %v937
    %1142 = vmatmul.mubr.bf16.gmra.mxu0 %v936
    %v1143 = vpop.f32.mrf.mxu0
    %v1144 = vadd.f32 %v942, %v1143
    %v1145 = vpop.f32.mrf.mxu0
    %v1146 = vadd.f32 %v946, %v1145
    %v1147 = vpop.f32.mrf.mxu0
    %v1148 = vpop.f32.mrf.mxu0
    %1149 = vdwg.mxu0
    %v1150 = vadd.f32 %v1144, %v201
    %v1151 = vadd.f32 %v1146, %v557
    %1152 = vst [vmem:[#allocation23] sm:$0xff] %v1150
    %1153 = vst [vmem:[#allocation23 + $0x8] sm:$0xff] %v1151
    %s1154 = smul.u32 %s899, 10
    %s1155 = sshll.u32 %s1154, 4
    %1156 = dma.done %s160, %s1155
    %v1157 = vld [vmem:[#allocation3] sm:$0xff]
    %v1158 = vld [vmem:[#allocation3 + $0x8] sm:$0xff]
    %v1159 = vld [vmem:[#allocation3 + $0x10] sm:$0xff]
    %v1160 = vld [vmem:[#allocation3 + $0x18] sm:$0xff]
    %v1161 = vld [vmem:[#allocation3 + $0x20] sm:$0xff]
    %v1162 = vld [vmem:[#allocation3 + $0x28] sm:$0xff]
    %v1163 = vld [vmem:[#allocation3 + $0x30] sm:$0xff]
    %v1164 = vld [vmem:[#allocation3 + $0x38] sm:$0xff]
    %v1165 = vld [vmem:[#allocation3 + $0x40] sm:$0xff]
    %v1166 = vld [vmem:[#allocation3 + $0x48] sm:$0xff]
    %v1167 = vld [vmem:[#allocation3 + $0x50] sm:$0xff]
    %v1168 = vld [vmem:[#allocation3 + $0x58] sm:$0xff]
    %v1169 = vld [vmem:[#allocation3 + $0x60] sm:$0xff]
    %v1170 = vld [vmem:[#allocation3 + $0x68] sm:$0xff]
    %v1171 = vld [vmem:[#allocation3 + $0x70] sm:$0xff]
    %v1172 = vld [vmem:[#allocation3 + $0x78] sm:$0xff]
    %v1173 = vld [vmem:[#allocation3 + $0x80] sm:$0xff]
    %v1174 = vld [vmem:[#allocation3 + $0x88] sm:$0xff]
    %v1175 = vld [vmem:[#allocation3 + $0x90] sm:$0xff]
    %v1176 = vld [vmem:[#allocation3 + $0x98] sm:$0xff]
    %v1177 = vld [vmem:[#allocation3 + $0xa0] sm:$0xff]
    %v1178 = vld [vmem:[#allocation3 + $0xa8] sm:$0xff]
    %v1179 = vld [vmem:[#allocation3 + $0xb0] sm:$0xff]
    %v1180 = vld [vmem:[#allocation3 + $0xb8] sm:$0xff]
    %v1181 = vld [vmem:[#allocation3 + $0xc0] sm:$0xff]
    %v1182 = vld [vmem:[#allocation3 + $0xc8] sm:$0xff]
    %v1183 = vld [vmem:[#allocation3 + $0xd0] sm:$0xff]
    %v1184 = vld [vmem:[#allocation3 + $0xd8] sm:$0xff]
    %v1185 = vld [vmem:[#allocation3 + $0xe0] sm:$0xff]
    %v1186 = vld [vmem:[#allocation3 + $0xe8] sm:$0xff]
    %v1187 = vld [vmem:[#allocation3 + $0xf0] sm:$0xff]
    %v1188 = vld [vmem:[#allocation3 + $0xf8] sm:$0xff]
    %v1189 = vld [vmem:[#allocation3 + $0x100] sm:$0xff]
    %v1190 = vld [vmem:[#allocation3 + $0x108] sm:$0xff]
    %v1191 = vld [vmem:[#allocation3 + $0x110] sm:$0xff]
    %v1192 = vld [vmem:[#allocation3 + $0x118] sm:$0xff]
    %v1193 = vld [vmem:[#allocation3 + $0x120] sm:$0xff]
    %v1194 = vld [vmem:[#allocation3 + $0x128] sm:$0xff]
    %v1195 = vld [vmem:[#allocation3 + $0x130] sm:$0xff]
    %v1196 = vld [vmem:[#allocation3 + $0x138] sm:$0xff]
    %v1197 = vld [vmem:[#allocation3 + $0x140] sm:$0xff]
    %v1198 = vld [vmem:[#allocation3 + $0x148] sm:$0xff]
    %v1199 = vld [vmem:[#allocation3 + $0x150] sm:$0xff]
    %v1200 = vld [vmem:[#allocation3 + $0x158] sm:$0xff]
    %v1201 = vld [vmem:[#allocation3 + $0x160] sm:$0xff]
    %v1202 = vld [vmem:[#allocation3 + $0x168] sm:$0xff]
    %v1203 = vld [vmem:[#allocation3 + $0x170] sm:$0xff]
    %v1204 = vld [vmem:[#allocation3 + $0x178] sm:$0xff]
    %v1205 = vld [vmem:[#allocation3 + $0x180] sm:$0xff]
    %v1206 = vld [vmem:[#allocation3 + $0x188] sm:$0xff]
    %v1207 = vld [vmem:[#allocation3 + $0x190] sm:$0xff]
    %v1208 = vld [vmem:[#allocation3 + $0x198] sm:$0xff]
    %v1209 = vld [vmem:[#allocation3 + $0x1a0] sm:$0xff]
    %v1210 = vld [vmem:[#allocation3 + $0x1a8] sm:$0xff]
    %v1211 = vld [vmem:[#allocation3 + $0x1b0] sm:$0xff]
    %v1212 = vld [vmem:[#allocation3 + $0x1b8] sm:$0xff]
    %v1213 = vld [vmem:[#allocation3 + $0x1c0] sm:$0xff]
    %v1214 = vld [vmem:[#allocation3 + $0x1c8] sm:$0xff]
    %v1215 = vld [vmem:[#allocation3 + $0x1d0] sm:$0xff]
    %v1216 = vld [vmem:[#allocation3 + $0x1d8] sm:$0xff]
    %v1217 = vld [vmem:[#allocation3 + $0x1e0] sm:$0xff]
    %v1218 = vld [vmem:[#allocation3 + $0x1e8] sm:$0xff]
    %v1219 = vld [vmem:[#allocation3 + $0x1f0] sm:$0xff]
    %v1220 = vld [vmem:[#allocation3 + $0x1f8] sm:$0xff]
    %v1221 = vld [vmem:[#allocation3 + $0x200] sm:$0xff]
    %v1222 = vld [vmem:[#allocation3 + $0x208] sm:$0xff]
    %v1223 = vld [vmem:[#allocation3 + $0x210] sm:$0xff]
    %v1224 = vld [vmem:[#allocation3 + $0x218] sm:$0xff]
    %v1225 = vld [vmem:[#allocation3 + $0x220] sm:$0xff]
    %v1226 = vld [vmem:[#allocation3 + $0x228] sm:$0xff]
    %v1227 = vld [vmem:[#allocation3 + $0x230] sm:$0xff]
    %v1228 = vld [vmem:[#allocation3 + $0x238] sm:$0xff]
    %v1229 = vld [vmem:[#allocation3 + $0x240] sm:$0xff]
    %v1230 = vld [vmem:[#allocation3 + $0x248] sm:$0xff]
    %v1231 = vld [vmem:[#allocation3 + $0x250] sm:$0xff]
    %v1232 = vld [vmem:[#allocation3 + $0x258] sm:$0xff]
    %v1233 = vld [vmem:[#allocation3 + $0x260] sm:$0xff]
    %v1234 = vld [vmem:[#allocation3 + $0x268] sm:$0xff]
    %v1235 = vld [vmem:[#allocation3 + $0x270] sm:$0xff]
    %v1236 = vld [vmem:[#allocation3 + $0x278] sm:$0xff]
    %v1237 = vld [vmem:[#allocation3 + $0x280] sm:$0xff]
    %v1238 = vld [vmem:[#allocation3 + $0x288] sm:$0xff]
    %v1239 = vld [vmem:[#allocation3 + $0x290] sm:$0xff]
    %v1240 = vld [vmem:[#allocation3 + $0x298] sm:$0xff]
    %v1241 = vld [vmem:[#allocation3 + $0x2a0] sm:$0xff]
    %v1242 = vld [vmem:[#allocation3 + $0x2a8] sm:$0xff]
    %v1243 = vld [vmem:[#allocation3 + $0x2b0] sm:$0xff]
    %v1244 = vld [vmem:[#allocation3 + $0x2b8] sm:$0xff]
    %v1245 = vld [vmem:[#allocation3 + $0x2c0] sm:$0xff]
    %v1246 = vld [vmem:[#allocation3 + $0x2c8] sm:$0xff]
    %v1247 = vld [vmem:[#allocation3 + $0x2d0] sm:$0xff]
    %v1248 = vld [vmem:[#allocation3 + $0x2d8] sm:$0xff]
    %v1249 = vld [vmem:[#allocation3 + $0x2e0] sm:$0xff]
    %v1250 = vld [vmem:[#allocation3 + $0x2e8] sm:$0xff]
    %v1251 = vld [vmem:[#allocation3 + $0x2f0] sm:$0xff]
    %v1252 = vld [vmem:[#allocation3 + $0x2f8] sm:$0xff]
    %v1253 = vld [vmem:[#allocation3 + $0x300] sm:$0xff]
    %v1254 = vld [vmem:[#allocation3 + $0x308] sm:$0xff]
    %v1255 = vld [vmem:[#allocation3 + $0x310] sm:$0xff]
    %v1256 = vld [vmem:[#allocation3 + $0x318] sm:$0xff]
    %v1257 = vld [vmem:[#allocation3 + $0x320] sm:$0xff]
    %v1258 = vld [vmem:[#allocation3 + $0x328] sm:$0xff]
    %v1259 = vld [vmem:[#allocation3 + $0x330] sm:$0xff]
    %v1260 = vld [vmem:[#allocation3 + $0x338] sm:$0xff]
    %v1261 = vld [vmem:[#allocation3 + $0x340] sm:$0xff]
    %v1262 = vld [vmem:[#allocation3 + $0x348] sm:$0xff]
    %v1263 = vld [vmem:[#allocation3 + $0x350] sm:$0xff]
    %v1264 = vld [vmem:[#allocation3 + $0x358] sm:$0xff]
    %v1265 = vld [vmem:[#allocation3 + $0x360] sm:$0xff]
    %v1266 = vld [vmem:[#allocation3 + $0x368] sm:$0xff]
    %v1267 = vld [vmem:[#allocation3 + $0x370] sm:$0xff]
    %v1268 = vld [vmem:[#allocation3 + $0x378] sm:$0xff]
    %v1269 = vld [vmem:[#allocation3 + $0x380] sm:$0xff]
    %v1270 = vld [vmem:[#allocation3 + $0x388] sm:$0xff]
    %v1271 = vld [vmem:[#allocation3 + $0x390] sm:$0xff]
    %v1272 = vld [vmem:[#allocation3 + $0x398] sm:$0xff]
    %v1273 = vld [vmem:[#allocation3 + $0x3a0] sm:$0xff]
    %v1274 = vld [vmem:[#allocation3 + $0x3a8] sm:$0xff]
    %v1275 = vld [vmem:[#allocation3 + $0x3b0] sm:$0xff]
    %v1276 = vld [vmem:[#allocation3 + $0x3b8] sm:$0xff]
    %v1277 = vld [vmem:[#allocation3 + $0x3c0] sm:$0xff]
    %v1278 = vld [vmem:[#allocation3 + $0x3c8] sm:$0xff]
    %v1279 = vld [vmem:[#allocation3 + $0x3d0] sm:$0xff]
    %v1280 = vld [vmem:[#allocation3 + $0x3d8] sm:$0xff]
    %v1281 = vld [vmem:[#allocation3 + $0x3e0] sm:$0xff]
    %v1282 = vld [vmem:[#allocation3 + $0x3e8] sm:$0xff]
    %v1283 = vld [vmem:[#allocation3 + $0x3f0] sm:$0xff]
    %v1284 = vld [vmem:[#allocation3 + $0x3f8] sm:$0xff]
    %v1285 = vld [vmem:[#allocation3 + $0x400] sm:$0xff]
    %v1286 = vld [vmem:[#allocation3 + $0x408] sm:$0xff]
    %v1287 = vld [vmem:[#allocation3 + $0x410] sm:$0xff]
    %v1288 = vld [vmem:[#allocation3 + $0x418] sm:$0xff]
    %v1289 = vld [vmem:[#allocation3 + $0x420] sm:$0xff]
    %v1290 = vld [vmem:[#allocation3 + $0x428] sm:$0xff]
    %v1291 = vld [vmem:[#allocation3 + $0x430] sm:$0xff]
    %v1292 = vld [vmem:[#allocation3 + $0x438] sm:$0xff]
    %v1293 = vld [vmem:[#allocation3 + $0x440] sm:$0xff]
    %v1294 = vld [vmem:[#allocation3 + $0x448] sm:$0xff]
    %v1295 = vld [vmem:[#allocation3 + $0x450] sm:$0xff]
    %v1296 = vld [vmem:[#allocation3 + $0x458] sm:$0xff]
    %v1297 = vld [vmem:[#allocation3 + $0x460] sm:$0xff]
    %v1298 = vld [vmem:[#allocation3 + $0x468] sm:$0xff]
    %v1299 = vld [vmem:[#allocation3 + $0x470] sm:$0xff]
    %v1300 = vld [vmem:[#allocation3 + $0x478] sm:$0xff]
    %v1301 = vld [vmem:[#allocation3 + $0x480] sm:$0xff]
    %v1302 = vld [vmem:[#allocation3 + $0x488] sm:$0xff]
    %v1303 = vld [vmem:[#allocation3 + $0x490] sm:$0xff]
    %v1304 = vld [vmem:[#allocation3 + $0x498] sm:$0xff]
    %v1305 = vld [vmem:[#allocation3 + $0x4a0] sm:$0xff]
    %v1306 = vld [vmem:[#allocation3 + $0x4a8] sm:$0xff]
    %v1307 = vld [vmem:[#allocation3 + $0x4b0] sm:$0xff]
    %v1308 = vld [vmem:[#allocation3 + $0x4b8] sm:$0xff]
    %v1309 = vld [vmem:[#allocation3 + $0x4c0] sm:$0xff]
    %v1310 = vld [vmem:[#allocation3 + $0x4c8] sm:$0xff]
    %v1311 = vld [vmem:[#allocation3 + $0x4d0] sm:$0xff]
    %v1312 = vld [vmem:[#allocation3 + $0x4d8] sm:$0xff]
    %v1313 = vld [vmem:[#allocation3 + $0x4e0] sm:$0xff]
    %v1314 = vld [vmem:[#allocation3 + $0x4e8] sm:$0xff]
    %v1315 = vld [vmem:[#allocation3 + $0x4f0] sm:$0xff]
    %v1316 = vld [vmem:[#allocation3 + $0x4f8] sm:$0xff]
    %v1317 = vld [vmem:[%s9] sm:$0xff]
    %v1318 = vld [vmem:[%s9 + $0x8] sm:$0x3]
    %v1319 = vpack.c.bf16 %v1150, %v1150
    %v1320 = vpack.c.bf16 %v1151, %v1151
    %v1323 = vlaneseq
    %v1324 = vshrl.u32 %v1323, 7
    %v1325 = vsub.s32 0, %v1324
    %v1326 = vrot.slane %v1317, %v1325
    %v1327 = vlaneseq
    %v1328 = vshrl.u32 %v1327, 7
    %v1329 = vsub.s32 1, %v1328
    %v1330 = vrot.slane %v1317, %v1329
    %v1331 = vlaneseq
    %v1332 = vshrl.u32 %v1331, 7
    %v1333 = vsub.s32 2, %v1332
    %v1334 = vrot.slane %v1317, %v1333
    %v1335 = vlaneseq
    %v1336 = vshrl.u32 %v1335, 7
    %v1337 = vsub.s32 3, %v1336
    %v1338 = vrot.slane %v1317, %v1337
    %v1339 = vlaneseq
    %v1340 = vshrl.u32 %v1339, 7
    %v1341 = vsub.s32 4, %v1340
    %v1342 = vrot.slane %v1317, %v1341
    %v1343 = vlaneseq
    %v1344 = vshrl.u32 %v1343, 7
    %v1345 = vsub.s32 5, %v1344
    %v1346 = vrot.slane %v1317, %v1345
    %v1347 = vlaneseq
    %v1348 = vshrl.u32 %v1347, 7
    %v1349 = vsub.s32 6, %v1348
    %v1350 = vrot.slane %v1317, %v1349
    %v1351 = vlaneseq
    %v1352 = vshrl.u32 %v1351, 7
    %v1353 = vsub.s32 7, %v1352
    %v1354 = vrot.slane %v1317, %v1353
    %v1355 = vlaneseq
    %v1356 = vshrl.u32 %v1355, 7
    %v1357 = vsub.s32 0, %v1356
    %v1358 = vrot.slane %v1318, %v1357
    %v1359 = vlaneseq
    %v1360 = vshrl.u32 %v1359, 7
    %v1361 = vsub.s32 1, %v1360
    %v1362 = vrot.slane %v1318, %v1361
    %v1533 = vunpack.c.l.b16 %v1157
    %v1534 = vunpack.c.h.b16 %v1157
    %v1535 = vunpack.c.l.b16 %v1158
    %v1536 = vunpack.c.h.b16 %v1158
    %v1537 = vunpack.c.l.b16 %v1159
    %v1538 = vunpack.c.h.b16 %v1159
    %v1539 = vunpack.c.l.b16 %v1160
    %v1540 = vunpack.c.h.b16 %v1160
    %v1541 = vunpack.c.l.b16 %v1161
    %v1542 = vunpack.c.h.b16 %v1161
    %v1543 = vunpack.c.l.b16 %v1162
    %v1544 = vunpack.c.h.b16 %v1162
    %v1545 = vunpack.c.l.b16 %v1163
    %v1546 = vunpack.c.h.b16 %v1163
    %v1547 = vunpack.c.l.b16 %v1164
    %v1548 = vunpack.c.h.b16 %v1164
    %v1549 = vunpack.c.l.b16 %v1165
    %v1550 = vunpack.c.h.b16 %v1165
    %v1551 = vunpack.c.l.b16 %v1166
    %v1552 = vunpack.c.h.b16 %v1166
    %v1553 = vunpack.c.l.b16 %v1167
    %v1554 = vunpack.c.h.b16 %v1167
    %v1555 = vunpack.c.l.b16 %v1168
    %v1556 = vunpack.c.h.b16 %v1168
    %v1557 = vunpack.c.l.b16 %v1169
    %v1558 = vunpack.c.h.b16 %v1169
    %v1559 = vunpack.c.l.b16 %v1170
    %v1560 = vunpack.c.h.b16 %v1170
    %v1561 = vunpack.c.l.b16 %v1171
    %v1562 = vunpack.c.h.b16 %v1171
    %v1563 = vunpack.c.l.b16 %v1172
    %v1564 = vunpack.c.h.b16 %v1172
    %v1565 = vunpack.c.l.b16 %v1173
    %v1566 = vunpack.c.h.b16 %v1173
    %v1567 = vunpack.c.l.b16 %v1174
    %v1568 = vunpack.c.h.b16 %v1174
    %v1569 = vunpack.c.l.b16 %v1175
    %v1570 = vunpack.c.h.b16 %v1175
    %v1571 = vunpack.c.l.b16 %v1176
    %v1572 = vunpack.c.h.b16 %v1176
    %v1573 = vunpack.c.l.b16 %v1177
    %v1574 = vunpack.c.h.b16 %v1177
    %v1575 = vunpack.c.l.b16 %v1178
    %v1576 = vunpack.c.h.b16 %v1178
    %v1577 = vunpack.c.l.b16 %v1179
    %v1578 = vunpack.c.h.b16 %v1179
    %v1579 = vunpack.c.l.b16 %v1180
    %v1580 = vunpack.c.h.b16 %v1180
    %v1581 = vunpack.c.l.b16 %v1181
    %v1582 = vunpack.c.h.b16 %v1181
    %v1583 = vunpack.c.l.b16 %v1182
    %v1584 = vunpack.c.h.b16 %v1182
    %v1585 = vunpack.c.l.b16 %v1183
    %v1586 = vunpack.c.h.b16 %v1183
    %v1587 = vunpack.c.l.b16 %v1184
    %v1588 = vunpack.c.h.b16 %v1184
    %v1589 = vunpack.c.l.b16 %v1185
    %v1590 = vunpack.c.h.b16 %v1185
    %v1591 = vunpack.c.l.b16 %v1186
    %v1592 = vunpack.c.h.b16 %v1186
    %v1593 = vunpack.c.l.b16 %v1187
    %v1594 = vunpack.c.h.b16 %v1187
    %v1595 = vunpack.c.l.b16 %v1188
    %v1596 = vunpack.c.h.b16 %v1188
    %v1597 = vunpack.c.l.b16 %v1189
    %v1598 = vunpack.c.h.b16 %v1189
    %v1599 = vunpack.c.l.b16 %v1190
    %v1600 = vunpack.c.h.b16 %v1190
    %v1601 = vunpack.c.l.b16 %v1191
    %v1602 = vunpack.c.h.b16 %v1191
    %v1603 = vunpack.c.l.b16 %v1192
    %v1604 = vunpack.c.h.b16 %v1192
    %v1605 = vunpack.c.l.b16 %v1193
    %v1606 = vunpack.c.h.b16 %v1193
    %v1607 = vunpack.c.l.b16 %v1194
    %v1608 = vunpack.c.h.b16 %v1194
    %v1609 = vunpack.c.l.b16 %v1195
    %v1610 = vunpack.c.h.b16 %v1195
    %v1611 = vunpack.c.l.b16 %v1196
    %v1612 = vunpack.c.h.b16 %v1196
    %v1613 = vunpack.c.l.b16 %v1197
    %v1614 = vunpack.c.h.b16 %v1197
    %v1615 = vunpack.c.l.b16 %v1198
    %v1616 = vunpack.c.h.b16 %v1198
    %v1617 = vunpack.c.l.b16 %v1199
    %v1618 = vunpack.c.h.b16 %v1199
    %v1619 = vunpack.c.l.b16 %v1200
    %v1620 = vunpack.c.h.b16 %v1200
    %v1621 = vunpack.c.l.b16 %v1201
    %v1622 = vunpack.c.h.b16 %v1201
    %v1623 = vunpack.c.l.b16 %v1202
    %v1624 = vunpack.c.h.b16 %v1202
    %v1625 = vunpack.c.l.b16 %v1203
    %v1626 = vunpack.c.h.b16 %v1203
    %v1627 = vunpack.c.l.b16 %v1204
    %v1628 = vunpack.c.h.b16 %v1204
    %v1629 = vunpack.c.l.b16 %v1205
    %v1630 = vunpack.c.h.b16 %v1205
    %v1631 = vunpack.c.l.b16 %v1206
    %v1632 = vunpack.c.h.b16 %v1206
    %v1633 = vunpack.c.l.b16 %v1207
    %v1634 = vunpack.c.h.b16 %v1207
    %v1635 = vunpack.c.l.b16 %v1208
    %v1636 = vunpack.c.h.b16 %v1208
    %v1637 = vunpack.c.l.b16 %v1209
    %v1638 = vunpack.c.h.b16 %v1209
    %v1639 = vunpack.c.l.b16 %v1210
    %v1640 = vunpack.c.h.b16 %v1210
    %v1641 = vunpack.c.l.b16 %v1211
    %v1642 = vunpack.c.h.b16 %v1211
    %v1643 = vunpack.c.l.b16 %v1212
    %v1644 = vunpack.c.h.b16 %v1212
    %v1645 = vunpack.c.l.b16 %v1213
    %v1646 = vunpack.c.h.b16 %v1213
    %v1647 = vunpack.c.l.b16 %v1214
    %v1648 = vunpack.c.h.b16 %v1214
    %v1649 = vunpack.c.l.b16 %v1215
    %v1650 = vunpack.c.h.b16 %v1215
    %v1651 = vunpack.c.l.b16 %v1216
    %v1652 = vunpack.c.h.b16 %v1216
    %v1653 = vunpack.c.l.b16 %v1217
    %v1654 = vunpack.c.h.b16 %v1217
    %v1655 = vunpack.c.l.b16 %v1218
    %v1656 = vunpack.c.h.b16 %v1218
    %v1657 = vunpack.c.l.b16 %v1219
    %v1658 = vunpack.c.h.b16 %v1219
    %v1659 = vunpack.c.l.b16 %v1220
    %v1660 = vunpack.c.h.b16 %v1220
    %v1661 = vunpack.c.l.b16 %v1221
    %v1662 = vunpack.c.h.b16 %v1221
    %v1663 = vunpack.c.l.b16 %v1222
    %v1664 = vunpack.c.h.b16 %v1222
    %v1665 = vunpack.c.l.b16 %v1223
    %v1666 = vunpack.c.h.b16 %v1223
    %v1667 = vunpack.c.l.b16 %v1224
    %v1668 = vunpack.c.h.b16 %v1224
    %v1669 = vunpack.c.l.b16 %v1225
    %v1670 = vunpack.c.h.b16 %v1225
    %v1671 = vunpack.c.l.b16 %v1226
    %v1672 = vunpack.c.h.b16 %v1226
    %v1673 = vunpack.c.l.b16 %v1227
    %v1674 = vunpack.c.h.b16 %v1227
    %v1675 = vunpack.c.l.b16 %v1228
    %v1676 = vunpack.c.h.b16 %v1228
    %v1677 = vunpack.c.l.b16 %v1229
    %v1678 = vunpack.c.h.b16 %v1229
    %v1679 = vunpack.c.l.b16 %v1230
    %v1680 = vunpack.c.h.b16 %v1230
    %v1681 = vunpack.c.l.b16 %v1231
    %v1682 = vunpack.c.h.b16 %v1231
    %v1683 = vunpack.c.l.b16 %v1232
    %v1684 = vunpack.c.h.b16 %v1232
    %v1685 = vunpack.c.l.b16 %v1233
    %v1686 = vunpack.c.h.b16 %v1233
    %v1687 = vunpack.c.l.b16 %v1234
    %v1688 = vunpack.c.h.b16 %v1234
    %v1689 = vunpack.c.l.b16 %v1235
    %v1690 = vunpack.c.h.b16 %v1235
    %v1691 = vunpack.c.l.b16 %v1236
    %v1692 = vunpack.c.h.b16 %v1236
    %v1693 = vunpack.c.l.b16 %v1237
    %v1694 = vunpack.c.h.b16 %v1237
    %v1695 = vunpack.c.l.b16 %v1238
    %v1696 = vunpack.c.h.b16 %v1238
    %v1697 = vunpack.c.l.b16 %v1239
    %v1698 = vunpack.c.h.b16 %v1239
    %v1699 = vunpack.c.l.b16 %v1240
    %v1700 = vunpack.c.h.b16 %v1240
    %v1701 = vunpack.c.l.b16 %v1241
    %v1702 = vunpack.c.h.b16 %v1241
    %v1703 = vunpack.c.l.b16 %v1242
    %v1704 = vunpack.c.h.b16 %v1242
    %v1705 = vunpack.c.l.b16 %v1243
    %v1706 = vunpack.c.h.b16 %v1243
    %v1707 = vunpack.c.l.b16 %v1244
    %v1708 = vunpack.c.h.b16 %v1244
    %v1709 = vunpack.c.l.b16 %v1245
    %v1710 = vunpack.c.h.b16 %v1245
    %v1711 = vunpack.c.l.b16 %v1246
    %v1712 = vunpack.c.h.b16 %v1246
    %v1713 = vunpack.c.l.b16 %v1247
    %v1714 = vunpack.c.h.b16 %v1247
    %v1715 = vunpack.c.l.b16 %v1248
    %v1716 = vunpack.c.h.b16 %v1248
    %v1717 = vunpack.c.l.b16 %v1249
    %v1718 = vunpack.c.h.b16 %v1249
    %v1719 = vunpack.c.l.b16 %v1250
    %v1720 = vunpack.c.h.b16 %v1250
    %v1721 = vunpack.c.l.b16 %v1251
    %v1722 = vunpack.c.h.b16 %v1251
    %v1723 = vunpack.c.l.b16 %v1252
    %v1724 = vunpack.c.h.b16 %v1252
    %v1725 = vunpack.c.l.b16 %v1253
    %v1726 = vunpack.c.h.b16 %v1253
    %v1727 = vunpack.c.l.b16 %v1254
    %v1728 = vunpack.c.h.b16 %v1254
    %v1729 = vunpack.c.l.b16 %v1255
    %v1730 = vunpack.c.h.b16 %v1255
    %v1731 = vunpack.c.l.b16 %v1256
    %v1732 = vunpack.c.h.b16 %v1256
    %v1733 = vunpack.c.l.b16 %v1257
    %v1734 = vunpack.c.h.b16 %v1257
    %v1735 = vunpack.c.l.b16 %v1258
    %v1736 = vunpack.c.h.b16 %v1258
    %v1737 = vunpack.c.l.b16 %v1259
    %v1738 = vunpack.c.h.b16 %v1259
    %v1739 = vunpack.c.l.b16 %v1260
    %v1740 = vunpack.c.h.b16 %v1260
    %v1741 = vunpack.c.l.b16 %v1261
    %v1742 = vunpack.c.h.b16 %v1261
    %v1743 = vunpack.c.l.b16 %v1262
    %v1744 = vunpack.c.h.b16 %v1262
    %v1745 = vunpack.c.l.b16 %v1263
    %v1746 = vunpack.c.h.b16 %v1263
    %v1747 = vunpack.c.l.b16 %v1264
    %v1748 = vunpack.c.h.b16 %v1264
    %v1749 = vunpack.c.l.b16 %v1265
    %v1750 = vunpack.c.h.b16 %v1265
    %v1751 = vunpack.c.l.b16 %v1266
    %v1752 = vunpack.c.h.b16 %v1266
    %v1753 = vunpack.c.l.b16 %v1267
    %v1754 = vunpack.c.h.b16 %v1267
    %v1755 = vunpack.c.l.b16 %v1268
    %v1756 = vunpack.c.h.b16 %v1268
    %v1757 = vunpack.c.l.b16 %v1269
    %v1758 = vunpack.c.h.b16 %v1269
    %v1759 = vunpack.c.l.b16 %v1270
    %v1760 = vunpack.c.h.b16 %v1270
    %v1761 = vunpack.c.l.b16 %v1271
    %v1762 = vunpack.c.h.b16 %v1271
    %v1763 = vunpack.c.l.b16 %v1272
    %v1764 = vunpack.c.h.b16 %v1272
    %v1765 = vunpack.c.l.b16 %v1273
    %v1766 = vunpack.c.h.b16 %v1273
    %v1767 = vunpack.c.l.b16 %v1274
    %v1768 = vunpack.c.h.b16 %v1274
    %v1769 = vunpack.c.l.b16 %v1275
    %v1770 = vunpack.c.h.b16 %v1275
    %v1771 = vunpack.c.l.b16 %v1276
    %v1772 = vunpack.c.h.b16 %v1276
    %v1773 = vunpack.c.l.b16 %v1277
    %v1774 = vunpack.c.h.b16 %v1277
    %v1775 = vunpack.c.l.b16 %v1278
    %v1776 = vunpack.c.h.b16 %v1278
    %v1777 = vunpack.c.l.b16 %v1279
    %v1778 = vunpack.c.h.b16 %v1279
    %v1779 = vunpack.c.l.b16 %v1280
    %v1780 = vunpack.c.h.b16 %v1280
    %v1781 = vunpack.c.l.b16 %v1281
    %v1782 = vunpack.c.h.b16 %v1281
    %v1783 = vunpack.c.l.b16 %v1282
    %v1784 = vunpack.c.h.b16 %v1282
    %v1785 = vunpack.c.l.b16 %v1283
    %v1786 = vunpack.c.h.b16 %v1283
    %v1787 = vunpack.c.l.b16 %v1284
    %v1788 = vunpack.c.h.b16 %v1284
    %v1789 = vunpack.c.l.b16 %v1285
    %v1790 = vunpack.c.h.b16 %v1285
    %v1791 = vunpack.c.l.b16 %v1286
    %v1792 = vunpack.c.h.b16 %v1286
    %v1793 = vunpack.c.l.b16 %v1287
    %v1794 = vunpack.c.h.b16 %v1287
    %v1795 = vunpack.c.l.b16 %v1288
    %v1796 = vunpack.c.h.b16 %v1288
    %v1797 = vunpack.c.l.b16 %v1289
    %v1798 = vunpack.c.h.b16 %v1289
    %v1799 = vunpack.c.l.b16 %v1290
    %v1800 = vunpack.c.h.b16 %v1290
    %v1801 = vunpack.c.l.b16 %v1291
    %v1802 = vunpack.c.h.b16 %v1291
    %v1803 = vunpack.c.l.b16 %v1292
    %v1804 = vunpack.c.h.b16 %v1292
    %v1805 = vunpack.c.l.b16 %v1293
    %v1806 = vunpack.c.h.b16 %v1293
    %v1807 = vunpack.c.l.b16 %v1294
    %v1808 = vunpack.c.h.b16 %v1294
    %v1809 = vunpack.c.l.b16 %v1295
    %v1810 = vunpack.c.h.b16 %v1295
    %v1811 = vunpack.c.l.b16 %v1296
    %v1812 = vunpack.c.h.b16 %v1296
    %v1813 = vunpack.c.l.b16 %v1297
    %v1814 = vunpack.c.h.b16 %v1297
    %v1815 = vunpack.c.l.b16 %v1298
    %v1816 = vunpack.c.h.b16 %v1298
    %v1817 = vunpack.c.l.b16 %v1299
    %v1818 = vunpack.c.h.b16 %v1299
    %v1819 = vunpack.c.l.b16 %v1300
    %v1820 = vunpack.c.h.b16 %v1300
    %v1821 = vunpack.c.l.b16 %v1301
    %v1822 = vunpack.c.h.b16 %v1301
    %v1823 = vunpack.c.l.b16 %v1302
    %v1824 = vunpack.c.h.b16 %v1302
    %v1825 = vunpack.c.l.b16 %v1303
    %v1826 = vunpack.c.h.b16 %v1303
    %v1827 = vunpack.c.l.b16 %v1304
    %v1828 = vunpack.c.h.b16 %v1304
    %v1829 = vunpack.c.l.b16 %v1305
    %v1830 = vunpack.c.h.b16 %v1305
    %v1831 = vunpack.c.l.b16 %v1306
    %v1832 = vunpack.c.h.b16 %v1306
    %v1833 = vunpack.c.l.b16 %v1307
    %v1834 = vunpack.c.h.b16 %v1307
    %v1835 = vunpack.c.l.b16 %v1308
    %v1836 = vunpack.c.h.b16 %v1308
    %v1837 = vunpack.c.l.b16 %v1309
    %v1838 = vunpack.c.h.b16 %v1309
    %v1839 = vunpack.c.l.b16 %v1310
    %v1840 = vunpack.c.h.b16 %v1310
    %v1841 = vunpack.c.l.b16 %v1311
    %v1842 = vunpack.c.h.b16 %v1311
    %v1843 = vunpack.c.l.b16 %v1312
    %v1844 = vunpack.c.h.b16 %v1312
    %v1845 = vunpack.c.l.b16 %v1313
    %v1846 = vunpack.c.h.b16 %v1313
    %v1847 = vunpack.c.l.b16 %v1314
    %v1848 = vunpack.c.h.b16 %v1314
    %v1849 = vunpack.c.l.b16 %v1315
    %v1850 = vunpack.c.h.b16 %v1315
    %v1851 = vunpack.c.l.b16 %v1316
    %v1852 = vunpack.c.h.b16 %v1316
    %v1853 = vpack.c.b16 %v1543, %v1533
    %v1854 = vpack.c.b16 %v1544, %v1534
    %v1855 = vpack.c.b16 %v1545, %v1535
    %v1856 = vpack.c.b16 %v1546, %v1536
    %v1857 = vpack.c.b16 %v1547, %v1537
    %v1858 = vpack.c.b16 %v1548, %v1538
    %v1859 = vpack.c.b16 %v1549, %v1539
    %v1860 = vpack.c.b16 %v1550, %v1540
    %v1861 = vpack.c.b16 %v1551, %v1541
    %v1862 = vpack.c.b16 %v1552, %v1542
    %v1863 = vpack.c.b16 %v1563, %v1553
    %v1864 = vpack.c.b16 %v1564, %v1554
    %v1865 = vpack.c.b16 %v1565, %v1555
    %v1866 = vpack.c.b16 %v1566, %v1556
    %v1867 = vpack.c.b16 %v1567, %v1557
    %v1868 = vpack.c.b16 %v1568, %v1558
    %v1869 = vpack.c.b16 %v1569, %v1559
    %v1870 = vpack.c.b16 %v1570, %v1560
    %v1871 = vpack.c.b16 %v1571, %v1561
    %v1872 = vpack.c.b16 %v1572, %v1562
    %v1873 = vpack.c.b16 %v1583, %v1573
    %v1874 = vpack.c.b16 %v1584, %v1574
    %v1875 = vpack.c.b16 %v1585, %v1575
    %v1876 = vpack.c.b16 %v1586, %v1576
    %v1877 = vpack.c.b16 %v1587, %v1577
    %v1878 = vpack.c.b16 %v1588, %v1578
    %v1879 = vpack.c.b16 %v1589, %v1579
    %v1880 = vpack.c.b16 %v1590, %v1580
    %v1881 = vpack.c.b16 %v1591, %v1581
    %v1882 = vpack.c.b16 %v1592, %v1582
    %v1883 = vpack.c.b16 %v1603, %v1593
    %v1884 = vpack.c.b16 %v1604, %v1594
    %v1885 = vpack.c.b16 %v1605, %v1595
    %v1886 = vpack.c.b16 %v1606, %v1596
    %v1887 = vpack.c.b16 %v1607, %v1597
    %v1888 = vpack.c.b16 %v1608, %v1598
    %v1889 = vpack.c.b16 %v1609, %v1599
    %v1890 = vpack.c.b16 %v1610, %v1600
    %v1891 = vpack.c.b16 %v1611, %v1601
    %v1892 = vpack.c.b16 %v1612, %v1602
    %v1893 = vpack.c.b16 %v1623, %v1613
    %v1894 = vpack.c.b16 %v1624, %v1614
    %v1895 = vpack.c.b16 %v1625, %v1615
    %v1896 = vpack.c.b16 %v1626, %v1616
    %v1897 = vpack.c.b16 %v1627, %v1617
    %v1898 = vpack.c.b16 %v1628, %v1618
    %v1899 = vpack.c.b16 %v1629, %v1619
    %v1900 = vpack.c.b16 %v1630, %v1620
    %v1901 = vpack.c.b16 %v1631, %v1621
    %v1902 = vpack.c.b16 %v1632, %v1622
    %v1903 = vpack.c.b16 %v1643, %v1633
    %v1904 = vpack.c.b16 %v1644, %v1634
    %v1905 = vpack.c.b16 %v1645, %v1635
    %v1906 = vpack.c.b16 %v1646, %v1636
    %v1907 = vpack.c.b16 %v1647, %v1637
    %v1908 = vpack.c.b16 %v1648, %v1638
    %v1909 = vpack.c.b16 %v1649, %v1639
    %v1910 = vpack.c.b16 %v1650, %v1640
    %v1911 = vpack.c.b16 %v1651, %v1641
    %v1912 = vpack.c.b16 %v1652, %v1642
    %v1913 = vpack.c.b16 %v1663, %v1653
    %v1914 = vpack.c.b16 %v1664, %v1654
    %v1915 = vpack.c.b16 %v1665, %v1655
    %v1916 = vpack.c.b16 %v1666, %v1656
    %v1917 = vpack.c.b16 %v1667, %v1657
    %v1918 = vpack.c.b16 %v1668, %v1658
    %v1919 = vpack.c.b16 %v1669, %v1659
    %v1920 = vpack.c.b16 %v1670, %v1660
    %v1921 = vpack.c.b16 %v1671, %v1661
    %v1922 = vpack.c.b16 %v1672, %v1662
    %v1923 = vpack.c.b16 %v1683, %v1673
    %v1924 = vpack.c.b16 %v1684, %v1674
    %v1925 = vpack.c.b16 %v1685, %v1675
    %v1926 = vpack.c.b16 %v1686, %v1676
    %v1927 = vpack.c.b16 %v1687, %v1677
    %v1928 = vpack.c.b16 %v1688, %v1678
    %v1929 = vpack.c.b16 %v1689, %v1679
    %v1930 = vpack.c.b16 %v1690, %v1680
    %v1931 = vpack.c.b16 %v1691, %v1681
    %v1932 = vpack.c.b16 %v1692, %v1682
    %v1933 = vpack.c.b16 %v1703, %v1693
    %v1934 = vpack.c.b16 %v1704, %v1694
    %v1935 = vpack.c.b16 %v1705, %v1695
    %v1936 = vpack.c.b16 %v1706, %v1696
    %v1937 = vpack.c.b16 %v1707, %v1697
    %v1938 = vpack.c.b16 %v1708, %v1698
    %v1939 = vpack.c.b16 %v1709, %v1699
    %v1940 = vpack.c.b16 %v1710, %v1700
    %v1941 = vpack.c.b16 %v1711, %v1701
    %v1942 = vpack.c.b16 %v1712, %v1702
    %v1943 = vpack.c.b16 %v1723, %v1713
    %v1944 = vpack.c.b16 %v1724, %v1714
    %v1945 = vpack.c.b16 %v1725, %v1715
    %v1946 = vpack.c.b16 %v1726, %v1716
    %v1947 = vpack.c.b16 %v1727, %v1717
    %v1948 = vpack.c.b16 %v1728, %v1718
    %v1949 = vpack.c.b16 %v1729, %v1719
    %v1950 = vpack.c.b16 %v1730, %v1720
    %v1951 = vpack.c.b16 %v1731, %v1721
    %v1952 = vpack.c.b16 %v1732, %v1722
    %v1953 = vpack.c.b16 %v1743, %v1733
    %v1954 = vpack.c.b16 %v1744, %v1734
    %v1955 = vpack.c.b16 %v1745, %v1735
    %v1956 = vpack.c.b16 %v1746, %v1736
    %v1957 = vpack.c.b16 %v1747, %v1737
    %v1958 = vpack.c.b16 %v1748, %v1738
    %v1959 = vpack.c.b16 %v1749, %v1739
    %v1960 = vpack.c.b16 %v1750, %v1740
    %v1961 = vpack.c.b16 %v1751, %v1741
    %v1962 = vpack.c.b16 %v1752, %v1742
    %v1963 = vpack.c.b16 %v1763, %v1753
    %v1964 = vpack.c.b16 %v1764, %v1754
    %v1965 = vpack.c.b16 %v1765, %v1755
    %v1966 = vpack.c.b16 %v1766, %v1756
    %v1967 = vpack.c.b16 %v1767, %v1757
    %v1968 = vpack.c.b16 %v1768, %v1758
    %v1969 = vpack.c.b16 %v1769, %v1759
    %v1970 = vpack.c.b16 %v1770, %v1760
    %v1971 = vpack.c.b16 %v1771, %v1761
    %v1972 = vpack.c.b16 %v1772, %v1762
    %v1973 = vpack.c.b16 %v1783, %v1773
    %v1974 = vpack.c.b16 %v1784, %v1774
    %v1975 = vpack.c.b16 %v1785, %v1775
    %v1976 = vpack.c.b16 %v1786, %v1776
    %v1977 = vpack.c.b16 %v1787, %v1777
    %v1978 = vpack.c.b16 %v1788, %v1778
    %v1979 = vpack.c.b16 %v1789, %v1779
    %v1980 = vpack.c.b16 %v1790, %v1780
    %v1981 = vpack.c.b16 %v1791, %v1781
    %v1982 = vpack.c.b16 %v1792, %v1782
    %v1983 = vpack.c.b16 %v1803, %v1793
    %v1984 = vpack.c.b16 %v1804, %v1794
    %v1985 = vpack.c.b16 %v1805, %v1795
    %v1986 = vpack.c.b16 %v1806, %v1796
    %v1987 = vpack.c.b16 %v1807, %v1797
    %v1988 = vpack.c.b16 %v1808, %v1798
    %v1989 = vpack.c.b16 %v1809, %v1799
    %v1990 = vpack.c.b16 %v1810, %v1800
    %v1991 = vpack.c.b16 %v1811, %v1801
    %v1992 = vpack.c.b16 %v1812, %v1802
    %v1993 = vpack.c.b16 %v1823, %v1813
    %v1994 = vpack.c.b16 %v1824, %v1814
    %v1995 = vpack.c.b16 %v1825, %v1815
    %v1996 = vpack.c.b16 %v1826, %v1816
    %v1997 = vpack.c.b16 %v1827, %v1817
    %v1998 = vpack.c.b16 %v1828, %v1818
    %v1999 = vpack.c.b16 %v1829, %v1819
    %v2000 = vpack.c.b16 %v1830, %v1820
    %v2001 = vpack.c.b16 %v1831, %v1821
    %v2002 = vpack.c.b16 %v1832, %v1822
    %v2003 = vpack.c.b16 %v1843, %v1833
    %v2004 = vpack.c.b16 %v1844, %v1834
    %v2005 = vpack.c.b16 %v1845, %v1835
    %v2006 = vpack.c.b16 %v1846, %v1836
    %v2007 = vpack.c.b16 %v1847, %v1837
    %v2008 = vpack.c.b16 %v1848, %v1838
    %v2009 = vpack.c.b16 %v1849, %v1839
    %v2010 = vpack.c.b16 %v1850, %v1840
    %v2011 = vpack.c.b16 %v1851, %v1841
    %v2012 = vpack.c.b16 %v1852, %v1842
    %2173 = vmatprep.subr.bf16.mxu0 %v1924
    %2174 = vmatpush1.bf16.msra.mxu0 %v1923
    %2175 = vmatprep.subr.bf16.mxu0 %v1914
    %2176 = vmatpush1.bf16.msra.mxu0 %v1913
    %2177 = vmatprep.subr.bf16.mxu0 %v1904
    %2178 = vmatpush1.bf16.msra.mxu0 %v1903
    %2179 = vmatprep.subr.bf16.mxu0 %v1894
    %2180 = vmatpush1.bf16.msra.mxu0 %v1893
    %2181 = vmatprep.subr.bf16.mxu0 %v1884
    %2182 = vmatpush1.bf16.msra.mxu0 %v1883
    %2183 = vmatprep.subr.bf16.mxu0 %v1874
    %2184 = vmatpush1.bf16.msra.mxu0 %v1873
    %2185 = vmatprep.subr.bf16.mxu0 %v1864
    %2186 = vmatpush1.bf16.msra.mxu0 %v1863
    %2187 = vmatprep.subr.bf16.mxu0 %v1854
    %2188 = vmatpush1.bf16.msra.mxu0 %v1853
    %2189 = vmatprep.subr.bf16.mxu0 %v2004
    %2190 = vmatpush2.bf16.msra.mxu0 %v2003
    %2191 = vmatprep.subr.bf16.mxu0 %v1994
    %2192 = vmatpush2.bf16.msra.mxu0 %v1993
    %2193 = vmatprep.subr.bf16.mxu0 %v1984
    %2194 = vmatpush2.bf16.msra.mxu0 %v1983
    %2195 = vmatprep.subr.bf16.mxu0 %v1974
    %2196 = vmatpush2.bf16.msra.mxu0 %v1973
    %2197 = vmatprep.subr.bf16.mxu0 %v1964
    %2198 = vmatpush2.bf16.msra.mxu0 %v1963
    %2199 = vmatprep.subr.bf16.mxu0 %v1954
    %2200 = vmatpush2.bf16.msra.mxu0 %v1953
    %2201 = vmatprep.subr.bf16.mxu0 %v1944
    %2202 = vmatpush2.bf16.msra.mxu0 %v1943
    %2203 = vmatprep.subr.bf16.mxu0 %v1934
    %2204 = vmatpush2.bf16.msra.mxu0 %v1933
    %2205 = vmatprep.mubr.bf16.mxu0 %v1320
    %2206 = vmatmul.mubr.bf16.gmra.mxu0 %v1319
    %v2207 = vpop.f32.mrf.mxu0
    %v2208 = vadd.f32 %v1326, %v2207
    %v2209 = vpop.f32.mrf.mxu0
    %v2210 = vadd.f32 %v1330, %v2209
    %v2211 = vpop.f32.mrf.mxu0
    %v2212 = vpop.f32.mrf.mxu0
    %2213 = vdwg.mxu0
    %2214 = vmatprep.subr.bf16.mxu0 %v1926
    %2215 = vmatpush1.bf16.msra.mxu0 %v1925
    %2216 = vmatprep.subr.bf16.mxu0 %v1916
    %2217 = vmatpush1.bf16.msra.mxu0 %v1915
    %2218 = vmatprep.subr.bf16.mxu0 %v1906
    %2219 = vmatpush1.bf16.msra.mxu0 %v1905
    %2220 = vmatprep.subr.bf16.mxu0 %v1896
    %2221 = vmatpush1.bf16.msra.mxu0 %v1895
    %2222 = vmatprep.subr.bf16.mxu0 %v1886
    %2223 = vmatpush1.bf16.msra.mxu0 %v1885
    %2224 = vmatprep.subr.bf16.mxu0 %v1876
    %2225 = vmatpush1.bf16.msra.mxu0 %v1875
    %2226 = vmatprep.subr.bf16.mxu0 %v1866
    %2227 = vmatpush1.bf16.msra.mxu0 %v1865
    %2228 = vmatprep.subr.bf16.mxu0 %v1856
    %2229 = vmatpush1.bf16.msra.mxu0 %v1855
    %2230 = vmatprep.subr.bf16.mxu0 %v2006
    %2231 = vmatpush2.bf16.msra.mxu0 %v2005
    %2232 = vmatprep.subr.bf16.mxu0 %v1996
    %2233 = vmatpush2.bf16.msra.mxu0 %v1995
    %2234 = vmatprep.subr.bf16.mxu0 %v1986
    %2235 = vmatpush2.bf16.msra.mxu0 %v1985
    %2236 = vmatprep.subr.bf16.mxu0 %v1976
    %2237 = vmatpush2.bf16.msra.mxu0 %v1975
    %2238 = vmatprep.subr.bf16.mxu0 %v1966
    %2239 = vmatpush2.bf16.msra.mxu0 %v1965
    %2240 = vmatprep.subr.bf16.mxu0 %v1956
    %2241 = vmatpush2.bf16.msra.mxu0 %v1955
    %2242 = vmatprep.subr.bf16.mxu0 %v1946
    %2243 = vmatpush2.bf16.msra.mxu0 %v1945
    %2244 = vmatprep.subr.bf16.mxu0 %v1936
    %2245 = vmatpush2.bf16.msra.mxu0 %v1935
    %2246 = vmatprep.mubr.bf16.mxu0 %v1320
    %2247 = vmatmul.mubr.bf16.gmra.mxu0 %v1319
    %v2248 = vpop.f32.mrf.mxu0
    %v2249 = vadd.f32 %v1334, %v2248
    %v2250 = vpop.f32.mrf.mxu0
    %v2251 = vadd.f32 %v1338, %v2250
    %v2252 = vpop.f32.mrf.mxu0
    %v2253 = vpop.f32.mrf.mxu0
    %2254 = vdwg.mxu0
    %2255 = vmatprep.subr.bf16.mxu0 %v1928
    %2256 = vmatpush1.bf16.msra.mxu0 %v1927
    %2257 = vmatprep.subr.bf16.mxu0 %v1918
    %2258 = vmatpush1.bf16.msra.mxu0 %v1917
    %2259 = vmatprep.subr.bf16.mxu0 %v1908
    %2260 = vmatpush1.bf16.msra.mxu0 %v1907
    %2261 = vmatprep.subr.bf16.mxu0 %v1898
    %2262 = vmatpush1.bf16.msra.mxu0 %v1897
    %2263 = vmatprep.subr.bf16.mxu0 %v1888
    %2264 = vmatpush1.bf16.msra.mxu0 %v1887
    %2265 = vmatprep.subr.bf16.mxu0 %v1878
    %2266 = vmatpush1.bf16.msra.mxu0 %v1877
    %2267 = vmatprep.subr.bf16.mxu0 %v1868
    %2268 = vmatpush1.bf16.msra.mxu0 %v1867
    %2269 = vmatprep.subr.bf16.mxu0 %v1858
    %2270 = vmatpush1.bf16.msra.mxu0 %v1857
    %2271 = vmatprep.subr.bf16.mxu0 %v2008
    %2272 = vmatpush2.bf16.msra.mxu0 %v2007
    %2273 = vmatprep.subr.bf16.mxu0 %v1998
    %2274 = vmatpush2.bf16.msra.mxu0 %v1997
    %2275 = vmatprep.subr.bf16.mxu0 %v1988
    %2276 = vmatpush2.bf16.msra.mxu0 %v1987
    %2277 = vmatprep.subr.bf16.mxu0 %v1978
    %2278 = vmatpush2.bf16.msra.mxu0 %v1977
    %2279 = vmatprep.subr.bf16.mxu0 %v1968
    %2280 = vmatpush2.bf16.msra.mxu0 %v1967
    %2281 = vmatprep.subr.bf16.mxu0 %v1958
    %2282 = vmatpush2.bf16.msra.mxu0 %v1957
    %2283 = vmatprep.subr.bf16.mxu0 %v1948
    %2284 = vmatpush2.bf16.msra.mxu0 %v1947
    %2285 = vmatprep.subr.bf16.mxu0 %v1938
    %2286 = vmatpush2.bf16.msra.mxu0 %v1937
    %2287 = vmatprep.mubr.bf16.mxu0 %v1320
    %2288 = vmatmul.mubr.bf16.gmra.mxu0 %v1319
    %v2289 = vpop.f32.mrf.mxu0
    %v2290 = vadd.f32 %v1342, %v2289
    %v2291 = vpop.f32.mrf.mxu0
    %v2292 = vadd.f32 %v1346, %v2291
    %v2293 = vpop.f32.mrf.mxu0
    %v2294 = vpop.f32.mrf.mxu0
    %2295 = vdwg.mxu0
    %2296 = vmatprep.subr.bf16.mxu0 %v1930
    %2297 = vmatpush1.bf16.msra.mxu0 %v1929
    %2298 = vmatprep.subr.bf16.mxu0 %v1920
    %2299 = vmatpush1.bf16.msra.mxu0 %v1919
    %2300 = vmatprep.subr.bf16.mxu0 %v1910
    %2301 = vmatpush1.bf16.msra.mxu0 %v1909
    %2302 = vmatprep.subr.bf16.mxu0 %v1900
    %2303 = vmatpush1.bf16.msra.mxu0 %v1899
    %2304 = vmatprep.subr.bf16.mxu0 %v1890
    %2305 = vmatpush1.bf16.msra.mxu0 %v1889
    %2306 = vmatprep.subr.bf16.mxu0 %v1880
    %2307 = vmatpush1.bf16.msra.mxu0 %v1879
    %2308 = vmatprep.subr.bf16.mxu0 %v1870
    %2309 = vmatpush1.bf16.msra.mxu0 %v1869
    %2310 = vmatprep.subr.bf16.mxu0 %v1860
    %2311 = vmatpush1.bf16.msra.mxu0 %v1859
    %2312 = vmatprep.subr.bf16.mxu0 %v2010
    %2313 = vmatpush2.bf16.msra.mxu0 %v2009
    %2314 = vmatprep.subr.bf16.mxu0 %v2000
    %2315 = vmatpush2.bf16.msra.mxu0 %v1999
    %2316 = vmatprep.subr.bf16.mxu0 %v1990
    %2317 = vmatpush2.bf16.msra.mxu0 %v1989
    %2318 = vmatprep.subr.bf16.mxu0 %v1980
    %2319 = vmatpush2.bf16.msra.mxu0 %v1979
    %2320 = vmatprep.subr.bf16.mxu0 %v1970
    %2321 = vmatpush2.bf16.msra.mxu0 %v1969
    %2322 = vmatprep.subr.bf16.mxu0 %v1960
    %2323 = vmatpush2.bf16.msra.mxu0 %v1959
    %2324 = vmatprep.subr.bf16.mxu0 %v1950
    %2325 = vmatpush2.bf16.msra.mxu0 %v1949
    %2326 = vmatprep.subr.bf16.mxu0 %v1940
    %2327 = vmatpush2.bf16.msra.mxu0 %v1939
    %2328 = vmatprep.mubr.bf16.mxu0 %v1320
    %2329 = vmatmul.mubr.bf16.gmra.mxu0 %v1319
    %v2330 = vpop.f32.mrf.mxu0
    %v2331 = vadd.f32 %v1350, %v2330
    %v2332 = vpop.f32.mrf.mxu0
    %v2333 = vadd.f32 %v1354, %v2332
    %v2334 = vpop.f32.mrf.mxu0
    %v2335 = vpop.f32.mrf.mxu0
    %2336 = vdwg.mxu0
    %2337 = vmatprep.subr.bf16.mxu0 %v1932
    %2338 = vmatpush1.bf16.msra.mxu0 %v1931
    %2339 = vmatprep.subr.bf16.mxu0 %v1922
    %2340 = vmatpush1.bf16.msra.mxu0 %v1921
    %2341 = vmatprep.subr.bf16.mxu0 %v1912
    %2342 = vmatpush1.bf16.msra.mxu0 %v1911
    %2343 = vmatprep.subr.bf16.mxu0 %v1902
    %2344 = vmatpush1.bf16.msra.mxu0 %v1901
    %2345 = vmatprep.subr.bf16.mxu0 %v1892
    %2346 = vmatpush1.bf16.msra.mxu0 %v1891
    %2347 = vmatprep.subr.bf16.mxu0 %v1882
    %2348 = vmatpush1.bf16.msra.mxu0 %v1881
    %2349 = vmatprep.subr.bf16.mxu0 %v1872
    %2350 = vmatpush1.bf16.msra.mxu0 %v1871
    %2351 = vmatprep.subr.bf16.mxu0 %v1862
    %2352 = vmatpush1.bf16.msra.mxu0 %v1861
    %2353 = vmatprep.subr.bf16.mxu0 %v2012
    %2354 = vmatpush2.bf16.msra.mxu0 %v2011
    %2355 = vmatprep.subr.bf16.mxu0 %v2002
    %2356 = vmatpush2.bf16.msra.mxu0 %v2001
    %2357 = vmatprep.subr.bf16.mxu0 %v1992
    %2358 = vmatpush2.bf16.msra.mxu0 %v1991
    %2359 = vmatprep.subr.bf16.mxu0 %v1982
    %2360 = vmatpush2.bf16.msra.mxu0 %v1981
    %2361 = vmatprep.subr.bf16.mxu0 %v1972
    %2362 = vmatpush2.bf16.msra.mxu0 %v1971
    %2363 = vmatprep.subr.bf16.mxu0 %v1962
    %2364 = vmatpush2.bf16.msra.mxu0 %v1961
    %2365 = vmatprep.subr.bf16.mxu0 %v1952
    %2366 = vmatpush2.bf16.msra.mxu0 %v1951
    %2367 = vmatprep.subr.bf16.mxu0 %v1942
    %2368 = vmatpush2.bf16.msra.mxu0 %v1941
    %2369 = vmatprep.mubr.bf16.mxu0 %v1320
    %2370 = vmatmul.mubr.bf16.gmra.mxu0 %v1319
    %v2371 = vpop.f32.mrf.mxu0
    %v2372 = vadd.f32 %v1358, %v2371
    %v2373 = vpop.f32.mrf.mxu0
    %v2374 = vadd.f32 %v1362, %v2373
    %v2375 = vpop.f32.mrf.mxu0
    %v2376 = vpop.f32.mrf.mxu0
    %2377 = vdwg.mxu0
    %v2378 = vmax.f32 %v2208, 0.0
    %v2379 = vmax.f32 %v2210, 0.0
    %v2380 = vmax.f32 %v2249, 0.0
    %v2381 = vmax.f32 %v2251, 0.0
    %v2382 = vmax.f32 %v2290, 0.0
    %v2383 = vmax.f32 %v2292, 0.0
    %v2384 = vmax.f32 %v2331, 0.0
    %v2385 = vmax.f32 %v2333, 0.0
    %v2386 = vmax.f32 %v2372, 0.0
    %v2387 = vmax.f32 %v2374, 0.0
    %s2388 = smul.u32 4, 5
    %s2389 = smul.u32 %s2388, 32
    %s2390 = smul.u32 %s2389, 1
    %s2391 = sshll.u32 %s2390, 4
    %2392 = dma.done %s172, %s2391
    %s2393 = smul.u32 4, 16
    %s2394 = smul.u32 %s2393, 9
    %s2395 = sshll.u32 %s2394, 4
    %2396 = dma.done %s184, %s2395
    %v2397 = vpack.c.bf16 %v2378, %v2378
    %v2398 = vpack.c.bf16 %v2379, %v2379
    %v2399 = vld [vmem:[#allocation4] sm:$0xf]
    %v2400 = vld [vmem:[#allocation4 + $0x4] sm:$0xf]
    %v2401 = vld [vmem:[#allocation4 + $0x8] sm:$0xf]
    %v2402 = vld [vmem:[#allocation4 + $0xc] sm:$0xf]
    %v2403 = vld [vmem:[#allocation4 + $0x10] sm:$0xf]
    %v2404 = vld [vmem:[#allocation4 + $0x14] sm:$0xf]
    %v2405 = vld [vmem:[#allocation4 + $0x18] sm:$0xf]
    %v2406 = vld [vmem:[#allocation4 + $0x1c] sm:$0xf]
    %v2407 = vld [vmem:[#allocation4 + $0x20] sm:$0xf]
    %v2408 = vld [vmem:[#allocation4 + $0x24] sm:$0xf]
    %v2409 = vld [vmem:[#allocation4 + $0x28] sm:$0xf]
    %v2410 = vld [vmem:[#allocation4 + $0x2c] sm:$0xf]
    %v2411 = vld [vmem:[#allocation4 + $0x30] sm:$0xf]
    %v2412 = vld [vmem:[#allocation4 + $0x34] sm:$0xf]
    %v2413 = vld [vmem:[#allocation4 + $0x38] sm:$0xf]
    %v2414 = vld [vmem:[#allocation4 + $0x3c] sm:$0xf]
    %v2415 = vld [vmem:[#allocation4 + $0x40] sm:$0xf]
    %v2416 = vld [vmem:[#allocation4 + $0x44] sm:$0xf]
    %v2417 = vld [vmem:[#allocation4 + $0x48] sm:$0xf]
    %v2418 = vld [vmem:[#allocation4 + $0x4c] sm:$0xf]
    %v2419 = vld [vmem:[#allocation4 + $0x50] sm:$0xf]
    %v2420 = vld [vmem:[#allocation4 + $0x54] sm:$0xf]
    %v2421 = vld [vmem:[#allocation4 + $0x58] sm:$0xf]
    %v2422 = vld [vmem:[#allocation4 + $0x5c] sm:$0xf]
    %v2423 = vld [vmem:[#allocation4 + $0x60] sm:$0xf]
    %v2424 = vld [vmem:[#allocation4 + $0x64] sm:$0xf]
    %v2425 = vld [vmem:[#allocation4 + $0x68] sm:$0xf]
    %v2426 = vld [vmem:[#allocation4 + $0x6c] sm:$0xf]
    %v2427 = vld [vmem:[#allocation4 + $0x70] sm:$0xf]
    %v2428 = vld [vmem:[#allocation4 + $0x74] sm:$0xf]
    %v2429 = vld [vmem:[#allocation4 + $0x78] sm:$0xf]
    %v2430 = vld [vmem:[#allocation4 + $0x7c] sm:$0xf]
    %v2431 = vld [vmem:[#allocation20] sm:$0x1]
    %v2433 = vlaneseq
    %v2434 = vshrl.u32 %v2433, 7
    %v2435 = vsub.s32 0, %v2434
    %v2436 = vrot.slane %v2431, %v2435
    %v2470 = vunpack.c.l.b16 %v2399
    %v2471 = vunpack.c.l.b16 %v2400
    %v2472 = vunpack.c.l.b16 %v2401
    %v2473 = vunpack.c.l.b16 %v2402
    %v2474 = vunpack.c.l.b16 %v2403
    %v2475 = vunpack.c.l.b16 %v2404
    %v2476 = vunpack.c.l.b16 %v2405
    %v2477 = vunpack.c.l.b16 %v2406
    %v2478 = vunpack.c.l.b16 %v2407
    %v2479 = vunpack.c.l.b16 %v2408
    %v2480 = vunpack.c.l.b16 %v2409
    %v2481 = vunpack.c.l.b16 %v2410
    %v2482 = vunpack.c.l.b16 %v2411
    %v2483 = vunpack.c.l.b16 %v2412
    %v2484 = vunpack.c.l.b16 %v2413
    %v2485 = vunpack.c.l.b16 %v2414
    %v2486 = vunpack.c.l.b16 %v2415
    %v2487 = vunpack.c.l.b16 %v2416
    %v2488 = vunpack.c.l.b16 %v2417
    %v2489 = vunpack.c.l.b16 %v2418
    %v2490 = vunpack.c.l.b16 %v2419
    %v2491 = vunpack.c.l.b16 %v2420
    %v2492 = vunpack.c.l.b16 %v2421
    %v2493 = vunpack.c.l.b16 %v2422
    %v2494 = vunpack.c.l.b16 %v2423
    %v2495 = vunpack.c.l.b16 %v2424
    %v2496 = vunpack.c.l.b16 %v2425
    %v2497 = vunpack.c.l.b16 %v2426
    %v2498 = vunpack.c.l.b16 %v2427
    %v2499 = vunpack.c.l.b16 %v2428
    %v2500 = vunpack.c.l.b16 %v2429
    %v2501 = vunpack.c.l.b16 %v2430
    %v2502 = vpack.c.b16 %v2471, %v2470
    %v2503 = vpack.c.b16 %v2473, %v2472
    %v2504 = vpack.c.b16 %v2475, %v2474
    %v2505 = vpack.c.b16 %v2477, %v2476
    %v2506 = vpack.c.b16 %v2479, %v2478
    %v2507 = vpack.c.b16 %v2481, %v2480
    %v2508 = vpack.c.b16 %v2483, %v2482
    %v2509 = vpack.c.b16 %v2485, %v2484
    %v2510 = vpack.c.b16 %v2487, %v2486
    %v2511 = vpack.c.b16 %v2489, %v2488
    %v2512 = vpack.c.b16 %v2491, %v2490
    %v2513 = vpack.c.b16 %v2493, %v2492
    %v2514 = vpack.c.b16 %v2495, %v2494
    %v2515 = vpack.c.b16 %v2497, %v2496
    %v2516 = vpack.c.b16 %v2499, %v2498
    %v2517 = vpack.c.b16 %v2501, %v2500
    %2534 = vmatprep.subr.bf16.mxu0 0
    %2535 = vmatpush1.bf16.msra.mxu0 %v2509
    %2536 = vmatprep.subr.bf16.mxu0 0
    %2537 = vmatpush1.bf16.msra.mxu0 %v2508
    %2538 = vmatprep.subr.bf16.mxu0 0
    %2539 = vmatpush1.bf16.msra.mxu0 %v2507
    %2540 = vmatprep.subr.bf16.mxu0 0
    %2541 = vmatpush1.bf16.msra.mxu0 %v2506
    %2542 = vmatprep.subr.bf16.mxu0 0
    %2543 = vmatpush1.bf16.msra.mxu0 %v2505
    %2544 = vmatprep.subr.bf16.mxu0 0
    %2545 = vmatpush1.bf16.msra.mxu0 %v2504
    %2546 = vmatprep.subr.bf16.mxu0 0
    %2547 = vmatpush1.bf16.msra.mxu0 %v2503
    %2548 = vmatprep.subr.bf16.mxu0 0
    %2549 = vmatpush1.bf16.msra.mxu0 %v2502
    %2550 = vmatprep.subr.bf16.mxu0 0
    %2551 = vmatpush2.bf16.msra.mxu0 %v2517
    %2552 = vmatprep.subr.bf16.mxu0 0
    %2553 = vmatpush2.bf16.msra.mxu0 %v2516
    %2554 = vmatprep.subr.bf16.mxu0 0
    %2555 = vmatpush2.bf16.msra.mxu0 %v2515
    %2556 = vmatprep.subr.bf16.mxu0 0
    %2557 = vmatpush2.bf16.msra.mxu0 %v2514
    %2558 = vmatprep.subr.bf16.mxu0 0
    %2559 = vmatpush2.bf16.msra.mxu0 %v2513
    %2560 = vmatprep.subr.bf16.mxu0 0
    %2561 = vmatpush2.bf16.msra.mxu0 %v2512
    %2562 = vmatprep.subr.bf16.mxu0 0
    %2563 = vmatpush2.bf16.msra.mxu0 %v2511
    %2564 = vmatprep.subr.bf16.mxu0 0
    %2565 = vmatpush2.bf16.msra.mxu0 %v2510
    %2566 = vmatprep.mubr.bf16.mxu0 %v2398
    %2567 = vmatmul.mubr.bf16.gmra.mxu0 %v2397
    %v2568 = vpop.f32.mrf.mxu0
    %v2569 = vadd.f32 %v2436, %v2568
    %v2570 = vpop.f32.mrf.mxu0
    %v2571 = vpop.f32.mrf.mxu0
    %v2572 = vpop.f32.mrf.mxu0
    %2573 = vdwg.mxu0
    %v2574 = vmax.f32 %v2569, 0.0
    %v2575 = vpack.c.bf16 %v2574, %v2574
    %v2576 = vld [vmem:[#allocation5] sm:$0xf]
    %v2577 = vld [vmem:[#allocation5 + $0x24] sm:$0xf]
    %v2578 = vld [vmem:[#allocation5 + $0x48] sm:$0xf]
    %v2579 = vld [vmem:[#allocation5 + $0x6c] sm:$0xf]
    %v2580 = vld [vmem:[#allocation5 + $0x90] sm:$0xf]
    %v2581 = vld [vmem:[#allocation5 + $0xb4] sm:$0xf]
    %v2582 = vld [vmem:[#allocation5 + $0xd8] sm:$0xf]
    %v2583 = vld [vmem:[#allocation5 + $0xfc] sm:$0xf]
    %v2584 = vld [vmem:[#allocation5 + $0x120] sm:$0xf]
    %v2585 = vld [vmem:[#allocation5 + $0x144] sm:$0xf]
    %v2586 = vld [vmem:[#allocation5 + $0x168] sm:$0xf]
    %v2587 = vld [vmem:[#allocation5 + $0x18c] sm:$0xf]
    %v2588 = vld [vmem:[#allocation5 + $0x1b0] sm:$0xf]
    %v2589 = vld [vmem:[#allocation5 + $0x1d4] sm:$0xf]
    %v2590 = vld [vmem:[#allocation5 + $0x1f8] sm:$0xf]
    %v2591 = vld [vmem:[#allocation5 + $0x21c] sm:$0xf]
    %v2592 = vld [vmem:[%s11] sm:$0x1]
    %v2594 = vlaneseq
    %v2595 = vshrl.u32 %v2594, 7
    %v2596 = vsub.s32 0, %v2595
    %v2597 = vrot.slane %v2592, %v2596
    %v2615 = vunpack.c.l.b16 %v2576
    %v2616 = vunpack.c.l.b16 %v2577
    %v2617 = vunpack.c.l.b16 %v2578
    %v2618 = vunpack.c.l.b16 %v2579
    %v2619 = vunpack.c.l.b16 %v2580
    %v2620 = vunpack.c.l.b16 %v2581
    %v2621 = vunpack.c.l.b16 %v2582
    %v2622 = vunpack.c.l.b16 %v2583
    %v2623 = vunpack.c.l.b16 %v2584
    %v2624 = vunpack.c.l.b16 %v2585
    %v2625 = vunpack.c.l.b16 %v2586
    %v2626 = vunpack.c.l.b16 %v2587
    %v2627 = vunpack.c.l.b16 %v2588
    %v2628 = vunpack.c.l.b16 %v2589
    %v2629 = vunpack.c.l.b16 %v2590
    %v2630 = vunpack.c.l.b16 %v2591
    %v2631 = vpack.c.b16 %v2616, %v2615
    %v2632 = vpack.c.b16 %v2618, %v2617
    %v2633 = vpack.c.b16 %v2620, %v2619
    %v2634 = vpack.c.b16 %v2622, %v2621
    %v2635 = vpack.c.b16 %v2624, %v2623
    %v2636 = vpack.c.b16 %v2626, %v2625
    %v2637 = vpack.c.b16 %v2628, %v2627
    %v2638 = vpack.c.b16 %v2630, %v2629
    %2647 = vmatprep.subr.bf16.mxu0 0
    %2648 = vmatpush1.bf16.msra.mxu0 %v2638
    %2649 = vmatprep.subr.bf16.mxu0 0
    %2650 = vmatpush1.bf16.msra.mxu0 %v2637
    %2651 = vmatprep.subr.bf16.mxu0 0
    %2652 = vmatpush1.bf16.msra.mxu0 %v2636
    %2653 = vmatprep.subr.bf16.mxu0 0
    %2654 = vmatpush1.bf16.msra.mxu0 %v2635
    %2655 = vmatprep.subr.bf16.mxu0 0
    %2656 = vmatpush1.bf16.msra.mxu0 %v2634
    %2657 = vmatprep.subr.bf16.mxu0 0
    %2658 = vmatpush1.bf16.msra.mxu0 %v2633
    %2659 = vmatprep.subr.bf16.mxu0 0
    %2660 = vmatpush1.bf16.msra.mxu0 %v2632
    %2661 = vmatprep.subr.bf16.mxu0 0
    %2662 = vmatpush1.bf16.msra.mxu0 %v2631
    %2663 = vmatprep.subr.bf16.mxu0 0
    %2664 = vmatpush2.bf16.msra.mxu0 0
    %2665 = vmatprep.subr.bf16.mxu0 0
    %2666 = vmatpush2.bf16.msra.mxu0 0
    %2667 = vmatprep.subr.bf16.mxu0 0
    %2668 = vmatpush2.bf16.msra.mxu0 0
    %2669 = vmatprep.subr.bf16.mxu0 0
    %2670 = vmatpush2.bf16.msra.mxu0 0
    %2671 = vmatprep.subr.bf16.mxu0 0
    %2672 = vmatpush2.bf16.msra.mxu0 0
    %2673 = vmatprep.subr.bf16.mxu0 0
    %2674 = vmatpush2.bf16.msra.mxu0 0
    %2675 = vmatprep.subr.bf16.mxu0 0
    %2676 = vmatpush2.bf16.msra.mxu0 0
    %2677 = vmatprep.subr.bf16.mxu0 0
    %2678 = vmatpush2.bf16.msra.mxu0 0
    %2679 = vmatprep.mubr.bf16.mxu0 0
    %2680 = vmatmul.mubr.bf16.gmra.mxu0 %v2575
    %v2681 = vpop.f32.mrf.mxu0
    %v2682 = vadd.f32 %v2597, %v2681
    %v2683 = vpop.f32.mrf.mxu0
    %v2684 = vpop.f32.mrf.mxu0
    %v2685 = vpop.f32.mrf.mxu0
    %2686 = vdwg.mxu0
    %2687 = vst [vmem:[%s18] sm:$0xff] %v2682
    %v2688 = vpack.c.bf16 %v2380, %v2380
    %v2689 = vpack.c.bf16 %v2381, %v2381
    %s2690 = scalar_lea.vmem [#allocation4], 128
    %v2691 = vld [vmem:[%s2690] sm:$0xf]
    %v2692 = vld [vmem:[%s2690 + $0x4] sm:$0xf]
    %v2693 = vld [vmem:[%s2690 + $0x8] sm:$0xf]
    %v2694 = vld [vmem:[%s2690 + $0xc] sm:$0xf]
    %v2695 = vld [vmem:[%s2690 + $0x10] sm:$0xf]
    %v2696 = vld [vmem:[%s2690 + $0x14] sm:$0xf]
    %v2697 = vld [vmem:[%s2690 + $0x18] sm:$0xf]
    %v2698 = vld [vmem:[%s2690 + $0x1c] sm:$0xf]
    %v2699 = vld [vmem:[%s2690 + $0x20] sm:$0xf]
    %v2700 = vld [vmem:[%s2690 + $0x24] sm:$0xf]
    %v2701 = vld [vmem:[%s2690 + $0x28] sm:$0xf]
    %v2702 = vld [vmem:[%s2690 + $0x2c] sm:$0xf]
    %v2703 = vld [vmem:[%s2690 + $0x30] sm:$0xf]
    %v2704 = vld [vmem:[%s2690 + $0x34] sm:$0xf]
    %v2705 = vld [vmem:[%s2690 + $0x38] sm:$0xf]
    %v2706 = vld [vmem:[%s2690 + $0x3c] sm:$0xf]
    %v2707 = vld [vmem:[%s2690 + $0x40] sm:$0xf]
    %v2708 = vld [vmem:[%s2690 + $0x44] sm:$0xf]
    %v2709 = vld [vmem:[%s2690 + $0x48] sm:$0xf]
    %v2710 = vld [vmem:[%s2690 + $0x4c] sm:$0xf]
    %v2711 = vld [vmem:[%s2690 + $0x50] sm:$0xf]
    %v2712 = vld [vmem:[%s2690 + $0x54] sm:$0xf]
    %v2713 = vld [vmem:[%s2690 + $0x58] sm:$0xf]
    %v2714 = vld [vmem:[%s2690 + $0x5c] sm:$0xf]
    %v2715 = vld [vmem:[%s2690 + $0x60] sm:$0xf]
    %v2716 = vld [vmem:[%s2690 + $0x64] sm:$0xf]
    %v2717 = vld [vmem:[%s2690 + $0x68] sm:$0xf]
    %v2718 = vld [vmem:[%s2690 + $0x6c] sm:$0xf]
    %v2719 = vld [vmem:[%s2690 + $0x70] sm:$0xf]
    %v2720 = vld [vmem:[%s2690 + $0x74] sm:$0xf]
    %v2721 = vld [vmem:[%s2690 + $0x78] sm:$0xf]
    %v2722 = vld [vmem:[%s2690 + $0x7c] sm:$0xf]
    %v2723 = vld [vmem:[#allocation20 + $0x1] sm:$0x1]
    %v2725 = vlaneseq
    %v2726 = vshrl.u32 %v2725, 7
    %v2727 = vsub.s32 0, %v2726
    %v2728 = vrot.slane %v2723, %v2727
    %v2762 = vunpack.c.l.b16 %v2691
    %v2763 = vunpack.c.l.b16 %v2692
    %v2764 = vunpack.c.l.b16 %v2693
    %v2765 = vunpack.c.l.b16 %v2694
    %v2766 = vunpack.c.l.b16 %v2695
    %v2767 = vunpack.c.l.b16 %v2696
    %v2768 = vunpack.c.l.b16 %v2697
    %v2769 = vunpack.c.l.b16 %v2698
    %v2770 = vunpack.c.l.b16 %v2699
    %v2771 = vunpack.c.l.b16 %v2700
    %v2772 = vunpack.c.l.b16 %v2701
    %v2773 = vunpack.c.l.b16 %v2702
    %v2774 = vunpack.c.l.b16 %v2703
    %v2775 = vunpack.c.l.b16 %v2704
    %v2776 = vunpack.c.l.b16 %v2705
    %v2777 = vunpack.c.l.b16 %v2706
    %v2778 = vunpack.c.l.b16 %v2707
    %v2779 = vunpack.c.l.b16 %v2708
    %v2780 = vunpack.c.l.b16 %v2709
    %v2781 = vunpack.c.l.b16 %v2710
    %v2782 = vunpack.c.l.b16 %v2711
    %v2783 = vunpack.c.l.b16 %v2712
    %v2784 = vunpack.c.l.b16 %v2713
    %v2785 = vunpack.c.l.b16 %v2714
    %v2786 = vunpack.c.l.b16 %v2715
    %v2787 = vunpack.c.l.b16 %v2716
    %v2788 = vunpack.c.l.b16 %v2717
    %v2789 = vunpack.c.l.b16 %v2718
    %v2790 = vunpack.c.l.b16 %v2719
    %v2791 = vunpack.c.l.b16 %v2720
    %v2792 = vunpack.c.l.b16 %v2721
    %v2793 = vunpack.c.l.b16 %v2722
    %v2794 = vpack.c.b16 %v2763, %v2762
    %v2795 = vpack.c.b16 %v2765, %v2764
    %v2796 = vpack.c.b16 %v2767, %v2766
    %v2797 = vpack.c.b16 %v2769, %v2768
    %v2798 = vpack.c.b16 %v2771, %v2770
    %v2799 = vpack.c.b16 %v2773, %v2772
    %v2800 = vpack.c.b16 %v2775, %v2774
    %v2801 = vpack.c.b16 %v2777, %v2776
    %v2802 = vpack.c.b16 %v2779, %v2778
    %v2803 = vpack.c.b16 %v2781, %v2780
    %v2804 = vpack.c.b16 %v2783, %v2782
    %v2805 = vpack.c.b16 %v2785, %v2784
    %v2806 = vpack.c.b16 %v2787, %v2786
    %v2807 = vpack.c.b16 %v2789, %v2788
    %v2808 = vpack.c.b16 %v2791, %v2790
    %v2809 = vpack.c.b16 %v2793, %v2792
    %2826 = vmatprep.subr.bf16.mxu0 0
    %2827 = vmatpush1.bf16.msra.mxu0 %v2801
    %2828 = vmatprep.subr.bf16.mxu0 0
    %2829 = vmatpush1.bf16.msra.mxu0 %v2800
    %2830 = vmatprep.subr.bf16.mxu0 0
    %2831 = vmatpush1.bf16.msra.mxu0 %v2799
    %2832 = vmatprep.subr.bf16.mxu0 0
    %2833 = vmatpush1.bf16.msra.mxu0 %v2798
    %2834 = vmatprep.subr.bf16.mxu0 0
    %2835 = vmatpush1.bf16.msra.mxu0 %v2797
    %2836 = vmatprep.subr.bf16.mxu0 0
    %2837 = vmatpush1.bf16.msra.mxu0 %v2796
    %2838 = vmatprep.subr.bf16.mxu0 0
    %2839 = vmatpush1.bf16.msra.mxu0 %v2795
    %2840 = vmatprep.subr.bf16.mxu0 0
    %2841 = vmatpush1.bf16.msra.mxu0 %v2794
    %2842 = vmatprep.subr.bf16.mxu0 0
    %2843 = vmatpush2.bf16.msra.mxu0 %v2809
    %2844 = vmatprep.subr.bf16.mxu0 0
    %2845 = vmatpush2.bf16.msra.mxu0 %v2808
    %2846 = vmatprep.subr.bf16.mxu0 0
    %2847 = vmatpush2.bf16.msra.mxu0 %v2807
    %2848 = vmatprep.subr.bf16.mxu0 0
    %2849 = vmatpush2.bf16.msra.mxu0 %v2806
    %2850 = vmatprep.subr.bf16.mxu0 0
    %2851 = vmatpush2.bf16.msra.mxu0 %v2805
    %2852 = vmatprep.subr.bf16.mxu0 0
    %2853 = vmatpush2.bf16.msra.mxu0 %v2804
    %2854 = vmatprep.subr.bf16.mxu0 0
    %2855 = vmatpush2.bf16.msra.mxu0 %v2803
    %2856 = vmatprep.subr.bf16.mxu0 0
    %2857 = vmatpush2.bf16.msra.mxu0 %v2802
    %2858 = vmatprep.mubr.bf16.mxu0 %v2689
    %2859 = vmatmul.mubr.bf16.gmra.mxu0 %v2688
    %v2860 = vpop.f32.mrf.mxu0
    %v2861 = vadd.f32 %v2728, %v2860
    %v2862 = vpop.f32.mrf.mxu0
    %v2863 = vpop.f32.mrf.mxu0
    %v2864 = vpop.f32.mrf.mxu0
    %2865 = vdwg.mxu0
    %v2866 = vmax.f32 %v2861, 0.0
    %v2867 = vpack.c.bf16 %v2866, %v2866
    %v2868 = vld [vmem:[#allocation5 + $0x4] sm:$0xf]
    %v2869 = vld [vmem:[#allocation5 + $0x28] sm:$0xf]
    %v2870 = vld [vmem:[#allocation5 + $0x4c] sm:$0xf]
    %v2871 = vld [vmem:[#allocation5 + $0x70] sm:$0xf]
    %v2872 = vld [vmem:[#allocation5 + $0x94] sm:$0xf]
    %v2873 = vld [vmem:[#allocation5 + $0xb8] sm:$0xf]
    %v2874 = vld [vmem:[#allocation5 + $0xdc] sm:$0xf]
    %v2875 = vld [vmem:[#allocation5 + $0x100] sm:$0xf]
    %v2876 = vld [vmem:[#allocation5 + $0x124] sm:$0xf]
    %v2877 = vld [vmem:[#allocation5 + $0x148] sm:$0xf]
    %v2878 = vld [vmem:[#allocation5 + $0x16c] sm:$0xf]
    %v2879 = vld [vmem:[#allocation5 + $0x190] sm:$0xf]
    %v2880 = vld [vmem:[#allocation5 + $0x1b4] sm:$0xf]
    %v2881 = vld [vmem:[#allocation5 + $0x1d8] sm:$0xf]
    %v2882 = vld [vmem:[#allocation5 + $0x1fc] sm:$0xf]
    %v2883 = vld [vmem:[#allocation5 + $0x220] sm:$0xf]
    %v2884 = vld [vmem:[%s11 + $0x1] sm:$0x1]
    %v2886 = vlaneseq
    %v2887 = vshrl.u32 %v2886, 7
    %v2888 = vsub.s32 0, %v2887
    %v2889 = vrot.slane %v2884, %v2888
    %v2907 = vunpack.c.l.b16 %v2868
    %v2908 = vunpack.c.l.b16 %v2869
    %v2909 = vunpack.c.l.b16 %v2870
    %v2910 = vunpack.c.l.b16 %v2871
    %v2911 = vunpack.c.l.b16 %v2872
    %v2912 = vunpack.c.l.b16 %v2873
    %v2913 = vunpack.c.l.b16 %v2874
    %v2914 = vunpack.c.l.b16 %v2875
    %v2915 = vunpack.c.l.b16 %v2876
    %v2916 = vunpack.c.l.b16 %v2877
    %v2917 = vunpack.c.l.b16 %v2878
    %v2918 = vunpack.c.l.b16 %v2879
    %v2919 = vunpack.c.l.b16 %v2880
    %v2920 = vunpack.c.l.b16 %v2881
    %v2921 = vunpack.c.l.b16 %v2882
    %v2922 = vunpack.c.l.b16 %v2883
    %v2923 = vpack.c.b16 %v2908, %v2907
    %v2924 = vpack.c.b16 %v2910, %v2909
    %v2925 = vpack.c.b16 %v2912, %v2911
    %v2926 = vpack.c.b16 %v2914, %v2913
    %v2927 = vpack.c.b16 %v2916, %v2915
    %v2928 = vpack.c.b16 %v2918, %v2917
    %v2929 = vpack.c.b16 %v2920, %v2919
    %v2930 = vpack.c.b16 %v2922, %v2921
    %2939 = vmatprep.subr.bf16.mxu0 0
    %2940 = vmatpush1.bf16.msra.mxu0 %v2930
    %2941 = vmatprep.subr.bf16.mxu0 0
    %2942 = vmatpush1.bf16.msra.mxu0 %v2929
    %2943 = vmatprep.subr.bf16.mxu0 0
    %2944 = vmatpush1.bf16.msra.mxu0 %v2928
    %2945 = vmatprep.subr.bf16.mxu0 0
    %2946 = vmatpush1.bf16.msra.mxu0 %v2927
    %2947 = vmatprep.subr.bf16.mxu0 0
    %2948 = vmatpush1.bf16.msra.mxu0 %v2926
    %2949 = vmatprep.subr.bf16.mxu0 0
    %2950 = vmatpush1.bf16.msra.mxu0 %v2925
    %2951 = vmatprep.subr.bf16.mxu0 0
    %2952 = vmatpush1.bf16.msra.mxu0 %v2924
    %2953 = vmatprep.subr.bf16.mxu0 0
    %2954 = vmatpush1.bf16.msra.mxu0 %v2923
    %2955 = vmatprep.subr.bf16.mxu0 0
    %2956 = vmatpush2.bf16.msra.mxu0 0
    %2957 = vmatprep.subr.bf16.mxu0 0
    %2958 = vmatpush2.bf16.msra.mxu0 0
    %2959 = vmatprep.subr.bf16.mxu0 0
    %2960 = vmatpush2.bf16.msra.mxu0 0
    %2961 = vmatprep.subr.bf16.mxu0 0
    %2962 = vmatpush2.bf16.msra.mxu0 0
    %2963 = vmatprep.subr.bf16.mxu0 0
    %2964 = vmatpush2.bf16.msra.mxu0 0
    %2965 = vmatprep.subr.bf16.mxu0 0
    %2966 = vmatpush2.bf16.msra.mxu0 0
    %2967 = vmatprep.subr.bf16.mxu0 0
    %2968 = vmatpush2.bf16.msra.mxu0 0
    %2969 = vmatprep.subr.bf16.mxu0 0
    %2970 = vmatpush2.bf16.msra.mxu0 0
    %2971 = vmatprep.mubr.bf16.mxu0 0
    %2972 = vmatmul.mubr.bf16.gmra.mxu0 %v2867
    %v2973 = vpop.f32.mrf.mxu0
    %v2974 = vadd.f32 %v2889, %v2973
    %v2975 = vpop.f32.mrf.mxu0
    %v2976 = vpop.f32.mrf.mxu0
    %v2977 = vpop.f32.mrf.mxu0
    %2978 = vdwg.mxu0
    %2979 = vst [vmem:[%s18 + $0x8] sm:$0xff] %v2974
    %v2980 = vpack.c.bf16 %v2382, %v2382
    %v2981 = vpack.c.bf16 %v2383, %v2383
    %s2982 = scalar_lea.vmem [#allocation4], 256
    %v2983 = vld [vmem:[%s2982] sm:$0xf]
    %v2984 = vld [vmem:[%s2982 + $0x4] sm:$0xf]
    %v2985 = vld [vmem:[%s2982 + $0x8] sm:$0xf]
    %v2986 = vld [vmem:[%s2982 + $0xc] sm:$0xf]
    %v2987 = vld [vmem:[%s2982 + $0x10] sm:$0xf]
    %v2988 = vld [vmem:[%s2982 + $0x14] sm:$0xf]
    %v2989 = vld [vmem:[%s2982 + $0x18] sm:$0xf]
    %v2990 = vld [vmem:[%s2982 + $0x1c] sm:$0xf]
    %v2991 = vld [vmem:[%s2982 + $0x20] sm:$0xf]
    %v2992 = vld [vmem:[%s2982 + $0x24] sm:$0xf]
    %v2993 = vld [vmem:[%s2982 + $0x28] sm:$0xf]
    %v2994 = vld [vmem:[%s2982 + $0x2c] sm:$0xf]
    %v2995 = vld [vmem:[%s2982 + $0x30] sm:$0xf]
    %v2996 = vld [vmem:[%s2982 + $0x34] sm:$0xf]
    %v2997 = vld [vmem:[%s2982 + $0x38] sm:$0xf]
    %v2998 = vld [vmem:[%s2982 + $0x3c] sm:$0xf]
    %v2999 = vld [vmem:[%s2982 + $0x40] sm:$0xf]
    %v3000 = vld [vmem:[%s2982 + $0x44] sm:$0xf]
    %v3001 = vld [vmem:[%s2982 + $0x48] sm:$0xf]
    %v3002 = vld [vmem:[%s2982 + $0x4c] sm:$0xf]
    %v3003 = vld [vmem:[%s2982 + $0x50] sm:$0xf]
    %v3004 = vld [vmem:[%s2982 + $0x54] sm:$0xf]
    %v3005 = vld [vmem:[%s2982 + $0x58] sm:$0xf]
    %v3006 = vld [vmem:[%s2982 + $0x5c] sm:$0xf]
    %v3007 = vld [vmem:[%s2982 + $0x60] sm:$0xf]
    %v3008 = vld [vmem:[%s2982 + $0x64] sm:$0xf]
    %v3009 = vld [vmem:[%s2982 + $0x68] sm:$0xf]
    %v3010 = vld [vmem:[%s2982 + $0x6c] sm:$0xf]
    %v3011 = vld [vmem:[%s2982 + $0x70] sm:$0xf]
    %v3012 = vld [vmem:[%s2982 + $0x74] sm:$0xf]
    %v3013 = vld [vmem:[%s2982 + $0x78] sm:$0xf]
    %v3014 = vld [vmem:[%s2982 + $0x7c] sm:$0xf]
    %v3015 = vld [vmem:[#allocation20 + $0x2] sm:$0x1]
    %v3017 = vlaneseq
    %v3018 = vshrl.u32 %v3017, 7
    %v3019 = vsub.s32 0, %v3018
    %v3020 = vrot.slane %v3015, %v3019
    %v3054 = vunpack.c.l.b16 %v2983
    %v3055 = vunpack.c.l.b16 %v2984
    %v3056 = vunpack.c.l.b16 %v2985
    %v3057 = vunpack.c.l.b16 %v2986
    %v3058 = vunpack.c.l.b16 %v2987
    %v3059 = vunpack.c.l.b16 %v2988
    %v3060 = vunpack.c.l.b16 %v2989
    %v3061 = vunpack.c.l.b16 %v2990
    %v3062 = vunpack.c.l.b16 %v2991
    %v3063 = vunpack.c.l.b16 %v2992
    %v3064 = vunpack.c.l.b16 %v2993
    %v3065 = vunpack.c.l.b16 %v2994
    %v3066 = vunpack.c.l.b16 %v2995
    %v3067 = vunpack.c.l.b16 %v2996
    %v3068 = vunpack.c.l.b16 %v2997
    %v3069 = vunpack.c.l.b16 %v2998
    %v3070 = vunpack.c.l.b16 %v2999
    %v3071 = vunpack.c.l.b16 %v3000
    %v3072 = vunpack.c.l.b16 %v3001
    %v3073 = vunpack.c.l.b16 %v3002
    %v3074 = vunpack.c.l.b16 %v3003
    %v3075 = vunpack.c.l.b16 %v3004
    %v3076 = vunpack.c.l.b16 %v3005
    %v3077 = vunpack.c.l.b16 %v3006
    %v3078 = vunpack.c.l.b16 %v3007
    %v3079 = vunpack.c.l.b16 %v3008
    %v3080 = vunpack.c.l.b16 %v3009
    %v3081 = vunpack.c.l.b16 %v3010
    %v3082 = vunpack.c.l.b16 %v3011
    %v3083 = vunpack.c.l.b16 %v3012
    %v3084 = vunpack.c.l.b16 %v3013
    %v3085 = vunpack.c.l.b16 %v3014
    %v3086 = vpack.c.b16 %v3055, %v3054
    %v3087 = vpack.c.b16 %v3057, %v3056
    %v3088 = vpack.c.b16 %v3059, %v3058
    %v3089 = vpack.c.b16 %v3061, %v3060
    %v3090 = vpack.c.b16 %v3063, %v3062
    %v3091 = vpack.c.b16 %v3065, %v3064
    %v3092 = vpack.c.b16 %v3067, %v3066
    %v3093 = vpack.c.b16 %v3069, %v3068
    %v3094 = vpack.c.b16 %v3071, %v3070
    %v3095 = vpack.c.b16 %v3073, %v3072
    %v3096 = vpack.c.b16 %v3075, %v3074
    %v3097 = vpack.c.b16 %v3077, %v3076
    %v3098 = vpack.c.b16 %v3079, %v3078
    %v3099 = vpack.c.b16 %v3081, %v3080
    %v3100 = vpack.c.b16 %v3083, %v3082
    %v3101 = vpack.c.b16 %v3085, %v3084
    %3118 = vmatprep.subr.bf16.mxu0 0
    %3119 = vmatpush1.bf16.msra.mxu0 %v3093
    %3120 = vmatprep.subr.bf16.mxu0 0
    %3121 = vmatpush1.bf16.msra.mxu0 %v3092
    %3122 = vmatprep.subr.bf16.mxu0 0
    %3123 = vmatpush1.bf16.msra.mxu0 %v3091
    %3124 = vmatprep.subr.bf16.mxu0 0
    %3125 = vmatpush1.bf16.msra.mxu0 %v3090
    %3126 = vmatprep.subr.bf16.mxu0 0
    %3127 = vmatpush1.bf16.msra.mxu0 %v3089
    %3128 = vmatprep.subr.bf16.mxu0 0
    %3129 = vmatpush1.bf16.msra.mxu0 %v3088
    %3130 = vmatprep.subr.bf16.mxu0 0
    %3131 = vmatpush1.bf16.msra.mxu0 %v3087
    %3132 = vmatprep.subr.bf16.mxu0 0
    %3133 = vmatpush1.bf16.msra.mxu0 %v3086
    %3134 = vmatprep.subr.bf16.mxu0 0
    %3135 = vmatpush2.bf16.msra.mxu0 %v3101
    %3136 = vmatprep.subr.bf16.mxu0 0
    %3137 = vmatpush2.bf16.msra.mxu0 %v3100
    %3138 = vmatprep.subr.bf16.mxu0 0
    %3139 = vmatpush2.bf16.msra.mxu0 %v3099
    %3140 = vmatprep.subr.bf16.mxu0 0
    %3141 = vmatpush2.bf16.msra.mxu0 %v3098
    %3142 = vmatprep.subr.bf16.mxu0 0
    %3143 = vmatpush2.bf16.msra.mxu0 %v3097
    %3144 = vmatprep.subr.bf16.mxu0 0
    %3145 = vmatpush2.bf16.msra.mxu0 %v3096
    %3146 = vmatprep.subr.bf16.mxu0 0
    %3147 = vmatpush2.bf16.msra.mxu0 %v3095
    %3148 = vmatprep.subr.bf16.mxu0 0
    %3149 = vmatpush2.bf16.msra.mxu0 %v3094
    %3150 = vmatprep.mubr.bf16.mxu0 %v2981
    %3151 = vmatmul.mubr.bf16.gmra.mxu0 %v2980
    %v3152 = vpop.f32.mrf.mxu0
    %v3153 = vadd.f32 %v3020, %v3152
    %v3154 = vpop.f32.mrf.mxu0
    %v3155 = vpop.f32.mrf.mxu0
    %v3156 = vpop.f32.mrf.mxu0
    %3157 = vdwg.mxu0
    %v3158 = vmax.f32 %v3153, 0.0
    %v3159 = vpack.c.bf16 %v3158, %v3158
    %v3160 = vld [vmem:[#allocation5 + $0x8] sm:$0xf]
    %v3161 = vld [vmem:[#allocation5 + $0x2c] sm:$0xf]
    %v3162 = vld [vmem:[#allocation5 + $0x50] sm:$0xf]
    %v3163 = vld [vmem:[#allocation5 + $0x74] sm:$0xf]
    %v3164 = vld [vmem:[#allocation5 + $0x98] sm:$0xf]
    %v3165 = vld [vmem:[#allocation5 + $0xbc] sm:$0xf]
    %v3166 = vld [vmem:[#allocation5 + $0xe0] sm:$0xf]
    %v3167 = vld [vmem:[#allocation5 + $0x104] sm:$0xf]
    %v3168 = vld [vmem:[#allocation5 + $0x128] sm:$0xf]
    %v3169 = vld [vmem:[#allocation5 + $0x14c] sm:$0xf]
    %v3170 = vld [vmem:[#allocation5 + $0x170] sm:$0xf]
    %v3171 = vld [vmem:[#allocation5 + $0x194] sm:$0xf]
    %v3172 = vld [vmem:[#allocation5 + $0x1b8] sm:$0xf]
    %v3173 = vld [vmem:[#allocation5 + $0x1dc] sm:$0xf]
    %v3174 = vld [vmem:[#allocation5 + $0x200] sm:$0xf]
    %v3175 = vld [vmem:[#allocation5 + $0x224] sm:$0xf]
    %v3176 = vld [vmem:[%s11 + $0x2] sm:$0x1]
    %v3178 = vlaneseq
    %v3179 = vshrl.u32 %v3178, 7
    %v3180 = vsub.s32 0, %v3179
    %v3181 = vrot.slane %v3176, %v3180
    %v3199 = vunpack.c.l.b16 %v3160
    %v3200 = vunpack.c.l.b16 %v3161
    %v3201 = vunpack.c.l.b16 %v3162
    %v3202 = vunpack.c.l.b16 %v3163
    %v3203 = vunpack.c.l.b16 %v3164
    %v3204 = vunpack.c.l.b16 %v3165
    %v3205 = vunpack.c.l.b16 %v3166
    %v3206 = vunpack.c.l.b16 %v3167
    %v3207 = vunpack.c.l.b16 %v3168
    %v3208 = vunpack.c.l.b16 %v3169
    %v3209 = vunpack.c.l.b16 %v3170
    %v3210 = vunpack.c.l.b16 %v3171
    %v3211 = vunpack.c.l.b16 %v3172
    %v3212 = vunpack.c.l.b16 %v3173
    %v3213 = vunpack.c.l.b16 %v3174
    %v3214 = vunpack.c.l.b16 %v3175
    %v3215 = vpack.c.b16 %v3200, %v3199
    %v3216 = vpack.c.b16 %v3202, %v3201
    %v3217 = vpack.c.b16 %v3204, %v3203
    %v3218 = vpack.c.b16 %v3206, %v3205
    %v3219 = vpack.c.b16 %v3208, %v3207
    %v3220 = vpack.c.b16 %v3210, %v3209
    %v3221 = vpack.c.b16 %v3212, %v3211
    %v3222 = vpack.c.b16 %v3214, %v3213
    %3231 = vmatprep.subr.bf16.mxu0 0
    %3232 = vmatpush1.bf16.msra.mxu0 %v3222
    %3233 = vmatprep.subr.bf16.mxu0 0
    %3234 = vmatpush1.bf16.msra.mxu0 %v3221
    %3235 = vmatprep.subr.bf16.mxu0 0
    %3236 = vmatpush1.bf16.msra.mxu0 %v3220
    %3237 = vmatprep.subr.bf16.mxu0 0
    %3238 = vmatpush1.bf16.msra.mxu0 %v3219
    %3239 = vmatprep.subr.bf16.mxu0 0
    %3240 = vmatpush1.bf16.msra.mxu0 %v3218
    %3241 = vmatprep.subr.bf16.mxu0 0
    %3242 = vmatpush1.bf16.msra.mxu0 %v3217
    %3243 = vmatprep.subr.bf16.mxu0 0
    %3244 = vmatpush1.bf16.msra.mxu0 %v3216
    %3245 = vmatprep.subr.bf16.mxu0 0
    %3246 = vmatpush1.bf16.msra.mxu0 %v3215
    %3247 = vmatprep.subr.bf16.mxu0 0
    %3248 = vmatpush2.bf16.msra.mxu0 0
    %3249 = vmatprep.subr.bf16.mxu0 0
    %3250 = vmatpush2.bf16.msra.mxu0 0
    %3251 = vmatprep.subr.bf16.mxu0 0
    %3252 = vmatpush2.bf16.msra.mxu0 0
    %3253 = vmatprep.subr.bf16.mxu0 0
    %3254 = vmatpush2.bf16.msra.mxu0 0
    %3255 = vmatprep.subr.bf16.mxu0 0
    %3256 = vmatpush2.bf16.msra.mxu0 0
    %3257 = vmatprep.subr.bf16.mxu0 0
    %3258 = vmatpush2.bf16.msra.mxu0 0
    %3259 = vmatprep.subr.bf16.mxu0 0
    %3260 = vmatpush2.bf16.msra.mxu0 0
    %3261 = vmatprep.subr.bf16.mxu0 0
    %3262 = vmatpush2.bf16.msra.mxu0 0
    %3263 = vmatprep.mubr.bf16.mxu0 0
    %3264 = vmatmul.mubr.bf16.gmra.mxu0 %v3159
    %v3265 = vpop.f32.mrf.mxu0
    %v3266 = vadd.f32 %v3181, %v3265
    %v3267 = vpop.f32.mrf.mxu0
    %v3268 = vpop.f32.mrf.mxu0
    %v3269 = vpop.f32.mrf.mxu0
    %3270 = vdwg.mxu0
    %3271 = vst [vmem:[%s18 + $0x10] sm:$0xff] %v3266
    %v3272 = vpack.c.bf16 %v2384, %v2384
    %v3273 = vpack.c.bf16 %v2385, %v2385
    %s3274 = scalar_lea.vmem [#allocation4], 384
    %v3275 = vld [vmem:[%s3274] sm:$0xf]
    %v3276 = vld [vmem:[%s3274 + $0x4] sm:$0xf]
    %v3277 = vld [vmem:[%s3274 + $0x8] sm:$0xf]
    %v3278 = vld [vmem:[%s3274 + $0xc] sm:$0xf]
    %v3279 = vld [vmem:[%s3274 + $0x10] sm:$0xf]
    %v3280 = vld [vmem:[%s3274 + $0x14] sm:$0xf]
    %v3281 = vld [vmem:[%s3274 + $0x18] sm:$0xf]
    %v3282 = vld [vmem:[%s3274 + $0x1c] sm:$0xf]
    %v3283 = vld [vmem:[%s3274 + $0x20] sm:$0xf]
    %v3284 = vld [vmem:[%s3274 + $0x24] sm:$0xf]
    %v3285 = vld [vmem:[%s3274 + $0x28] sm:$0xf]
    %v3286 = vld [vmem:[%s3274 + $0x2c] sm:$0xf]
    %v3287 = vld [vmem:[%s3274 + $0x30] sm:$0xf]
    %v3288 = vld [vmem:[%s3274 + $0x34] sm:$0xf]
    %v3289 = vld [vmem:[%s3274 + $0x38] sm:$0xf]
    %v3290 = vld [vmem:[%s3274 + $0x3c] sm:$0xf]
    %v3291 = vld [vmem:[%s3274 + $0x40] sm:$0xf]
    %v3292 = vld [vmem:[%s3274 + $0x44] sm:$0xf]
    %v3293 = vld [vmem:[%s3274 + $0x48] sm:$0xf]
    %v3294 = vld [vmem:[%s3274 + $0x4c] sm:$0xf]
    %v3295 = vld [vmem:[%s3274 + $0x50] sm:$0xf]
    %v3296 = vld [vmem:[%s3274 + $0x54] sm:$0xf]
    %v3297 = vld [vmem:[%s3274 + $0x58] sm:$0xf]
    %v3298 = vld [vmem:[%s3274 + $0x5c] sm:$0xf]
    %v3299 = vld [vmem:[%s3274 + $0x60] sm:$0xf]
    %v3300 = vld [vmem:[%s3274 + $0x64] sm:$0xf]
    %v3301 = vld [vmem:[%s3274 + $0x68] sm:$0xf]
    %v3302 = vld [vmem:[%s3274 + $0x6c] sm:$0xf]
    %v3303 = vld [vmem:[%s3274 + $0x70] sm:$0xf]
    %v3304 = vld [vmem:[%s3274 + $0x74] sm:$0xf]
    %v3305 = vld [vmem:[%s3274 + $0x78] sm:$0xf]
    %v3306 = vld [vmem:[%s3274 + $0x7c] sm:$0xf]
    %v3307 = vld [vmem:[#allocation20 + $0x3] sm:$0x1]
    %v3309 = vlaneseq
    %v3310 = vshrl.u32 %v3309, 7
    %v3311 = vsub.s32 0, %v3310
    %v3312 = vrot.slane %v3307, %v3311
    %v3346 = vunpack.c.l.b16 %v3275
    %v3347 = vunpack.c.l.b16 %v3276
    %v3348 = vunpack.c.l.b16 %v3277
    %v3349 = vunpack.c.l.b16 %v3278
    %v3350 = vunpack.c.l.b16 %v3279
    %v3351 = vunpack.c.l.b16 %v3280
    %v3352 = vunpack.c.l.b16 %v3281
    %v3353 = vunpack.c.l.b16 %v3282
    %v3354 = vunpack.c.l.b16 %v3283
    %v3355 = vunpack.c.l.b16 %v3284
    %v3356 = vunpack.c.l.b16 %v3285
    %v3357 = vunpack.c.l.b16 %v3286
    %v3358 = vunpack.c.l.b16 %v3287
    %v3359 = vunpack.c.l.b16 %v3288
    %v3360 = vunpack.c.l.b16 %v3289
    %v3361 = vunpack.c.l.b16 %v3290
    %v3362 = vunpack.c.l.b16 %v3291
    %v3363 = vunpack.c.l.b16 %v3292
    %v3364 = vunpack.c.l.b16 %v3293
    %v3365 = vunpack.c.l.b16 %v3294
    %v3366 = vunpack.c.l.b16 %v3295
    %v3367 = vunpack.c.l.b16 %v3296
    %v3368 = vunpack.c.l.b16 %v3297
    %v3369 = vunpack.c.l.b16 %v3298
    %v3370 = vunpack.c.l.b16 %v3299
    %v3371 = vunpack.c.l.b16 %v3300
    %v3372 = vunpack.c.l.b16 %v3301
    %v3373 = vunpack.c.l.b16 %v3302
    %v3374 = vunpack.c.l.b16 %v3303
    %v3375 = vunpack.c.l.b16 %v3304
    %v3376 = vunpack.c.l.b16 %v3305
    %v3377 = vunpack.c.l.b16 %v3306
    %v3378 = vpack.c.b16 %v3347, %v3346
    %v3379 = vpack.c.b16 %v3349, %v3348
    %v3380 = vpack.c.b16 %v3351, %v3350
    %v3381 = vpack.c.b16 %v3353, %v3352
    %v3382 = vpack.c.b16 %v3355, %v3354
    %v3383 = vpack.c.b16 %v3357, %v3356
    %v3384 = vpack.c.b16 %v3359, %v3358
    %v3385 = vpack.c.b16 %v3361, %v3360
    %v3386 = vpack.c.b16 %v3363, %v3362
    %v3387 = vpack.c.b16 %v3365, %v3364
    %v3388 = vpack.c.b16 %v3367, %v3366
    %v3389 = vpack.c.b16 %v3369, %v3368
    %v3390 = vpack.c.b16 %v3371, %v3370
    %v3391 = vpack.c.b16 %v3373, %v3372
    %v3392 = vpack.c.b16 %v3375, %v3374
    %v3393 = vpack.c.b16 %v3377, %v3376
    %3410 = vmatprep.subr.bf16.mxu0 0
    %3411 = vmatpush1.bf16.msra.mxu0 %v3385
    %3412 = vmatprep.subr.bf16.mxu0 0
    %3413 = vmatpush1.bf16.msra.mxu0 %v3384
    %3414 = vmatprep.subr.bf16.mxu0 0
    %3415 = vmatpush1.bf16.msra.mxu0 %v3383
    %3416 = vmatprep.subr.bf16.mxu0 0
    %3417 = vmatpush1.bf16.msra.mxu0 %v3382
    %3418 = vmatprep.subr.bf16.mxu0 0
    %3419 = vmatpush1.bf16.msra.mxu0 %v3381
    %3420 = vmatprep.subr.bf16.mxu0 0
    %3421 = vmatpush1.bf16.msra.mxu0 %v3380
    %3422 = vmatprep.subr.bf16.mxu0 0
    %3423 = vmatpush1.bf16.msra.mxu0 %v3379
    %3424 = vmatprep.subr.bf16.mxu0 0
    %3425 = vmatpush1.bf16.msra.mxu0 %v3378
    %3426 = vmatprep.subr.bf16.mxu0 0
    %3427 = vmatpush2.bf16.msra.mxu0 %v3393
    %3428 = vmatprep.subr.bf16.mxu0 0
    %3429 = vmatpush2.bf16.msra.mxu0 %v3392
    %3430 = vmatprep.subr.bf16.mxu0 0
    %3431 = vmatpush2.bf16.msra.mxu0 %v3391
    %3432 = vmatprep.subr.bf16.mxu0 0
    %3433 = vmatpush2.bf16.msra.mxu0 %v3390
    %3434 = vmatprep.subr.bf16.mxu0 0
    %3435 = vmatpush2.bf16.msra.mxu0 %v3389
    %3436 = vmatprep.subr.bf16.mxu0 0
    %3437 = vmatpush2.bf16.msra.mxu0 %v3388
    %3438 = vmatprep.subr.bf16.mxu0 0
    %3439 = vmatpush2.bf16.msra.mxu0 %v3387
    %3440 = vmatprep.subr.bf16.mxu0 0
    %3441 = vmatpush2.bf16.msra.mxu0 %v3386
    %3442 = vmatprep.mubr.bf16.mxu0 %v3273
    %3443 = vmatmul.mubr.bf16.gmra.mxu0 %v3272
    %v3444 = vpop.f32.mrf.mxu0
    %v3445 = vadd.f32 %v3312, %v3444
    %v3446 = vpop.f32.mrf.mxu0
    %v3447 = vpop.f32.mrf.mxu0
    %v3448 = vpop.f32.mrf.mxu0
    %3449 = vdwg.mxu0
    %v3450 = vmax.f32 %v3445, 0.0
    %v3451 = vpack.c.bf16 %v3450, %v3450
    %v3452 = vld [vmem:[#allocation5 + $0xc] sm:$0xf]
    %v3453 = vld [vmem:[#allocation5 + $0x30] sm:$0xf]
    %v3454 = vld [vmem:[#allocation5 + $0x54] sm:$0xf]
    %v3455 = vld [vmem:[#allocation5 + $0x78] sm:$0xf]
    %v3456 = vld [vmem:[#allocation5 + $0x9c] sm:$0xf]
    %v3457 = vld [vmem:[#allocation5 + $0xc0] sm:$0xf]
    %v3458 = vld [vmem:[#allocation5 + $0xe4] sm:$0xf]
    %v3459 = vld [vmem:[#allocation5 + $0x108] sm:$0xf]
    %v3460 = vld [vmem:[#allocation5 + $0x12c] sm:$0xf]
    %v3461 = vld [vmem:[#allocation5 + $0x150] sm:$0xf]
    %v3462 = vld [vmem:[#allocation5 + $0x174] sm:$0xf]
    %v3463 = vld [vmem:[#allocation5 + $0x198] sm:$0xf]
    %v3464 = vld [vmem:[#allocation5 + $0x1bc] sm:$0xf]
    %v3465 = vld [vmem:[#allocation5 + $0x1e0] sm:$0xf]
    %v3466 = vld [vmem:[#allocation5 + $0x204] sm:$0xf]
    %v3467 = vld [vmem:[#allocation5 + $0x228] sm:$0xf]
    %v3468 = vld [vmem:[%s11 + $0x3] sm:$0x1]
    %v3470 = vlaneseq
    %v3471 = vshrl.u32 %v3470, 7
    %v3472 = vsub.s32 0, %v3471
    %v3473 = vrot.slane %v3468, %v3472
    %v3491 = vunpack.c.l.b16 %v3452
    %v3492 = vunpack.c.l.b16 %v3453
    %v3493 = vunpack.c.l.b16 %v3454
    %v3494 = vunpack.c.l.b16 %v3455
    %v3495 = vunpack.c.l.b16 %v3456
    %v3496 = vunpack.c.l.b16 %v3457
    %v3497 = vunpack.c.l.b16 %v3458
    %v3498 = vunpack.c.l.b16 %v3459
    %v3499 = vunpack.c.l.b16 %v3460
    %v3500 = vunpack.c.l.b16 %v3461
    %v3501 = vunpack.c.l.b16 %v3462
    %v3502 = vunpack.c.l.b16 %v3463
    %v3503 = vunpack.c.l.b16 %v3464
    %v3504 = vunpack.c.l.b16 %v3465
    %v3505 = vunpack.c.l.b16 %v3466
    %v3506 = vunpack.c.l.b16 %v3467
    %v3507 = vpack.c.b16 %v3492, %v3491
    %v3508 = vpack.c.b16 %v3494, %v3493
    %v3509 = vpack.c.b16 %v3496, %v3495
    %v3510 = vpack.c.b16 %v3498, %v3497
    %v3511 = vpack.c.b16 %v3500, %v3499
    %v3512 = vpack.c.b16 %v3502, %v3501
    %v3513 = vpack.c.b16 %v3504, %v3503
    %v3514 = vpack.c.b16 %v3506, %v3505
    %3523 = vmatprep.subr.bf16.mxu0 0
    %3524 = vmatpush1.bf16.msra.mxu0 %v3514
    %3525 = vmatprep.subr.bf16.mxu0 0
    %3526 = vmatpush1.bf16.msra.mxu0 %v3513
    %3527 = vmatprep.subr.bf16.mxu0 0
    %3528 = vmatpush1.bf16.msra.mxu0 %v3512
    %3529 = vmatprep.subr.bf16.mxu0 0
    %3530 = vmatpush1.bf16.msra.mxu0 %v3511
    %3531 = vmatprep.subr.bf16.mxu0 0
    %3532 = vmatpush1.bf16.msra.mxu0 %v3510
    %3533 = vmatprep.subr.bf16.mxu0 0
    %3534 = vmatpush1.bf16.msra.mxu0 %v3509
    %3535 = vmatprep.subr.bf16.mxu0 0
    %3536 = vmatpush1.bf16.msra.mxu0 %v3508
    %3537 = vmatprep.subr.bf16.mxu0 0
    %3538 = vmatpush1.bf16.msra.mxu0 %v3507
    %3539 = vmatprep.subr.bf16.mxu0 0
    %3540 = vmatpush2.bf16.msra.mxu0 0
    %3541 = vmatprep.subr.bf16.mxu0 0
    %3542 = vmatpush2.bf16.msra.mxu0 0
    %3543 = vmatprep.subr.bf16.mxu0 0
    %3544 = vmatpush2.bf16.msra.mxu0 0
    %3545 = vmatprep.subr.bf16.mxu0 0
    %3546 = vmatpush2.bf16.msra.mxu0 0
    %3547 = vmatprep.subr.bf16.mxu0 0
    %3548 = vmatpush2.bf16.msra.mxu0 0
    %3549 = vmatprep.subr.bf16.mxu0 0
    %3550 = vmatpush2.bf16.msra.mxu0 0
    %3551 = vmatprep.subr.bf16.mxu0 0
    %3552 = vmatpush2.bf16.msra.mxu0 0
    %3553 = vmatprep.subr.bf16.mxu0 0
    %3554 = vmatpush2.bf16.msra.mxu0 0
    %3555 = vmatprep.mubr.bf16.mxu0 0
    %3556 = vmatmul.mubr.bf16.gmra.mxu0 %v3451
    %v3557 = vpop.f32.mrf.mxu0
    %v3558 = vadd.f32 %v3473, %v3557
    %v3559 = vpop.f32.mrf.mxu0
    %v3560 = vpop.f32.mrf.mxu0
    %v3561 = vpop.f32.mrf.mxu0
    %3562 = vdwg.mxu0
    %3563 = vst [vmem:[%s18 + $0x18] sm:$0xff] %v3558
    %v3564 = vpack.c.bf16 %v2386, %v2386
    %v3565 = vpack.c.bf16 %v2387, %v2387
    %s3566 = scalar_lea.vmem [#allocation4], 512
    %v3567 = vld [vmem:[%s3566] sm:$0xf]
    %v3568 = vld [vmem:[%s3566 + $0x4] sm:$0xf]
    %v3569 = vld [vmem:[%s3566 + $0x8] sm:$0xf]
    %v3570 = vld [vmem:[%s3566 + $0xc] sm:$0xf]
    %v3571 = vld [vmem:[%s3566 + $0x10] sm:$0xf]
    %v3572 = vld [vmem:[%s3566 + $0x14] sm:$0xf]
    %v3573 = vld [vmem:[%s3566 + $0x18] sm:$0xf]
    %v3574 = vld [vmem:[%s3566 + $0x1c] sm:$0xf]
    %v3575 = vld [vmem:[%s3566 + $0x20] sm:$0xf]
    %v3576 = vld [vmem:[%s3566 + $0x24] sm:$0xf]
    %v3577 = vld [vmem:[%s3566 + $0x28] sm:$0xf]
    %v3578 = vld [vmem:[%s3566 + $0x2c] sm:$0xf]
    %v3579 = vld [vmem:[%s3566 + $0x30] sm:$0xf]
    %v3580 = vld [vmem:[%s3566 + $0x34] sm:$0xf]
    %v3581 = vld [vmem:[%s3566 + $0x38] sm:$0xf]
    %v3582 = vld [vmem:[%s3566 + $0x3c] sm:$0xf]
    %v3583 = vld [vmem:[%s3566 + $0x40] sm:$0xf]
    %v3584 = vld [vmem:[%s3566 + $0x44] sm:$0xf]
    %v3585 = vld [vmem:[%s3566 + $0x48] sm:$0xf]
    %v3586 = vld [vmem:[%s3566 + $0x4c] sm:$0xf]
    %v3587 = vld [vmem:[%s3566 + $0x50] sm:$0xf]
    %v3588 = vld [vmem:[%s3566 + $0x54] sm:$0xf]
    %v3589 = vld [vmem:[%s3566 + $0x58] sm:$0xf]
    %v3590 = vld [vmem:[%s3566 + $0x5c] sm:$0xf]
    %v3591 = vld [vmem:[%s3566 + $0x60] sm:$0xf]
    %v3592 = vld [vmem:[%s3566 + $0x64] sm:$0xf]
    %v3593 = vld [vmem:[%s3566 + $0x68] sm:$0xf]
    %v3594 = vld [vmem:[%s3566 + $0x6c] sm:$0xf]
    %v3595 = vld [vmem:[%s3566 + $0x70] sm:$0xf]
    %v3596 = vld [vmem:[%s3566 + $0x74] sm:$0xf]
    %v3597 = vld [vmem:[%s3566 + $0x78] sm:$0xf]
    %v3598 = vld [vmem:[%s3566 + $0x7c] sm:$0xf]
    %v3599 = vld [vmem:[#allocation20 + $0x4] sm:$0x1]
    %v3601 = vlaneseq
    %v3602 = vshrl.u32 %v3601, 7
    %v3603 = vsub.s32 0, %v3602
    %v3604 = vrot.slane %v3599, %v3603
    %v3638 = vunpack.c.l.b16 %v3567
    %v3639 = vunpack.c.l.b16 %v3568
    %v3640 = vunpack.c.l.b16 %v3569
    %v3641 = vunpack.c.l.b16 %v3570
    %v3642 = vunpack.c.l.b16 %v3571
    %v3643 = vunpack.c.l.b16 %v3572
    %v3644 = vunpack.c.l.b16 %v3573
    %v3645 = vunpack.c.l.b16 %v3574
    %v3646 = vunpack.c.l.b16 %v3575
    %v3647 = vunpack.c.l.b16 %v3576
    %v3648 = vunpack.c.l.b16 %v3577
    %v3649 = vunpack.c.l.b16 %v3578
    %v3650 = vunpack.c.l.b16 %v3579
    %v3651 = vunpack.c.l.b16 %v3580
    %v3652 = vunpack.c.l.b16 %v3581
    %v3653 = vunpack.c.l.b16 %v3582
    %v3654 = vunpack.c.l.b16 %v3583
    %v3655 = vunpack.c.l.b16 %v3584
    %v3656 = vunpack.c.l.b16 %v3585
    %v3657 = vunpack.c.l.b16 %v3586
    %v3658 = vunpack.c.l.b16 %v3587
    %v3659 = vunpack.c.l.b16 %v3588
    %v3660 = vunpack.c.l.b16 %v3589
    %v3661 = vunpack.c.l.b16 %v3590
    %v3662 = vunpack.c.l.b16 %v3591
    %v3663 = vunpack.c.l.b16 %v3592
    %v3664 = vunpack.c.l.b16 %v3593
    %v3665 = vunpack.c.l.b16 %v3594
    %v3666 = vunpack.c.l.b16 %v3595
    %v3667 = vunpack.c.l.b16 %v3596
    %v3668 = vunpack.c.l.b16 %v3597
    %v3669 = vunpack.c.l.b16 %v3598
    %v3670 = vpack.c.b16 %v3639, %v3638
    %v3671 = vpack.c.b16 %v3641, %v3640
    %v3672 = vpack.c.b16 %v3643, %v3642
    %v3673 = vpack.c.b16 %v3645, %v3644
    %v3674 = vpack.c.b16 %v3647, %v3646
    %v3675 = vpack.c.b16 %v3649, %v3648
    %v3676 = vpack.c.b16 %v3651, %v3650
    %v3677 = vpack.c.b16 %v3653, %v3652
    %v3678 = vpack.c.b16 %v3655, %v3654
    %v3679 = vpack.c.b16 %v3657, %v3656
    %v3680 = vpack.c.b16 %v3659, %v3658
    %v3681 = vpack.c.b16 %v3661, %v3660
    %v3682 = vpack.c.b16 %v3663, %v3662
    %v3683 = vpack.c.b16 %v3665, %v3664
    %v3684 = vpack.c.b16 %v3667, %v3666
    %v3685 = vpack.c.b16 %v3669, %v3668
    %3702 = vmatprep.subr.bf16.mxu0 0
    %3703 = vmatpush1.bf16.msra.mxu0 %v3677
    %3704 = vmatprep.subr.bf16.mxu0 0
    %3705 = vmatpush1.bf16.msra.mxu0 %v3676
    %3706 = vmatprep.subr.bf16.mxu0 0
    %3707 = vmatpush1.bf16.msra.mxu0 %v3675
    %3708 = vmatprep.subr.bf16.mxu0 0
    %3709 = vmatpush1.bf16.msra.mxu0 %v3674
    %3710 = vmatprep.subr.bf16.mxu0 0
    %3711 = vmatpush1.bf16.msra.mxu0 %v3673
    %3712 = vmatprep.subr.bf16.mxu0 0
    %3713 = vmatpush1.bf16.msra.mxu0 %v3672
    %3714 = vmatprep.subr.bf16.mxu0 0
    %3715 = vmatpush1.bf16.msra.mxu0 %v3671
    %3716 = vmatprep.subr.bf16.mxu0 0
    %3717 = vmatpush1.bf16.msra.mxu0 %v3670
    %3718 = vmatprep.subr.bf16.mxu0 0
    %3719 = vmatpush2.bf16.msra.mxu0 %v3685
    %3720 = vmatprep.subr.bf16.mxu0 0
    %3721 = vmatpush2.bf16.msra.mxu0 %v3684
    %3722 = vmatprep.subr.bf16.mxu0 0
    %3723 = vmatpush2.bf16.msra.mxu0 %v3683
    %3724 = vmatprep.subr.bf16.mxu0 0
    %3725 = vmatpush2.bf16.msra.mxu0 %v3682
    %3726 = vmatprep.subr.bf16.mxu0 0
    %3727 = vmatpush2.bf16.msra.mxu0 %v3681
    %3728 = vmatprep.subr.bf16.mxu0 0
    %3729 = vmatpush2.bf16.msra.mxu0 %v3680
    %3730 = vmatprep.subr.bf16.mxu0 0
    %3731 = vmatpush2.bf16.msra.mxu0 %v3679
    %3732 = vmatprep.subr.bf16.mxu0 0
    %3733 = vmatpush2.bf16.msra.mxu0 %v3678
    %3734 = vmatprep.mubr.bf16.mxu0 %v3565
    %3735 = vmatmul.mubr.bf16.gmra.mxu0 %v3564
    %v3736 = vpop.f32.mrf.mxu0
    %v3737 = vadd.f32 %v3604, %v3736
    %v3738 = vpop.f32.mrf.mxu0
    %v3739 = vpop.f32.mrf.mxu0
    %v3740 = vpop.f32.mrf.mxu0
    %3741 = vdwg.mxu0
    %v3742 = vmax.f32 %v3737, 0.0
    %v3743 = vpack.c.bf16 %v3742, %v3742
    %v3744 = vld [vmem:[#allocation5 + $0x10] sm:$0xff]
    %v3745 = vld [vmem:[#allocation5 + $0x18] sm:$0xff]
    %v3746 = vld [vmem:[#allocation5 + $0x20] sm:$0xf]
    %v3747 = vld [vmem:[#allocation5 + $0x34] sm:$0xff]
    %v3748 = vld [vmem:[#allocation5 + $0x3c] sm:$0xff]
    %v3749 = vld [vmem:[#allocation5 + $0x44] sm:$0xf]
    %v3750 = vld [vmem:[#allocation5 + $0x58] sm:$0xff]
    %v3751 = vld [vmem:[#allocation5 + $0x60] sm:$0xff]
    %v3752 = vld [vmem:[#allocation5 + $0x68] sm:$0xf]
    %v3753 = vld [vmem:[#allocation5 + $0x7c] sm:$0xff]
    %v3754 = vld [vmem:[#allocation5 + $0x84] sm:$0xff]
    %v3755 = vld [vmem:[#allocation5 + $0x8c] sm:$0xf]
    %v3756 = vld [vmem:[#allocation5 + $0xa0] sm:$0xff]
    %v3757 = vld [vmem:[#allocation5 + $0xa8] sm:$0xff]
    %v3758 = vld [vmem:[#allocation5 + $0xb0] sm:$0xf]
    %v3759 = vld [vmem:[#allocation5 + $0xc4] sm:$0xff]
    %v3760 = vld [vmem:[#allocation5 + $0xcc] sm:$0xff]
    %v3761 = vld [vmem:[#allocation5 + $0xd4] sm:$0xf]
    %v3762 = vld [vmem:[#allocation5 + $0xe8] sm:$0xff]
    %v3763 = vld [vmem:[#allocation5 + $0xf0] sm:$0xff]
    %v3764 = vld [vmem:[#allocation5 + $0xf8] sm:$0xf]
    %v3765 = vld [vmem:[#allocation5 + $0x10c] sm:$0xff]
    %v3766 = vld [vmem:[#allocation5 + $0x114] sm:$0xff]
    %v3767 = vld [vmem:[#allocation5 + $0x11c] sm:$0xf]
    %v3768 = vld [vmem:[#allocation5 + $0x130] sm:$0xff]
    %v3769 = vld [vmem:[#allocation5 + $0x138] sm:$0xff]
    %v3770 = vld [vmem:[#allocation5 + $0x140] sm:$0xf]
    %v3771 = vld [vmem:[#allocation5 + $0x154] sm:$0xff]
    %v3772 = vld [vmem:[#allocation5 + $0x15c] sm:$0xff]
    %v3773 = vld [vmem:[#allocation5 + $0x164] sm:$0xf]
    %v3774 = vld [vmem:[#allocation5 + $0x178] sm:$0xff]
    %v3775 = vld [vmem:[#allocation5 + $0x180] sm:$0xff]
    %v3776 = vld [vmem:[#allocation5 + $0x188] sm:$0xf]
    %v3777 = vld [vmem:[#allocation5 + $0x19c] sm:$0xff]
    %v3778 = vld [vmem:[#allocation5 + $0x1a4] sm:$0xff]
    %v3779 = vld [vmem:[#allocation5 + $0x1ac] sm:$0xf]
    %v3780 = vld [vmem:[#allocation5 + $0x1c0] sm:$0xff]
    %v3781 = vld [vmem:[#allocation5 + $0x1c8] sm:$0xff]
    %v3782 = vld [vmem:[#allocation5 + $0x1d0] sm:$0xf]
    %v3783 = vld [vmem:[#allocation5 + $0x1e4] sm:$0xff]
    %v3784 = vld [vmem:[#allocation5 + $0x1ec] sm:$0xff]
    %v3785 = vld [vmem:[#allocation5 + $0x1f4] sm:$0xf]
    %v3786 = vld [vmem:[#allocation5 + $0x208] sm:$0xff]
    %v3787 = vld [vmem:[#allocation5 + $0x210] sm:$0xff]
    %v3788 = vld [vmem:[#allocation5 + $0x218] sm:$0xf]
    %v3789 = vld [vmem:[#allocation5 + $0x22c] sm:$0xff]
    %v3790 = vld [vmem:[#allocation5 + $0x234] sm:$0xff]
    %v3791 = vld [vmem:[#allocation5 + $0x23c] sm:$0xf]
    %v3792 = vld [vmem:[%s11 + $0x4] sm:$0x1f]
    %v3794 = vlaneseq
    %v3795 = vshrl.u32 %v3794, 7
    %v3796 = vsub.s32 0, %v3795
    %v3797 = vrot.slane %v3792, %v3796
    %v3798 = vlaneseq
    %v3799 = vshrl.u32 %v3798, 7
    %v3800 = vsub.s32 1, %v3799
    %v3801 = vrot.slane %v3792, %v3800
    %v3802 = vlaneseq
    %v3803 = vshrl.u32 %v3802, 7
    %v3804 = vsub.s32 2, %v3803
    %v3805 = vrot.slane %v3792, %v3804
    %v3806 = vlaneseq
    %v3807 = vshrl.u32 %v3806, 7
    %v3808 = vsub.s32 3, %v3807
    %v3809 = vrot.slane %v3792, %v3808
    %v3810 = vlaneseq
    %v3811 = vshrl.u32 %v3810, 7
    %v3812 = vsub.s32 4, %v3811
    %v3813 = vrot.slane %v3792, %v3812
    %v3867 = vunpack.c.l.b16 %v3744
    %v3868 = vunpack.c.h.b16 %v3744
    %v3869 = vunpack.c.l.b16 %v3745
    %v3870 = vunpack.c.h.b16 %v3745
    %v3871 = vunpack.c.l.b16 %v3746
    %v3872 = vunpack.c.l.b16 %v3747
    %v3873 = vunpack.c.h.b16 %v3747
    %v3874 = vunpack.c.l.b16 %v3748
    %v3875 = vunpack.c.h.b16 %v3748
    %v3876 = vunpack.c.l.b16 %v3749
    %v3877 = vunpack.c.l.b16 %v3750
    %v3878 = vunpack.c.h.b16 %v3750
    %v3879 = vunpack.c.l.b16 %v3751
    %v3880 = vunpack.c.h.b16 %v3751
    %v3881 = vunpack.c.l.b16 %v3752
    %v3882 = vunpack.c.l.b16 %v3753
    %v3883 = vunpack.c.h.b16 %v3753
    %v3884 = vunpack.c.l.b16 %v3754
    %v3885 = vunpack.c.h.b16 %v3754
    %v3886 = vunpack.c.l.b16 %v3755
    %v3887 = vunpack.c.l.b16 %v3756
    %v3888 = vunpack.c.h.b16 %v3756
    %v3889 = vunpack.c.l.b16 %v3757
    %v3890 = vunpack.c.h.b16 %v3757
    %v3891 = vunpack.c.l.b16 %v3758
    %v3892 = vunpack.c.l.b16 %v3759
    %v3893 = vunpack.c.h.b16 %v3759
    %v3894 = vunpack.c.l.b16 %v3760
    %v3895 = vunpack.c.h.b16 %v3760
    %v3896 = vunpack.c.l.b16 %v3761
    %v3897 = vunpack.c.l.b16 %v3762
    %v3898 = vunpack.c.h.b16 %v3762
    %v3899 = vunpack.c.l.b16 %v3763
    %v3900 = vunpack.c.h.b16 %v3763
    %v3901 = vunpack.c.l.b16 %v3764
    %v3902 = vunpack.c.l.b16 %v3765
    %v3903 = vunpack.c.h.b16 %v3765
    %v3904 = vunpack.c.l.b16 %v3766
    %v3905 = vunpack.c.h.b16 %v3766
    %v3906 = vunpack.c.l.b16 %v3767
    %v3907 = vunpack.c.l.b16 %v3768
    %v3908 = vunpack.c.h.b16 %v3768
    %v3909 = vunpack.c.l.b16 %v3769
    %v3910 = vunpack.c.h.b16 %v3769
    %v3911 = vunpack.c.l.b16 %v3770
    %v3912 = vunpack.c.l.b16 %v3771
    %v3913 = vunpack.c.h.b16 %v3771
    %v3914 = vunpack.c.l.b16 %v3772
    %v3915 = vunpack.c.h.b16 %v3772
    %v3916 = vunpack.c.l.b16 %v3773
    %v3917 = vunpack.c.l.b16 %v3774
    %v3918 = vunpack.c.h.b16 %v3774
    %v3919 = vunpack.c.l.b16 %v3775
    %v3920 = vunpack.c.h.b16 %v3775
    %v3921 = vunpack.c.l.b16 %v3776
    %v3922 = vunpack.c.l.b16 %v3777
    %v3923 = vunpack.c.h.b16 %v3777
    %v3924 = vunpack.c.l.b16 %v3778
    %v3925 = vunpack.c.h.b16 %v3778
    %v3926 = vunpack.c.l.b16 %v3779
    %v3927 = vunpack.c.l.b16 %v3780
    %v3928 = vunpack.c.h.b16 %v3780
    %v3929 = vunpack.c.l.b16 %v3781
    %v3930 = vunpack.c.h.b16 %v3781
    %v3931 = vunpack.c.l.b16 %v3782
    %v3932 = vunpack.c.l.b16 %v3783
    %v3933 = vunpack.c.h.b16 %v3783
    %v3934 = vunpack.c.l.b16 %v3784
    %v3935 = vunpack.c.h.b16 %v3784
    %v3936 = vunpack.c.l.b16 %v3785
    %v3937 = vunpack.c.l.b16 %v3786
    %v3938 = vunpack.c.h.b16 %v3786
    %v3939 = vunpack.c.l.b16 %v3787
    %v3940 = vunpack.c.h.b16 %v3787
    %v3941 = vunpack.c.l.b16 %v3788
    %v3942 = vunpack.c.l.b16 %v3789
    %v3943 = vunpack.c.h.b16 %v3789
    %v3944 = vunpack.c.l.b16 %v3790
    %v3945 = vunpack.c.h.b16 %v3790
    %v3946 = vunpack.c.l.b16 %v3791
    %v3947 = vpack.c.b16 %v3872, %v3867
    %v3948 = vpack.c.b16 %v3873, %v3868
    %v3949 = vpack.c.b16 %v3874, %v3869
    %v3950 = vpack.c.b16 %v3875, %v3870
    %v3951 = vpack.c.b16 %v3876, %v3871
    %v3952 = vpack.c.b16 %v3882, %v3877
    %v3953 = vpack.c.b16 %v3883, %v3878
    %v3954 = vpack.c.b16 %v3884, %v3879
    %v3955 = vpack.c.b16 %v3885, %v3880
    %v3956 = vpack.c.b16 %v3886, %v3881
    %v3957 = vpack.c.b16 %v3892, %v3887
    %v3958 = vpack.c.b16 %v3893, %v3888
    %v3959 = vpack.c.b16 %v3894, %v3889
    %v3960 = vpack.c.b16 %v3895, %v3890
    %v3961 = vpack.c.b16 %v3896, %v3891
    %v3962 = vpack.c.b16 %v3902, %v3897
    %v3963 = vpack.c.b16 %v3903, %v3898
    %v3964 = vpack.c.b16 %v3904, %v3899
    %v3965 = vpack.c.b16 %v3905, %v3900
    %v3966 = vpack.c.b16 %v3906, %v3901
    %v3967 = vpack.c.b16 %v3912, %v3907
    %v3968 = vpack.c.b16 %v3913, %v3908
    %v3969 = vpack.c.b16 %v3914, %v3909
    %v3970 = vpack.c.b16 %v3915, %v3910
    %v3971 = vpack.c.b16 %v3916, %v3911
    %v3972 = vpack.c.b16 %v3922, %v3917
    %v3973 = vpack.c.b16 %v3923, %v3918
    %v3974 = vpack.c.b16 %v3924, %v3919
    %v3975 = vpack.c.b16 %v3925, %v3920
    %v3976 = vpack.c.b16 %v3926, %v3921
    %v3977 = vpack.c.b16 %v3932, %v3927
    %v3978 = vpack.c.b16 %v3933, %v3928
    %v3979 = vpack.c.b16 %v3934, %v3929
    %v3980 = vpack.c.b16 %v3935, %v3930
    %v3981 = vpack.c.b16 %v3936, %v3931
    %v3982 = vpack.c.b16 %v3942, %v3937
    %v3983 = vpack.c.b16 %v3943, %v3938
    %v3984 = vpack.c.b16 %v3944, %v3939
    %v3985 = vpack.c.b16 %v3945, %v3940
    %v3986 = vpack.c.b16 %v3946, %v3941
    %4027 = vmatprep.subr.bf16.mxu0 %v3983
    %4028 = vmatpush1.bf16.msra.mxu0 %v3982
    %4029 = vmatprep.subr.bf16.mxu0 %v3978
    %4030 = vmatpush1.bf16.msra.mxu0 %v3977
    %4031 = vmatprep.subr.bf16.mxu0 %v3973
    %4032 = vmatpush1.bf16.msra.mxu0 %v3972
    %4033 = vmatprep.subr.bf16.mxu0 %v3968
    %4034 = vmatpush1.bf16.msra.mxu0 %v3967
    %4035 = vmatprep.subr.bf16.mxu0 %v3963
    %4036 = vmatpush1.bf16.msra.mxu0 %v3962
    %4037 = vmatprep.subr.bf16.mxu0 %v3958
    %4038 = vmatpush1.bf16.msra.mxu0 %v3957
    %4039 = vmatprep.subr.bf16.mxu0 %v3953
    %4040 = vmatpush1.bf16.msra.mxu0 %v3952
    %4041 = vmatprep.subr.bf16.mxu0 %v3948
    %4042 = vmatpush1.bf16.msra.mxu0 %v3947
    %4043 = vmatprep.subr.bf16.mxu0 0
    %4044 = vmatpush2.bf16.msra.mxu0 0
    %4045 = vmatprep.subr.bf16.mxu0 0
    %4046 = vmatpush2.bf16.msra.mxu0 0
    %4047 = vmatprep.subr.bf16.mxu0 0
    %4048 = vmatpush2.bf16.msra.mxu0 0
    %4049 = vmatprep.subr.bf16.mxu0 0
    %4050 = vmatpush2.bf16.msra.mxu0 0
    %4051 = vmatprep.subr.bf16.mxu0 0
    %4052 = vmatpush2.bf16.msra.mxu0 0
    %4053 = vmatprep.subr.bf16.mxu0 0
    %4054 = vmatpush2.bf16.msra.mxu0 0
    %4055 = vmatprep.subr.bf16.mxu0 0
    %4056 = vmatpush2.bf16.msra.mxu0 0
    %4057 = vmatprep.subr.bf16.mxu0 0
    %4058 = vmatpush2.bf16.msra.mxu0 0
    %4059 = vmatprep.mubr.bf16.mxu0 0
    %4060 = vmatmul.mubr.bf16.gmra.mxu0 %v3743
    %v4061 = vpop.f32.mrf.mxu0
    %v4062 = vadd.f32 %v3797, %v4061
    %v4063 = vpop.f32.mrf.mxu0
    %v4064 = vadd.f32 %v3801, %v4063
    %v4065 = vpop.f32.mrf.mxu0
    %v4066 = vpop.f32.mrf.mxu0
    %4067 = vdwg.mxu0
    %4068 = vmatprep.subr.bf16.mxu0 %v3985
    %4069 = vmatpush1.bf16.msra.mxu0 %v3984
    %4070 = vmatprep.subr.bf16.mxu0 %v3980
    %4071 = vmatpush1.bf16.msra.mxu0 %v3979
    %4072 = vmatprep.subr.bf16.mxu0 %v3975
    %4073 = vmatpush1.bf16.msra.mxu0 %v3974
    %4074 = vmatprep.subr.bf16.mxu0 %v3970
    %4075 = vmatpush1.bf16.msra.mxu0 %v3969
    %4076 = vmatprep.subr.bf16.mxu0 %v3965
    %4077 = vmatpush1.bf16.msra.mxu0 %v3964
    %4078 = vmatprep.subr.bf16.mxu0 %v3960
    %4079 = vmatpush1.bf16.msra.mxu0 %v3959
    %4080 = vmatprep.subr.bf16.mxu0 %v3955
    %4081 = vmatpush1.bf16.msra.mxu0 %v3954
    %4082 = vmatprep.subr.bf16.mxu0 %v3950
    %4083 = vmatpush1.bf16.msra.mxu0 %v3949
    %4084 = vmatprep.subr.bf16.mxu0 0
    %4085 = vmatpush2.bf16.msra.mxu0 0
    %4086 = vmatprep.subr.bf16.mxu0 0
    %4087 = vmatpush2.bf16.msra.mxu0 0
    %4088 = vmatprep.subr.bf16.mxu0 0
    %4089 = vmatpush2.bf16.msra.mxu0 0
    %4090 = vmatprep.subr.bf16.mxu0 0
    %4091 = vmatpush2.bf16.msra.mxu0 0
    %4092 = vmatprep.subr.bf16.mxu0 0
    %4093 = vmatpush2.bf16.msra.mxu0 0
    %4094 = vmatprep.subr.bf16.mxu0 0
    %4095 = vmatpush2.bf16.msra.mxu0 0
    %4096 = vmatprep.subr.bf16.mxu0 0
    %4097 = vmatpush2.bf16.msra.mxu0 0
    %4098 = vmatprep.subr.bf16.mxu0 0
    %4099 = vmatpush2.bf16.msra.mxu0 0
    %4100 = vmatprep.mubr.bf16.mxu0 0
    %4101 = vmatmul.mubr.bf16.gmra.mxu0 %v3743
    %v4102 = vpop.f32.mrf.mxu0
    %v4103 = vadd.f32 %v3805, %v4102
    %v4104 = vpop.f32.mrf.mxu0
    %v4105 = vadd.f32 %v3809, %v4104
    %v4106 = vpop.f32.mrf.mxu0
    %v4107 = vpop.f32.mrf.mxu0
    %4108 = vdwg.mxu0
    %4109 = vmatprep.subr.bf16.mxu0 0
    %4110 = vmatpush1.bf16.msra.mxu0 %v3986
    %4111 = vmatprep.subr.bf16.mxu0 0
    %4112 = vmatpush1.bf16.msra.mxu0 %v3981
    %4113 = vmatprep.subr.bf16.mxu0 0
    %4114 = vmatpush1.bf16.msra.mxu0 %v3976
    %4115 = vmatprep.subr.bf16.mxu0 0
    %4116 = vmatpush1.bf16.msra.mxu0 %v3971
    %4117 = vmatprep.subr.bf16.mxu0 0
    %4118 = vmatpush1.bf16.msra.mxu0 %v3966
    %4119 = vmatprep.subr.bf16.mxu0 0
    %4120 = vmatpush1.bf16.msra.mxu0 %v3961
    %4121 = vmatprep.subr.bf16.mxu0 0
    %4122 = vmatpush1.bf16.msra.mxu0 %v3956
    %4123 = vmatprep.subr.bf16.mxu0 0
    %4124 = vmatpush1.bf16.msra.mxu0 %v3951
    %4125 = vmatprep.subr.bf16.mxu0 0
    %4126 = vmatpush2.bf16.msra.mxu0 0
    %4127 = vmatprep.subr.bf16.mxu0 0
    %4128 = vmatpush2.bf16.msra.mxu0 0
    %4129 = vmatprep.subr.bf16.mxu0 0
    %4130 = vmatpush2.bf16.msra.mxu0 0
    %4131 = vmatprep.subr.bf16.mxu0 0
    %4132 = vmatpush2.bf16.msra.mxu0 0
    %4133 = vmatprep.subr.bf16.mxu0 0
    %4134 = vmatpush2.bf16.msra.mxu0 0
    %4135 = vmatprep.subr.bf16.mxu0 0
    %4136 = vmatpush2.bf16.msra.mxu0 0
    %4137 = vmatprep.subr.bf16.mxu0 0
    %4138 = vmatpush2.bf16.msra.mxu0 0
    %4139 = vmatprep.subr.bf16.mxu0 0
    %4140 = vmatpush2.bf16.msra.mxu0 0
    %4141 = vmatprep.mubr.bf16.mxu0 0
    %4142 = vmatmul.mubr.bf16.gmra.mxu0 %v3743
    %v4143 = vpop.f32.mrf.mxu0
    %v4144 = vadd.f32 %v3813, %v4143
    %v4145 = vpop.f32.mrf.mxu0
    %v4146 = vpop.f32.mrf.mxu0
    %v4147 = vpop.f32.mrf.mxu0
    %4148 = vdwg.mxu0
    %4149 = vst [vmem:[%s18 + $0x20] sm:$0xff] %v4062
    %4150 = vst [vmem:[%s18 + $0x28] sm:$0xff] %v4064
    %4151 = vst [vmem:[%s18 + $0x30] sm:$0xff] %v4103
    %4152 = vst [vmem:[%s18 + $0x38] sm:$0xff] %v4105
    %4153 = vst [vmem:[%s18 + $0x40] sm:$0xff] %v4144
    // Predicated region
    $region98: #{simple_clip_forward.1} parent=1 // pred_check
      _
    $region99: #{simple_clip_forward.1} parent=1 // pred_check_branch
      %4155 = sbr.rel (0) target = $region101
    $region100: #{simple_clip_forward.1} parent=1 // pred_region
      %s4157 = ssub.s32 16, 16
      %4158 = vsyncadd [#allocation10], %s4157
      %s4160 = sshll.u32 [#allocation22], 4
      %s4161 = int_to_ptr.vmem [resolvable:$true] %s4160
      %4163 = dma.vmem_to_hbm [thread:$0]  %s4161, 16, %s16, [#allocation10]
    $region101: #{simple_clip_forward.1} parent=1 // pred_fallthru
      _
    // Predicated region
    $region102: #{simple_clip_forward.1} parent=1 // pred_check
      _
    $region103: #{simple_clip_forward.1} parent=1 // pred_check_branch
      %4165 = sbr.rel (0) target = $region105
    $region104: #{simple_clip_forward.1} parent=1 // pred_region
      %s4167 = ssub.s32 256, 256
      %4168 = vsyncadd [#allocation24], %s4167
      %s4170 = sshll.u32 [#allocation23], 4
      %s4171 = int_to_ptr.vmem [resolvable:$true] %s4170
      %4173 = dma.vmem_to_hbm [thread:$0]  %s4171, 256, %s17, [#allocation24]
    $region105: #{simple_clip_forward.1} parent=1 // pred_fallthru
      _
    // Predicated region
    $region106: #{simple_clip_forward.1} parent=1 // pred_check
      _
    $region107: #{simple_clip_forward.1} parent=1 // pred_check_branch
      %4175 = sbr.rel (0) target = $region109
    $region108: #{simple_clip_forward.1} parent=1 // pred_region
      _
    $region109: #{simple_clip_forward.1} parent=1 // pred_fallthru
      _
    // Predicated region
    $region110: #{simple_clip_forward.1} parent=1 // pred_check
      _
    $region111: #{simple_clip_forward.1} parent=1 // pred_check_branch
      %4177 = sbr.rel (0) target = $region113
    $region112: #{simple_clip_forward.1} parent=1 // pred_region
      %4178 = dma.done [#allocation10], 16
    $region113: #{simple_clip_forward.1} parent=1 // pred_fallthru
      _
    // Predicated region
    $region114: #{simple_clip_forward.1} parent=1 // pred_check
      _
    $region115: #{simple_clip_forward.1} parent=1 // pred_check_branch
      %4180 = sbr.rel (0) target = $region117
    $region116: #{simple_clip_forward.1} parent=1 // pred_region
      %4181 = dma.done [#allocation24], 256
    $region117: #{simple_clip_forward.1} parent=1 // pred_fallthru
      _
    // Predicated region
    $region118: #{simple_clip_forward.1} parent=1 // pred_check
      _
    $region119: #{simple_clip_forward.1} parent=1 // pred_check_branch
      %4183 = sbr.rel (0) target = $region121
    $region120: #{simple_clip_forward.1} parent=1 // pred_region
      _
    $region121: #{simple_clip_forward.1} parent=1 // pred_fallthru
      _
    %4184 = vsyncpa [#allocation9], 1
    %4185 = vsyncpa [#allocation12], 1
    %4186 = vsyncpa [#allocation15], 1
    %4187 = vsyncpa [#allocation18], 1
    %4188 = vsyncpa [#allocation21], 1
    %4189 = vsyncpa [#allocation10], 1
    %4190 = vsyncpa [#allocation24], 1
  %4191 = vsyncmov [#allocation6]
  %s4192 = vpop.sfrf %4191
  %p4193 = scmp.eq.s32.totalorder %s4192, 0
  %p4194 = pneg %p4193
  %4196 = shalt.err (%p4194)
  %s4197 = scalar_lea.sflag [#allocation6], 1
  %4198 = vsyncmov %s4197
  %s4199 = vpop.sfrf %4198
  %p4200 = scmp.eq.s32.totalorder %s4199, 0
  %p4201 = pneg %p4200
  %4203 = shalt.err (%p4201)
  %s4204 = scalar_lea.sflag [#allocation6], 2
  %4205 = vsyncmov %s4204
  %s4206 = vpop.sfrf %4205
  %p4207 = scmp.eq.s32.totalorder %s4206, 0
  %p4208 = pneg %p4207
  %4210 = shalt.err (%p4208)
  %s4211 = scalar_lea.sflag [#allocation6], 3
  %4212 = vsyncmov %s4211
  %s4213 = vpop.sfrf %4212
  %p4214 = scmp.eq.s32.totalorder %s4213, 0
  %p4215 = pneg %p4214
  %4217 = shalt.err (%p4215)

</llo_original>
